<compile_context>
chip_gen: v7x
topology: tpu7x:2x2x1
jax: 0.10.0
libtpu: 0.0.40
codegen_flags: <defaults>
</compile_context>

<pallas_src>
import math
import functools

import jax
import jax.numpy as jnp
from jax.experimental import pallas as pl
from jax.experimental.pallas import tpu as pltpu

# ----------------------------- config (tiny BERT) ----------------------------
HIDDEN = 128           # lane-dense stand-in for hidden_dim=768
N_HEADS = 4
HEAD_DIM = HIDDEN // N_HEADS
N_LAYERS = 2
INTERMEDIATE = 256
VOCAB = 50
MAX_POS = 16
SCORER_HIDDEN = 128    # matches nn.Linear(hidden_dim, 128)
SCORE_LANES = 128      # lane-dense score output; column 0 holds the score
LN_EPS = 1e-12
BATCH = 2
SEQ = 8


# ------------------------------ in-kernel helpers -----------------------------
def _ln(x, g, b, eps=LN_EPS):
    """LayerNorm over the last axis; g/b are [1, H] and broadcast."""
    mu = jnp.mean(x, axis=-1, keepdims=True)
    d = x - mu
    var = jnp.mean(d * d, axis=-1, keepdims=True)
    return d * jax.lax.rsqrt(var + eps) * g + b


def _gelu(y):
    # TODO(synk): HF BERT uses the exact erf-based GELU; tanh approximation used here.
    c = math.sqrt(2.0 / math.pi)
    return 0.5 * y * (1.0 + jnp.tanh(c * (y + 0.044715 * y * y * y)))


# ------------------------------- fused kernel --------------------------------
def _fused_scorer_kernel(
    x_ref, kvm_ref, embg_ref, embb_ref,
    wqkv_ref, bqkv_ref, wo_ref, bo_ref, ln1g_ref, ln1b_ref,
    w1_ref, b1_ref, w2_ref, b2_ref, ln2g_ref, ln2b_ref,
    wp_ref, bp_ref, ws1_ref, bs1_ref, ws2_ref, bs2_ref,
    h_ref, score_ref,
    *, n_heads, head_dim, inv_sqrt_d):
    """Grid = (batch, layer).  h_ref (per-batch [1,S,H] output block, resident
    across the layer axis) is the layer-to-layer carry."""
    l = pl.program_id(1)
    n_l = pl.num_programs(1)
    S = x_ref.shape[1]
    H = n_heads * head_dim

    # ---- layer 0: embedding LayerNorm initializes the resident carry.
    @pl.when(l == 0)
    def _():
        h_ref[0] = _ln(x_ref[0], embg_ref[...], embb_ref[...])

    x = h_ref[0]                                           # [S, H] f32 carry

    # ---- additive key-padding mask built in-kernel from the [1, S] validity row.
    add_mask = jnp.where(kvm_ref[0] > 0.5, 0.0, -1e9).astype(jnp.float32)  # [1, S]

    # ---- fused QKV projection (one [H, 3H] matmul), scale folded into q.
    xb = x.astype(jnp.bfloat16)
    qkv = jnp.dot(xb, wqkv_ref[0],
                  preferred_element_type=jnp.float32) + bqkv_ref[0]        # [S, 3H]
    q = qkv[:, :H] * inv_sqrt_d
    k = qkv[:, H:2 * H]
    v = qkv[:, 2 * H:]

    # heads as a leading batch dim: [n_heads, S, head_dim]
    qh = jnp.swapaxes(q.reshape(S, n_heads, head_dim), 0, 1).astype(jnp.bfloat16)
    kh = jnp.swapaxes(k.reshape(S, n_heads, head_dim), 0, 1).astype(jnp.bfloat16)
    vh = jnp.swapaxes(v.reshape(S, n_heads, head_dim), 0, 1).astype(jnp.bfloat16)

    # ---- batched-over-heads masked softmax attention (single dot_general each).
    s = jnp.einsum('hqd,hkd->hqk', qh, kh,
                   preferred_element_type=jnp.float32)                     # [h, S, S]
    s = s + add_mask[None]
    s = s - jnp.max(s, axis=-1, keepdims=True)
    p = jnp.exp(s)
    p = p * pl.reciprocal(jnp.sum(p, axis=-1, keepdims=True), approx=True)

    ctx = jnp.einsum('hqk,hkd->hqd', p.astype(jnp.bfloat16), vh,
                     preferred_element_type=jnp.float32)                   # [h, S, Dh]
    ctx = jnp.swapaxes(ctx, 0, 1).reshape(S, H)                            # [S, H]

    # ---- output projection + residual + LayerNorm.
    attn = jnp.dot(ctx.astype(jnp.bfloat16), wo_ref[0],
                   preferred_element_type=jnp.float32) + bo_ref[0]
    h1 = _ln(attn + x, ln1g_ref[0], ln1b_ref[0])

    # ---- FFN (GELU) + residual + LayerNorm.
    inter = _gelu(jnp.dot(h1.astype(jnp.bfloat16), w1_ref[0],
                          preferred_element_type=jnp.float32) + b1_ref[0])
    ffn = jnp.dot(inter.astype(jnp.bfloat16), w2_ref[0],
                  preferred_element_type=jnp.float32) + b2_ref[0]
    out = _ln(ffn + h1, ln2g_ref[0], ln2b_ref[0])

    h_ref[0] = out                                         # carry to next layer

    # ---- last layer: fused pooler (tanh) + scorer (Linear-ReLU-(mul+reduce)).
    @pl.when(l == n_l - 1)
    def _():
        cls = out[0:1, :].astype(jnp.bfloat16)                             # [1, H]
        pooled = jnp.tanh(jnp.dot(cls, wp_ref[...],
                                  preferred_element_type=jnp.float32) + bp_ref[...])
        s1 = jnp.maximum(jnp.dot(pooled.astype(jnp.bfloat16), ws1_ref[...],
                                 preferred_element_type=jnp.float32)
                         + bs1_ref[...], 0.0)                              # [1, SH]
        # N=1 matmul replaced by VPU multiply + lane-reduce; bias is lane-broadcast.
        score = jnp.sum(s1 * ws2_ref[...], axis=-1, keepdims=True)         # [1, 1]
        score_ref[0] = jnp.broadcast_to(score, (1, score_ref.shape[-1])) + bs2_ref[...]


# --------------------------------- wrapper ------------------------------------
def pallas_transformer_scorer(emb, key_valid, params):
    """emb: [B, S, H] pre-LN embeddings; key_valid: [B, 1, S] f32 (1 = attend)."""
    B, S, H = emb.shape
    L, I, SH = N_LAYERS, INTERMEDIATE, SCORER_HIDDEN

    const = lambda shape: pl.BlockSpec(shape, lambda b, l: (0,) * len(shape))
    per_layer = lambda shape: pl.BlockSpec((1,) + shape, lambda b, l: (l, 0, 0))
    per_batch = lambda shape: pl.BlockSpec((1,) + shape, lambda b, l: (b, 0, 0))
    v3 = lambda a: a.reshape(L, 1, a.shape[-1])

    hidden, score = pl.pallas_call(
        functools.partial(_fused_scorer_kernel, n_heads=N_HEADS,
                          head_dim=HEAD_DIM, inv_sqrt_d=1.0 / math.sqrt(HEAD_DIM)),
        grid=(B, L),
        out_shape=(jax.ShapeDtypeStruct((B, S, H), jnp.float32),
                   jax.ShapeDtypeStruct((B, 1, SCORE_LANES), jnp.float32)),
        in_specs=[
            per_batch((S, H)),                 # embeddings (read at layer 0 only)
            per_batch((1, S)),                 # key-validity row
            const((1, H)), const((1, H)),      # embedding LN gamma/beta
            per_layer((H, 3 * H)), per_layer((1, 3 * H)),   # wqkv / bqkv
            per_layer((H, H)), per_layer((1, H)),           # wo / bo
            per_layer((1, H)), per_layer((1, H)),           # ln1 gamma/beta
            per_layer((H, I)), per_layer((1, I)),           # w1 / b1
            per_layer((I, H)), per_layer((1, H)),           # w2 / b2
            per_layer((1, H)), per_layer((1, H)),           # ln2 gamma/beta
            const((H, H)), const((1, H)),                   # pooler w / b
            const((H, SH)), const((1, SH)),                 # scorer w1 / b1
            const((1, SH)), const((1, SCORE_LANES)),        # scorer w2 (row) / b2
        ],
        out_specs=(per_batch((S, H)),                        # hidden carry (resident)
                   per_batch((1, SCORE_LANES))),             # lane-dense score
        compiler_params=pltpu.CompilerParams(
            dimension_semantics=("parallel", "arbitrary"),
            vmem_limit_bytes=32 * 1024 * 1024),
    )(emb, key_valid,
      params["emb_ln_g"].reshape(1, H), params["emb_ln_b"].reshape(1, H),
      params["wqkv"], v3(params["bqkv"]),
      params["wo"], v3(params["bo"]),
      v3(params["ln1_g"]), v3(params["ln1_b"]),
      params["w1"], v3(params["b1"]),
      params["w2"], v3(params["b2"]),
      v3(params["ln2_g"]), v3(params["ln2_b"]),
      params["pooler_w"], params["pooler_b"].reshape(1, H),
      params["scorer_w1"], params["scorer_b1"].reshape(1, SH),
      params["scorer_w2t"],
      jnp.broadcast_to(params["scorer_b2"].reshape(1, 1), (1, SCORE_LANES)))
    return hidden, score


# ----------------------------- parameter creation ----------------------------
def init_params(key):
    std = 0.02
    keys = iter(jax.random.split(key, 32))

    def w(shape, dtype=jnp.bfloat16):
        return (std * jax.random.normal(next(keys), shape,
                                        dtype=jnp.float32)).astype(dtype)

    zeros = lambda s: jnp.zeros(s, jnp.float32)
    ones = lambda s: jnp.ones(s, jnp.float32)

    L, H, I, SH = N_LAYERS, HIDDEN, INTERMEDIATE, SCORER_HIDDEN
    return {
        # embeddings stay f32 (gather + LN in f32)
        "word_emb": w((VOCAB, H), jnp.float32),
        "pos_emb": w((MAX_POS, H), jnp.float32),
        "type_emb": w((2, H), jnp.float32),
        "emb_ln_g": ones((H,)), "emb_ln_b": zeros((H,)),
        # per-layer weights stacked on a leading layer axis; matmul weights in bf16
        "wqkv": w((L, H, 3 * H)), "bqkv": zeros((L, 3 * H)),
        "wo": w((L, H, H)), "bo": zeros((L, H)),
        "ln1_g": ones((L, H)), "ln1_b": zeros((L, H)),
        "w1": w((L, H, I)), "b1": zeros((L, I)),
        "w2": w((L, I, H)), "b2": zeros((L, H)),
        "ln2_g": ones((L, H)), "ln2_b": zeros((L, H)),
        # pooler + scorer head (final layer weight stored as a [1, SH] row for the
        # VPU multiply+reduce path instead of an N=1 MXU matmul)
        "pooler_w": w((H, H)), "pooler_b": zeros((H,)),
        "scorer_w1": w((H, SH)), "scorer_b1": zeros((SH,)),
        "scorer_w2t": w((1, SH), jnp.float32), "scorer_b2": zeros((1,)),
    }


# -------------------------------- forward pass --------------------------------
def transformer_scorer_forward(params, input_ids, attention_mask):
    B, S = input_ids.shape
    H = HIDDEN

    # BERT embeddings (gather is XLA glue); LN + encoder + pooler + scorer are one
    # fused Pallas kernel.
    # TODO(synk): token_type_ids assumed all-zero (segment 0), like the reference call.
    emb = (params["word_emb"][input_ids]
           + params["pos_emb"][:S][None, :, :]
           + params["type_emb"][0][None, None, :]).astype(jnp.float32)
    key_valid = attention_mask.astype(jnp.float32).reshape(B, 1, S)

    _, score = pallas_transformer_scorer(emb, key_valid, params)
    return score[:, 0, 0]          # [B]


# ------------------------------------ main ------------------------------------
if __name__ == "__main__":
    key = jax.random.PRNGKey(0)
    k_param, k_ids = jax.random.split(key)

    params = init_params(k_param)
    input_ids = jax.random.randint(k_ids, (BATCH, SEQ), 0, VOCAB, dtype=jnp.int32)
    attention_mask = jnp.array(
        [[1] * SEQ,
         [1] * (SEQ - 2) + [0, 0]], dtype=jnp.int32)   # second example has padding

    fwd = jax.jit(transformer_scorer_forward)
    scores = fwd(params, input_ids, attention_mask)
    jax.block_until_ready(scores)

    assert scores.shape == (BATCH,)
    assert bool(jnp.all(jnp.isfinite(scores)))
    print("KERNEL_OK")
</pallas_src>

<mosaic_0001>
module attributes {stable_mosaic.version = 11 : i64} {
  func.func @_fused_scorer_kernel(%arg0: i32, %arg1: i32, %arg2: memref<1x8x128xf32, #tpu.memory_space<vmem>>, %arg3: memref<1x1x8xf32, #tpu.memory_space<vmem>>, %arg4: memref<1x128xf32, #tpu.memory_space<vmem>>, %arg5: memref<1x128xf32, #tpu.memory_space<vmem>>, %arg6: memref<1x128x384xbf16, #tpu.memory_space<vmem>>, %arg7: memref<1x1x384xf32, #tpu.memory_space<vmem>>, %arg8: memref<1x128x128xbf16, #tpu.memory_space<vmem>>, %arg9: memref<1x1x128xf32, #tpu.memory_space<vmem>>, %arg10: memref<1x1x128xf32, #tpu.memory_space<vmem>>, %arg11: memref<1x1x128xf32, #tpu.memory_space<vmem>>, %arg12: memref<1x128x256xbf16, #tpu.memory_space<vmem>>, %arg13: memref<1x1x256xf32, #tpu.memory_space<vmem>>, %arg14: memref<1x256x128xbf16, #tpu.memory_space<vmem>>, %arg15: memref<1x1x128xf32, #tpu.memory_space<vmem>>, %arg16: memref<1x1x128xf32, #tpu.memory_space<vmem>>, %arg17: memref<1x1x128xf32, #tpu.memory_space<vmem>>, %arg18: memref<128x128xbf16, #tpu.memory_space<vmem>>, %arg19: memref<1x128xf32, #tpu.memory_space<vmem>>, %arg20: memref<128x128xbf16, #tpu.memory_space<vmem>>, %arg21: memref<1x128xf32, #tpu.memory_space<vmem>>, %arg22: memref<1x128xf32, #tpu.memory_space<vmem>>, %arg23: memref<1x128xf32, #tpu.memory_space<vmem>>, %arg24: memref<1x8x128xf32, #tpu.memory_space<vmem>>, %arg25: memref<1x1x128xf32, #tpu.memory_space<vmem>>) attributes {dimension_semantics = [#tpu.dimension_semantics<parallel>, #tpu.dimension_semantics<arbitrary>], iteration_bounds = array<i64: 2, 2>, scalar_prefetch = 0 : i64, scratch_operands = 0 : i64, tpu.core_type = #tpu.core_type<tc>, window_params = [{transform_indices = @transform_0, window_bounds = array<i64: 1, 8, 128>}, {transform_indices = @transform_1, window_bounds = array<i64: 1, 1, 8>}, {pipeline_mode = #tpu.pipeline_mode<synchronous>, transform_indices = @transform_2, window_bounds = array<i64: 1, 128>}, {pipeline_mode = #tpu.pipeline_mode<synchronous>, transform_indices = @transform_3, window_bounds = array<i64: 1, 128>}, {transform_indices = @transform_4, window_bounds = array<i64: 1, 128, 384>}, {transform_indices = @transform_5, window_bounds = array<i64: 1, 1, 384>}, {transform_indices = @transform_6, window_bounds = array<i64: 1, 128, 128>}, {transform_indices = @transform_7, window_bounds = array<i64: 1, 1, 128>}, {transform_indices = @transform_8, window_bounds = array<i64: 1, 1, 128>}, {transform_indices = @transform_9, window_bounds = array<i64: 1, 1, 128>}, {transform_indices = @transform_10, window_bounds = array<i64: 1, 128, 256>}, {transform_indices = @transform_11, window_bounds = array<i64: 1, 1, 256>}, {transform_indices = @transform_12, window_bounds = array<i64: 1, 256, 128>}, {transform_indices = @transform_13, window_bounds = array<i64: 1, 1, 128>}, {transform_indices = @transform_14, window_bounds = array<i64: 1, 1, 128>}, {transform_indices = @transform_15, window_bounds = array<i64: 1, 1, 128>}, {pipeline_mode = #tpu.pipeline_mode<synchronous>, transform_indices = @transform_16, window_bounds = array<i64: 128, 128>}, {pipeline_mode = #tpu.pipeline_mode<synchronous>, transform_indices = @transform_17, window_bounds = array<i64: 1, 128>}, {pipeline_mode = #tpu.pipeline_mode<synchronous>, transform_indices = @transform_18, window_bounds = array<i64: 128, 128>}, {pipeline_mode = #tpu.pipeline_mode<synchronous>, transform_indices = @transform_19, window_bounds = array<i64: 1, 128>}, {pipeline_mode = #tpu.pipeline_mode<synchronous>, transform_indices = @transform_20, window_bounds = array<i64: 1, 128>}, {pipeline_mode = #tpu.pipeline_mode<synchronous>, transform_indices = @transform_21, window_bounds = array<i64: 1, 128>}, {transform_indices = @transform_22, window_bounds = array<i64: 1, 8, 128>}, {transform_indices = @transform_23, window_bounds = array<i64: 1, 1, 128>}]} {
    %c0_i32 = arith.constant 0 : i32
    %0 = arith.cmpi eq, %arg1, %c0_i32 : i32
    %1 = arith.extui %0 : i1 to i32
    %c0_i32_0 = arith.constant 0 : i32
    %2 = arith.cmpi ne, %1, %c0_i32_0 : i32
    scf.if %2 {
      %c0_71 = arith.constant 0 : index
      %c0_72 = arith.constant 0 : index
      %c0_73 = arith.constant 0 : index
      %145 = vector.load %arg2[%c0_71, %c0_72, %c0_73] : memref<1x8x128xf32, #tpu.memory_space<vmem>>, vector<1x8x128xf32>
      %146 = vector.shape_cast %145 : vector<1x8x128xf32> to vector<8x128xf32>
      %c0_74 = arith.constant 0 : index
      %c0_75 = arith.constant 0 : index
      %147 = vector.load %arg4[%c0_74, %c0_75] : memref<1x128xf32, #tpu.memory_space<vmem>>, vector<1x128xf32>
      %c0_76 = arith.constant 0 : index
      %c0_77 = arith.constant 0 : index
      %148 = vector.load %arg5[%c0_76, %c0_77] : memref<1x128xf32, #tpu.memory_space<vmem>>, vector<1x128xf32>
      %cst_78 = arith.constant dense<0.000000e+00> : vector<8xf32>
      %149 = vector.multi_reduction <add>, %146, %cst_78 [1] : vector<8x128xf32> to vector<8xf32>
      %150 = vector.shape_cast %149 : vector<8xf32> to vector<8x1xf32>
      %cst_79 = arith.constant 1.280000e+02 : f32
      %151 = vector.broadcast %cst_79 : f32 to vector<8x1xf32>
      %152 = arith.divf %150, %151 : vector<8x1xf32>
      %153 = vector.broadcast %152 : vector<8x1xf32> to vector<8x128xf32>
      %154 = arith.subf %146, %153 : vector<8x128xf32>
      %155 = arith.mulf %154, %154 : vector<8x128xf32>
      %cst_80 = arith.constant dense<0.000000e+00> : vector<8xf32>
      %156 = vector.multi_reduction <add>, %155, %cst_80 [1] : vector<8x128xf32> to vector<8xf32>
      %157 = vector.shape_cast %156 : vector<8xf32> to vector<8x1xf32>
      %cst_81 = arith.constant 1.280000e+02 : f32
      %158 = vector.broadcast %cst_81 : f32 to vector<8x1xf32>
      %159 = arith.divf %157, %158 : vector<8x1xf32>
      %cst_82 = arith.constant 9.99999996E-13 : f32
      %160 = vector.broadcast %cst_82 : f32 to vector<8x1xf32>
      %161 = arith.addf %159, %160 : vector<8x1xf32>
      %162 = math.rsqrt %161 : vector<8x1xf32>
      %163 = vector.broadcast %162 : vector<8x1xf32> to vector<8x128xf32>
      %164 = arith.mulf %154, %163 : vector<8x128xf32>
      %165 = vector.broadcast %147 : vector<1x128xf32> to vector<8x128xf32>
      %166 = arith.mulf %164, %165 : vector<8x128xf32>
      %167 = vector.broadcast %148 : vector<1x128xf32> to vector<8x128xf32>
      %168 = arith.addf %166, %167 : vector<8x128xf32>
      %c0_83 = arith.constant 0 : index
      %c0_84 = arith.constant 0 : index
      %c0_85 = arith.constant 0 : index
      %169 = vector.load %arg24[%c0_83, %c0_84, %c0_85] : memref<1x8x128xf32, #tpu.memory_space<vmem>>, vector<1x8x128xf32>
      %170 = vector.shape_cast %169 : vector<1x8x128xf32> to vector<8x128xf32>
      %171 = vector.shape_cast %168 : vector<8x128xf32> to vector<1x8x128xf32>
      tpu.vector_store %arg24[%c0_83, %c0_84, %c0_85], %171 {strides = array<i32>} : memref<1x8x128xf32, #tpu.memory_space<vmem>>, vector<1x8x128xf32>,
    } else {
    }
    %c0 = arith.constant 0 : index
    %c0_1 = arith.constant 0 : index
    %c0_2 = arith.constant 0 : index
    %3 = vector.load %arg24[%c0, %c0_1, %c0_2] : memref<1x8x128xf32, #tpu.memory_space<vmem>>, vector<1x8x128xf32>
    %4 = vector.shape_cast %3 : vector<1x8x128xf32> to vector<8x128xf32>
    %c0_3 = arith.constant 0 : index
    %c0_4 = arith.constant 0 : index
    %c0_5 = arith.constant 0 : index
    %5 = vector.load %arg3[%c0_3, %c0_4, %c0_5] : memref<1x1x8xf32, #tpu.memory_space<vmem>>, vector<1x1x8xf32>
    %6 = vector.shape_cast %5 : vector<1x1x8xf32> to vector<1x8xf32>
    %cst = arith.constant 5.000000e-01 : f32
    %7 = vector.broadcast %cst : f32 to vector<1x8xf32>
    %8 = arith.cmpf ogt, %6, %7 : vector<1x8xf32>
    %cst_6 = arith.constant 0.000000e+00 : f32
    %cst_7 = arith.constant -1.000000e+09 : f32
    %9 = vector.broadcast %cst_6 : f32 to vector<1x8xf32>
    %10 = vector.broadcast %cst_7 : f32 to vector<1x8xf32>
    %11 = arith.select %8, %9, %10 : vector<1x8xi1>, vector<1x8xf32>
    %12 = arith.truncf %4 : vector<8x128xf32> to vector<8x128xbf16>
    %c0_8 = arith.constant 0 : index
    %c0_9 = arith.constant 0 : index
    %c0_10 = arith.constant 0 : index
    %13 = vector.load %arg6[%c0_8, %c0_9, %c0_10] : memref<1x128x384xbf16, #tpu.memory_space<vmem>>, vector<1x128x384xbf16>
    %14 = vector.shape_cast %13 : vector<1x128x384xbf16> to vector<128x384xbf16>
    %cst_11 = arith.constant dense<0.000000e+00> : vector<8x384xf32>
    %15 = tpu.matmul %12, %14, %cst_11 {dimension_numbers = #tpu.dot_dimension_numbers<[1], [0], [0], [1], [0, 0, 1, 1], [], []>} : vector<8x128xbf16>, vector<128x384xbf16>, vector<8x384xf32> -> vector<8x384xf32>
    %c0_12 = arith.constant 0 : index
    %c0_13 = arith.constant 0 : index
    %c0_14 = arith.constant 0 : index
    %16 = vector.load %arg7[%c0_12, %c0_13, %c0_14] : memref<1x1x384xf32, #tpu.memory_space<vmem>>, vector<1x1x384xf32>
    %17 = vector.shape_cast %16 : vector<1x1x384xf32> to vector<1x384xf32>
    %18 = vector.broadcast %17 : vector<1x384xf32> to vector<8x384xf32>
    %19 = arith.addf %15, %18 : vector<8x384xf32>
    %20 = vector.extract_strided_slice %19 {offsets = [0, 0], sizes = [8, 128], strides = [1, 1]} : vector<8x384xf32> to vector<8x128xf32>
    %cst_15 = arith.constant 0.176776692 : f32
    %21 = vector.broadcast %cst_15 : f32 to vector<8x128xf32>
    %22 = arith.mulf %20, %21 : vector<8x128xf32>
    %23 = vector.extract_strided_slice %19 {offsets = [0, 128], sizes = [8, 128], strides = [1, 1]} : vector<8x384xf32> to vector<8x128xf32>
    %24 = vector.extract_strided_slice %19 {offsets = [0, 256], sizes = [8, 128], strides = [1, 1]} : vector<8x384xf32> to vector<8x128xf32>
    %25 = vector.shape_cast %22 : vector<8x128xf32> to vector<8x4x32xf32>
    %26 = tpu.transpose %25, [1, 0, 2] : vector<8x4x32xf32> -> vector<4x8x32xf32>
    %27 = arith.truncf %26 : vector<4x8x32xf32> to vector<4x8x32xbf16>
    %28 = vector.shape_cast %23 : vector<8x128xf32> to vector<8x4x32xf32>
    %29 = tpu.transpose %28, [1, 0, 2] : vector<8x4x32xf32> -> vector<4x8x32xf32>
    %30 = arith.truncf %29 : vector<4x8x32xf32> to vector<4x8x32xbf16>
    %31 = vector.shape_cast %24 : vector<8x128xf32> to vector<8x4x32xf32>
    %32 = tpu.transpose %31, [1, 0, 2] : vector<8x4x32xf32> -> vector<4x8x32xf32>
    %33 = arith.truncf %32 : vector<4x8x32xf32> to vector<4x8x32xbf16>
    "tpu.trace_start"() <{level = 10 : i32, message = "hqd,hkd->hqk"}> : () -> ()
    %cst_16 = arith.constant dense<0.000000e+00> : vector<4x8x8xf32>
    %34 = tpu.matmul %27, %30, %cst_16 {dimension_numbers = #tpu.dot_dimension_numbers<[2], [2], [1], [1], [0, 0, 0, 1, 1, 1], [0], [0]>} : vector<4x8x32xbf16>, vector<4x8x32xbf16>, vector<4x8x8xf32> -> vector<4x8x8xf32>
    "tpu.trace_stop"() : () -> ()
    %35 = vector.shape_cast %11 : vector<1x8xf32> to vector<1x1x8xf32>
    %36 = vector.broadcast %35 : vector<1x1x8xf32> to vector<4x8x8xf32>
    %37 = arith.addf %34, %36 : vector<4x8x8xf32>
    %cst_17 = arith.constant dense<0xFF800000> : vector<4x8xf32>
    %38 = vector.multi_reduction <maximumf>, %37, %cst_17 [2] : vector<4x8x8xf32> to vector<4x8xf32>
    %39 = vector.shape_cast %38 : vector<4x8xf32> to vector<4x8x1xf32>
    %40 = vector.broadcast %39 : vector<4x8x1xf32> to vector<4x8x8xf32>
    %41 = arith.subf %37, %40 : vector<4x8x8xf32>
    %42 = math.exp %41 : vector<4x8x8xf32>
    %cst_18 = arith.constant dense<0.000000e+00> : vector<4x8xf32>
    %43 = vector.multi_reduction <add>, %42, %cst_18 [2] : vector<4x8x8xf32> to vector<4x8xf32>
    %44 = vector.shape_cast %43 : vector<4x8xf32> to vector<4x8x1xf32>
    %45 = tpu.reciprocal %44 {approx = true} : vector<4x8x1xf32> -> vector<4x8x1xf32>
    %46 = vector.broadcast %45 : vector<4x8x1xf32> to vector<4x8x8xf32>
    %47 = arith.mulf %42, %46 : vector<4x8x8xf32>
    %48 = arith.truncf %47 : vector<4x8x8xf32> to vector<4x8x8xbf16>
    "tpu.trace_start"() <{level = 10 : i32, message = "hqk,hkd->hqd"}> : () -> ()
    %cst_19 = arith.constant dense<0.000000e+00> : vector<4x8x32xf32>
    %49 = tpu.matmul %48, %33, %cst_19 {dimension_numbers = #tpu.dot_dimension_numbers<[2], [1], [1], [2], [0, 0, 0, 1, 1, 2], [0], [0]>} : vector<4x8x8xbf16>, vector<4x8x32xbf16>, vector<4x8x32xf32> -> vector<4x8x32xf32>
    "tpu.trace_stop"() : () -> ()
    %50 = tpu.transpose %49, [1, 0, 2] : vector<4x8x32xf32> -> vector<8x4x32xf32>
    %51 = vector.shape_cast %50 : vector<8x4x32xf32> to vector<8x128xf32>
    %52 = arith.truncf %51 : vector<8x128xf32> to vector<8x128xbf16>
    %c0_20 = arith.constant 0 : index
    %c0_21 = arith.constant 0 : index
    %c0_22 = arith.constant 0 : index
    %53 = vector.load %arg8[%c0_20, %c0_21, %c0_22] : memref<1x128x128xbf16, #tpu.memory_space<vmem>>, vector<1x128x128xbf16>
    %54 = vector.shape_cast %53 : vector<1x128x128xbf16> to vector<128x128xbf16>
    %cst_23 = arith.constant dense<0.000000e+00> : vector<8x128xf32>
    %55 = tpu.matmul %52, %54, %cst_23 {dimension_numbers = #tpu.dot_dimension_numbers<[1], [0], [0], [1], [0, 0, 1, 1], [], []>} : vector<8x128xbf16>, vector<128x128xbf16>, vector<8x128xf32> -> vector<8x128xf32>
    %c0_24 = arith.constant 0 : index
    %c0_25 = arith.constant 0 : index
    %c0_26 = arith.constant 0 : index
    %56 = vector.load %arg9[%c0_24, %c0_25, %c0_26] : memref<1x1x128xf32, #tpu.memory_space<vmem>>, vector<1x1x128xf32>
    %57 = vector.shape_cast %56 : vector<1x1x128xf32> to vector<1x128xf32>
    %58 = vector.broadcast %57 : vector<1x128xf32> to vector<8x128xf32>
    %59 = arith.addf %55, %58 : vector<8x128xf32>
    %60 = arith.addf %59, %4 : vector<8x128xf32>
    %c0_27 = arith.constant 0 : index
    %c0_28 = arith.constant 0 : index
    %c0_29 = arith.constant 0 : index
    %61 = vector.load %arg10[%c0_27, %c0_28, %c0_29] : memref<1x1x128xf32, #tpu.memory_space<vmem>>, vector<1x1x128xf32>
    %62 = vector.shape_cast %61 : vector<1x1x128xf32> to vector<1x128xf32>
    %c0_30 = arith.constant 0 : index
    %c0_31 = arith.constant 0 : index
    %c0_32 = arith.constant 0 : index
    %63 = vector.load %arg11[%c0_30, %c0_31, %c0_32] : memref<1x1x128xf32, #tpu.memory_space<vmem>>, vector<1x1x128xf32>
    %64 = vector.shape_cast %63 : vector<1x1x128xf32> to vector<1x128xf32>
    %cst_33 = arith.constant dense<0.000000e+00> : vector<8xf32>
    %65 = vector.multi_reduction <add>, %60, %cst_33 [1] : vector<8x128xf32> to vector<8xf32>
    %66 = vector.shape_cast %65 : vector<8xf32> to vector<8x1xf32>
    %cst_34 = arith.constant 1.280000e+02 : f32
    %67 = vector.broadcast %cst_34 : f32 to vector<8x1xf32>
    %68 = arith.divf %66, %67 : vector<8x1xf32>
    %69 = vector.broadcast %68 : vector<8x1xf32> to vector<8x128xf32>
    %70 = arith.subf %60, %69 : vector<8x128xf32>
    %71 = arith.mulf %70, %70 : vector<8x128xf32>
    %cst_35 = arith.constant dense<0.000000e+00> : vector<8xf32>
    %72 = vector.multi_reduction <add>, %71, %cst_35 [1] : vector<8x128xf32> to vector<8xf32>
    %73 = vector.shape_cast %72 : vector<8xf32> to vector<8x1xf32>
    %cst_36 = arith.constant 1.280000e+02 : f32
    %74 = vector.broadcast %cst_36 : f32 to vector<8x1xf32>
    %75 = arith.divf %73, %74 : vector<8x1xf32>
    %cst_37 = arith.constant 9.99999996E-13 : f32
    %76 = vector.broadcast %cst_37 : f32 to vector<8x1xf32>
    %77 = arith.addf %75, %76 : vector<8x1xf32>
    %78 = math.rsqrt %77 : vector<8x1xf32>
    %79 = vector.broadcast %78 : vector<8x1xf32> to vector<8x128xf32>
    %80 = arith.mulf %70, %79 : vector<8x128xf32>
    %81 = vector.broadcast %62 : vector<1x128xf32> to vector<8x128xf32>
    %82 = arith.mulf %80, %81 : vector<8x128xf32>
    %83 = vector.broadcast %64 : vector<1x128xf32> to vector<8x128xf32>
    %84 = arith.addf %82, %83 : vector<8x128xf32>
    %85 = arith.truncf %84 : vector<8x128xf32> to vector<8x128xbf16>
    %c0_38 = arith.constant 0 : index
    %c0_39 = arith.constant 0 : index
    %c0_40 = arith.constant 0 : index
    %86 = vector.load %arg12[%c0_38, %c0_39, %c0_40] : memref<1x128x256xbf16, #tpu.memory_space<vmem>>, vector<1x128x256xbf16>
    %87 = vector.shape_cast %86 : vector<1x128x256xbf16> to vector<128x256xbf16>
    %cst_41 = arith.constant dense<0.000000e+00> : vector<8x256xf32>
    %88 = tpu.matmul %85, %87, %cst_41 {dimension_numbers = #tpu.dot_dimension_numbers<[1], [0], [0], [1], [0, 0, 1, 1], [], []>} : vector<8x128xbf16>, vector<128x256xbf16>, vector<8x256xf32> -> vector<8x256xf32>
    %c0_42 = arith.constant 0 : index
    %c0_43 = arith.constant 0 : index
    %c0_44 = arith.constant 0 : index
    %89 = vector.load %arg13[%c0_42, %c0_43, %c0_44] : memref<1x1x256xf32, #tpu.memory_space<vmem>>, vector<1x1x256xf32>
    %90 = vector.shape_cast %89 : vector<1x1x256xf32> to vector<1x256xf32>
    %91 = vector.broadcast %90 : vector<1x256xf32> to vector<8x256xf32>
    %92 = arith.addf %88, %91 : vector<8x256xf32>
    %cst_45 = arith.constant 5.000000e-01 : f32
    %93 = vector.broadcast %cst_45 : f32 to vector<8x256xf32>
    %94 = arith.mulf %93, %92 : vector<8x256xf32>
    %cst_46 = arith.constant 4.471500e-02 : f32
    %95 = vector.broadcast %cst_46 : f32 to vector<8x256xf32>
    %96 = arith.mulf %95, %92 : vector<8x256xf32>
    %97 = arith.mulf %96, %92 : vector<8x256xf32>
    %98 = arith.mulf %97, %92 : vector<8x256xf32>
    %99 = arith.addf %92, %98 : vector<8x256xf32>
    %cst_47 = arith.constant 0.797884583 : f32
    %100 = vector.broadcast %cst_47 : f32 to vector<8x256xf32>
    %101 = arith.mulf %100, %99 : vector<8x256xf32>
    %102 = math.tanh %101 : vector<8x256xf32>
    %cst_48 = arith.constant 1.000000e+00 : f32
    %103 = vector.broadcast %cst_48 : f32 to vector<8x256xf32>
    %104 = arith.addf %103, %102 : vector<8x256xf32>
    %105 = arith.mulf %94, %104 : vector<8x256xf32>
    %106 = arith.truncf %105 : vector<8x256xf32> to vector<8x256xbf16>
    %c0_49 = arith.constant 0 : index
    %c0_50 = arith.constant 0 : index
    %c0_51 = arith.constant 0 : index
    %107 = vector.load %arg14[%c0_49, %c0_50, %c0_51] : memref<1x256x128xbf16, #tpu.memory_space<vmem>>, vector<1x256x128xbf16>
    %108 = vector.shape_cast %107 : vector<1x256x128xbf16> to vector<256x128xbf16>
    %cst_52 = arith.constant dense<0.000000e+00> : vector<8x128xf32>
    %109 = tpu.matmul %106, %108, %cst_52 {dimension_numbers = #tpu.dot_dimension_numbers<[1], [0], [0], [1], [0, 0, 1, 1], [], []>} : vector<8x256xbf16>, vector<256x128xbf16>, vector<8x128xf32> -> vector<8x128xf32>
    %c0_53 = arith.constant 0 : index
    %c0_54 = arith.constant 0 : index
    %c0_55 = arith.constant 0 : index
    %110 = vector.load %arg15[%c0_53, %c0_54, %c0_55] : memref<1x1x128xf32, #tpu.memory_space<vmem>>, vector<1x1x128xf32>
    %111 = vector.shape_cast %110 : vector<1x1x128xf32> to vector<1x128xf32>
    %112 = vector.broadcast %111 : vector<1x128xf32> to vector<8x128xf32>
    %113 = arith.addf %109, %112 : vector<8x128xf32>
    %114 = arith.addf %113, %84 : vector<8x128xf32>
    %c0_56 = arith.constant 0 : index
    %c0_57 = arith.constant 0 : index
    %c0_58 = arith.constant 0 : index
    %115 = vector.load %arg16[%c0_56, %c0_57, %c0_58] : memref<1x1x128xf32, #tpu.memory_space<vmem>>, vector<1x1x128xf32>
    %116 = vector.shape_cast %115 : vector<1x1x128xf32> to vector<1x128xf32>
    %c0_59 = arith.constant 0 : index
    %c0_60 = arith.constant 0 : index
    %c0_61 = arith.constant 0 : index
    %117 = vector.load %arg17[%c0_59, %c0_60, %c0_61] : memref<1x1x128xf32, #tpu.memory_space<vmem>>, vector<1x1x128xf32>
    %118 = vector.shape_cast %117 : vector<1x1x128xf32> to vector<1x128xf32>
    %cst_62 = arith.constant dense<0.000000e+00> : vector<8xf32>
    %119 = vector.multi_reduction <add>, %114, %cst_62 [1] : vector<8x128xf32> to vector<8xf32>
    %120 = vector.shape_cast %119 : vector<8xf32> to vector<8x1xf32>
    %cst_63 = arith.constant 1.280000e+02 : f32
    %121 = vector.broadcast %cst_63 : f32 to vector<8x1xf32>
    %122 = arith.divf %120, %121 : vector<8x1xf32>
    %123 = vector.broadcast %122 : vector<8x1xf32> to vector<8x128xf32>
    %124 = arith.subf %114, %123 : vector<8x128xf32>
    %125 = arith.mulf %124, %124 : vector<8x128xf32>
    %cst_64 = arith.constant dense<0.000000e+00> : vector<8xf32>
    %126 = vector.multi_reduction <add>, %125, %cst_64 [1] : vector<8x128xf32> to vector<8xf32>
    %127 = vector.shape_cast %126 : vector<8xf32> to vector<8x1xf32>
    %cst_65 = arith.constant 1.280000e+02 : f32
    %128 = vector.broadcast %cst_65 : f32 to vector<8x1xf32>
    %129 = arith.divf %127, %128 : vector<8x1xf32>
    %cst_66 = arith.constant 9.99999996E-13 : f32
    %130 = vector.broadcast %cst_66 : f32 to vector<8x1xf32>
    %131 = arith.addf %129, %130 : vector<8x1xf32>
    %132 = math.rsqrt %131 : vector<8x1xf32>
    %133 = vector.broadcast %132 : vector<8x1xf32> to vector<8x128xf32>
    %134 = arith.mulf %124, %133 : vector<8x128xf32>
    %135 = vector.broadcast %116 : vector<1x128xf32> to vector<8x128xf32>
    %136 = arith.mulf %134, %135 : vector<8x128xf32>
    %137 = vector.broadcast %118 : vector<1x128xf32> to vector<8x128xf32>
    %138 = arith.addf %136, %137 : vector<8x128xf32>
    %c0_67 = arith.constant 0 : index
    %c0_68 = arith.constant 0 : index
    %c0_69 = arith.constant 0 : index
    %139 = vector.load %arg24[%c0_67, %c0_68, %c0_69] : memref<1x8x128xf32, #tpu.memory_space<vmem>>, vector<1x8x128xf32>
    %140 = vector.shape_cast %139 : vector<1x8x128xf32> to vector<8x128xf32>
    %141 = vector.shape_cast %138 : vector<8x128xf32> to vector<1x8x128xf32>
    tpu.vector_store %arg24[%c0_67, %c0_68, %c0_69], %141 {strides = array<i32>} : memref<1x8x128xf32, #tpu.memory_space<vmem>>, vector<1x8x128xf32>,
    %c1_i32 = arith.constant 1 : i32
    %142 = arith.cmpi eq, %arg1, %c1_i32 : i32
    %143 = arith.extui %142 : i1 to i32
    %c0_i32_70 = arith.constant 0 : i32
    %144 = arith.cmpi ne, %143, %c0_i32_70 : i32
    scf.if %144 {
      %145 = vector.extract_strided_slice %138 {offsets = [0, 0], sizes = [1, 128], strides = [1, 1]} : vector<8x128xf32> to vector<1x128xf32>
      %146 = arith.truncf %145 : vector<1x128xf32> to vector<1x128xbf16>
      %c0_71 = arith.constant 0 : index
      %c0_72 = arith.constant 0 : index
      %147 = vector.load %arg18[%c0_71, %c0_72] : memref<128x128xbf16, #tpu.memory_space<vmem>>, vector<128x128xbf16>
      %cst_73 = arith.constant dense<0.000000e+00> : vector<1x128xf32>
      %148 = tpu.matmul %146, %147, %cst_73 {dimension_numbers = #tpu.dot_dimension_numbers<[1], [0], [0], [1], [0, 0, 1, 1], [], []>} : vector<1x128xbf16>, vector<128x128xbf16>, vector<1x128xf32> -> vector<1x128xf32>
      %c0_74 = arith.constant 0 : index
      %c0_75 = arith.constant 0 : index
      %149 = vector.load %arg19[%c0_74, %c0_75] : memref<1x128xf32, #tpu.memory_space<vmem>>, vector<1x128xf32>
      %150 = arith.addf %148, %149 : vector<1x128xf32>
      %151 = math.tanh %150 : vector<1x128xf32>
      %152 = arith.truncf %151 : vector<1x128xf32> to vector<1x128xbf16>
      %c0_76 = arith.constant 0 : index
      %c0_77 = arith.constant 0 : index
      %153 = vector.load %arg20[%c0_76, %c0_77] : memref<128x128xbf16, #tpu.memory_space<vmem>>, vector<128x128xbf16>
      %cst_78 = arith.constant dense<0.000000e+00> : vector<1x128xf32>
      %154 = tpu.matmul %152, %153, %cst_78 {dimension_numbers = #tpu.dot_dimension_numbers<[1], [0], [0], [1], [0, 0, 1, 1], [], []>} : vector<1x128xbf16>, vector<128x128xbf16>, vector<1x128xf32> -> vector<1x128xf32>
      %c0_79 = arith.constant 0 : index
      %c0_80 = arith.constant 0 : index
      %155 = vector.load %arg21[%c0_79, %c0_80] : memref<1x128xf32, #tpu.memory_space<vmem>>, vector<1x128xf32>
      %156 = arith.addf %154, %155 : vector<1x128xf32>
      %cst_81 = arith.constant 0.000000e+00 : f32
      %157 = vector.broadcast %cst_81 : f32 to vector<1x128xf32>
      %158 = arith.maximumf %156, %157 : vector<1x128xf32>
      %c0_82 = arith.constant 0 : index
      %c0_83 = arith.constant 0 : index
      %159 = vector.load %arg22[%c0_82, %c0_83] : memref<1x128xf32, #tpu.memory_space<vmem>>, vector<1x128xf32>
      %160 = arith.mulf %158, %159 : vector<1x128xf32>
      %cst_84 = arith.constant dense<0.000000e+00> : vector<1xf32>
      %161 = vector.multi_reduction <add>, %160, %cst_84 [1] : vector<1x128xf32> to vector<1xf32>
      %162 = vector.shape_cast %161 : vector<1xf32> to vector<1x1xf32>
      %163 = vector.shape_cast %162 : vector<1x1xf32> to vector<1x1xf32>
      %164 = vector.broadcast %163 : vector<1x1xf32> to vector<1x128xf32>
      %c0_85 = arith.constant 0 : index
      %c0_86 = arith.constant 0 : index
      %165 = vector.load %arg23[%c0_85, %c0_86] : memref<1x128xf32, #tpu.memory_space<vmem>>, vector<1x128xf32>
      %166 = arith.addf %164, %165 : vector<1x128xf32>
      %c0_87 = arith.constant 0 : index
      %c0_88 = arith.constant 0 : index
      %c0_89 = arith.constant 0 : index
      %167 = vector.load %arg25[%c0_87, %c0_88, %c0_89] : memref<1x1x128xf32, #tpu.memory_space<vmem>>, vector<1x1x128xf32>
      %168 = vector.shape_cast %167 : vector<1x1x128xf32> to vector<1x128xf32>
      %169 = vector.shape_cast %166 : vector<1x128xf32> to vector<1x1x128xf32>
      tpu.vector_store %arg25[%c0_87, %c0_88, %c0_89], %169 {strides = array<i32>} : memref<1x1x128xf32, #tpu.memory_space<vmem>>, vector<1x1x128xf32>,
    } else {
    }
    return
  }
  func.func @transform_0(%arg0: i32, %arg1: i32) -> (i32, i32, i32) {
    %c0_i32 = arith.constant 0 : i32
    %c0_i32_0 = arith.constant 0 : i32
    %c0_i32_1 = arith.constant 0 : i32
    return %arg0, %c0_i32, %c0_i32_0 : i32, i32, i32
  }
  func.func @transform_1(%arg0: i32, %arg1: i32) -> (i32, i32, i32) {
    %c0_i32 = arith.constant 0 : i32
    %c0_i32_0 = arith.constant 0 : i32
    %c0_i32_1 = arith.constant 0 : i32
    return %arg0, %c0_i32, %c0_i32_0 : i32, i32, i32
  }
  func.func @transform_2(%arg0: i32, %arg1: i32) -> (i32, i32) {
    %c0_i32 = arith.constant 0 : i32
    %c0_i32_0 = arith.constant 0 : i32
    %c0_i32_1 = arith.constant 0 : i32
    return %c0_i32, %c0_i32_0 : i32, i32
  }
  func.func @transform_3(%arg0: i32, %arg1: i32) -> (i32, i32) {
    %c0_i32 = arith.constant 0 : i32
    %c0_i32_0 = arith.constant 0 : i32
    %c0_i32_1 = arith.constant 0 : i32
    return %c0_i32, %c0_i32_0 : i32, i32
  }
  func.func @transform_4(%arg0: i32, %arg1: i32) -> (i32, i32, i32) {
    %c0_i32 = arith.constant 0 : i32
    %c0_i32_0 = arith.constant 0 : i32
    %c0_i32_1 = arith.constant 0 : i32
    return %arg1, %c0_i32, %c0_i32_0 : i32, i32, i32
  }
  func.func @transform_5(%arg0: i32, %arg1: i32) -> (i32, i32, i32) {
    %c0_i32 = arith.constant 0 : i32
    %c0_i32_0 = arith.constant 0 : i32
    %c0_i32_1 = arith.constant 0 : i32
    return %arg1, %c0_i32, %c0_i32_0 : i32, i32, i32
  }
  func.func @transform_6(%arg0: i32, %arg1: i32) -> (i32, i32, i32) {
    %c0_i32 = arith.constant 0 : i32
    %c0_i32_0 = arith.constant 0 : i32
    %c0_i32_1 = arith.constant 0 : i32
    return %arg1, %c0_i32, %c0_i32_0 : i32, i32, i32
  }
  func.func @transform_7(%arg0: i32, %arg1: i32) -> (i32, i32, i32) {
    %c0_i32 = arith.constant 0 : i32
    %c0_i32_0 = arith.constant 0 : i32
    %c0_i32_1 = arith.constant 0 : i32
    return %arg1, %c0_i32, %c0_i32_0 : i32, i32, i32
  }
  func.func @transform_8(%arg0: i32, %arg1: i32) -> (i32, i32, i32) {
    %c0_i32 = arith.constant 0 : i32
    %c0_i32_0 = arith.constant 0 : i32
    %c0_i32_1 = arith.constant 0 : i32
    return %arg1, %c0_i32, %c0_i32_0 : i32, i32, i32
  }
  func.func @transform_9(%arg0: i32, %arg1: i32) -> (i32, i32, i32) {
    %c0_i32 = arith.constant 0 : i32
    %c0_i32_0 = arith.constant 0 : i32
    %c0_i32_1 = arith.constant 0 : i32
    return %arg1, %c0_i32, %c0_i32_0 : i32, i32, i32
  }
  func.func @transform_10(%arg0: i32, %arg1: i32) -> (i32, i32, i32) {
    %c0_i32 = arith.constant 0 : i32
    %c0_i32_0 = arith.constant 0 : i32
    %c0_i32_1 = arith.constant 0 : i32
    return %arg1, %c0_i32, %c0_i32_0 : i32, i32, i32
  }
  func.func @transform_11(%arg0: i32, %arg1: i32) -> (i32, i32, i32) {
    %c0_i32 = arith.constant 0 : i32
    %c0_i32_0 = arith.constant 0 : i32
    %c0_i32_1 = arith.constant 0 : i32
    return %arg1, %c0_i32, %c0_i32_0 : i32, i32, i32
  }
  func.func @transform_12(%arg0: i32, %arg1: i32) -> (i32, i32, i32) {
    %c0_i32 = arith.constant 0 : i32
    %c0_i32_0 = arith.constant 0 : i32
    %c0_i32_1 = arith.constant 0 : i32
    return %arg1, %c0_i32, %c0_i32_0 : i32, i32, i32
  }
  func.func @transform_13(%arg0: i32, %arg1: i32) -> (i32, i32, i32) {
    %c0_i32 = arith.constant 0 : i32
    %c0_i32_0 = arith.constant 0 : i32
    %c0_i32_1 = arith.constant 0 : i32
    return %arg1, %c0_i32, %c0_i32_0 : i32, i32, i32
  }
  func.func @transform_14(%arg0: i32, %arg1: i32) -> (i32, i32, i32) {
    %c0_i32 = arith.constant 0 : i32
    %c0_i32_0 = arith.constant 0 : i32
    %c0_i32_1 = arith.constant 0 : i32
    return %arg1, %c0_i32, %c0_i32_0 : i32, i32, i32
  }
  func.func @transform_15(%arg0: i32, %arg1: i32) -> (i32, i32, i32) {
    %c0_i32 = arith.constant 0 : i32
    %c0_i32_0 = arith.constant 0 : i32
    %c0_i32_1 = arith.constant 0 : i32
    return %arg1, %c0_i32, %c0_i32_0 : i32, i32, i32
  }
  func.func @transform_16(%arg0: i32, %arg1: i32) -> (i32, i32) {
    %c0_i32 = arith.constant 0 : i32
    %c0_i32_0 = arith.constant 0 : i32
    %c0_i32_1 = arith.constant 0 : i32
    return %c0_i32, %c0_i32_0 : i32, i32
  }
  func.func @transform_17(%arg0: i32, %arg1: i32) -> (i32, i32) {
    %c0_i32 = arith.constant 0 : i32
    %c0_i32_0 = arith.constant 0 : i32
    %c0_i32_1 = arith.constant 0 : i32
    return %c0_i32, %c0_i32_0 : i32, i32
  }
  func.func @transform_18(%arg0: i32, %arg1: i32) -> (i32, i32) {
    %c0_i32 = arith.constant 0 : i32
    %c0_i32_0 = arith.constant 0 : i32
    %c0_i32_1 = arith.constant 0 : i32
    return %c0_i32, %c0_i32_0 : i32, i32
  }
  func.func @transform_19(%arg0: i32, %arg1: i32) -> (i32, i32) {
    %c0_i32 = arith.constant 0 : i32
    %c0_i32_0 = arith.constant 0 : i32
    %c0_i32_1 = arith.constant 0 : i32
    return %c0_i32, %c0_i32_0 : i32, i32
  }
  func.func @transform_20(%arg0: i32, %arg1: i32) -> (i32, i32) {
    %c0_i32 = arith.constant 0 : i32
    %c0_i32_0 = arith.constant 0 : i32
    %c0_i32_1 = arith.constant 0 : i32
    return %c0_i32, %c0_i32_0 : i32, i32
  }
  func.func @transform_21(%arg0: i32, %arg1: i32) -> (i32, i32) {
    %c0_i32 = arith.constant 0 : i32
    %c0_i32_0 = arith.constant 0 : i32
    %c0_i32_1 = arith.constant 0 : i32
    return %c0_i32, %c0_i32_0 : i32, i32
  }
  func.func @transform_22(%arg0: i32, %arg1: i32) -> (i32, i32, i32) {
    %c0_i32 = arith.constant 0 : i32
    %c0_i32_0 = arith.constant 0 : i32
    %c0_i32_1 = arith.constant 0 : i32
    return %arg0, %c0_i32, %c0_i32_0 : i32, i32, i32
  }
  func.func @transform_23(%arg0: i32, %arg1: i32) -> (i32, i32, i32) {
    %c0_i32 = arith.constant 0 : i32
    %c0_i32_0 = arith.constant 0 : i32
    %c0_i32_1 = arith.constant 0 : i32
    return %arg0, %c0_i32, %c0_i32_0 : i32, i32, i32
  }
}

</mosaic_0001>

<llo_original>
// kernel: transformer_scorer_forward.1
$region0: #{transformer_scorer_forward.1}
  #allocation0 [shape = 'u32[]', space=smem, size = 0x4, offset = 0x4, fixed_abs, tag = 'smem constant byte address 0x4 - core index']
  #allocation1 [shape = 'u32[144,128]{1,0:T(1,128)}', space=vmem, size = 0x12000, scoped, tag = 'internal scratch']
  %s0 = inlined_call_operand.vmem [shape: f32[2,8,128], index: 0, kind: input, shape index: {}]
  %s1 = inlined_call_operand.vmem [shape: f32[2,1,8], index: 1, kind: input, shape index: {}]
  %s2 = inlined_call_operand.vmem [shape: f32[1,128], index: 2, kind: input, shape index: {}]
  %s3 = inlined_call_operand.hbm [shape: f32[1,128], index: 3, kind: input, shape index: {}]
  %s4 = inlined_call_operand.hbm [shape: bf16[2,128,384], index: 4, kind: input, shape index: {}]
  %s5 = inlined_call_operand.vmem [shape: f32[2,1,384], index: 5, kind: input, shape index: {}]
  %s6 = inlined_call_operand.hbm [shape: bf16[2,128,128], index: 6, kind: input, shape index: {}]
  %s7 = inlined_call_operand.hbm [shape: f32[2,1,128], index: 7, kind: input, shape index: {}]
  %s8 = inlined_call_operand.hbm [shape: f32[2,1,128], index: 8, kind: input, shape index: {}]
  %s9 = inlined_call_operand.hbm [shape: f32[2,1,128], index: 9, kind: input, shape index: {}]
  %s10 = inlined_call_operand.vmem [shape: bf16[2,128,256], index: 10, kind: input, shape index: {}]
  %s11 = inlined_call_operand.vmem [shape: f32[2,1,256], index: 11, kind: input, shape index: {}]
  %s12 = inlined_call_operand.hbm [shape: bf16[2,256,128], index: 12, kind: input, shape index: {}]
  %s13 = inlined_call_operand.hbm [shape: f32[2,1,128], index: 13, kind: input, shape index: {}]
  %s14 = inlined_call_operand.vmem [shape: f32[2,1,128], index: 14, kind: input, shape index: {}]
  %s15 = inlined_call_operand.vmem [shape: f32[2,1,128], index: 15, kind: input, shape index: {}]
  %s16 = inlined_call_operand.vmem [shape: bf16[128,128], index: 16, kind: input, shape index: {}]
  %s17 = inlined_call_operand.vmem [shape: f32[1,128], index: 17, kind: input, shape index: {}]
  %s18 = inlined_call_operand.hbm [shape: bf16[128,128], index: 18, kind: input, shape index: {}]
  %s19 = inlined_call_operand.vmem [shape: f32[1,128], index: 19, kind: input, shape index: {}]
  %s20 = inlined_call_operand.hbm [shape: f32[1,128], index: 20, kind: input, shape index: {}]
  %s21 = inlined_call_operand.vmem [shape: f32[1,128], index: 21, kind: input, shape index: {}]
  %s22 = inlined_call_operand.hbm [shape: f32[2,8,128], index: 22, kind: output, shape index: {0}]
  %s23 = inlined_call_operand.vmem [shape: f32[2,1,128], index: 23, kind: output, shape index: {1}]
  %24 = xla_tuple %s22, %s23
  %s25 = sld [smem:[#allocation0]]
  $region177: #{transformer_scorer_forward.1} parent=0
    _
  %s27 = ssub.s32 1, %s25
  %s28 = scalar_select 0, %s27, %s25
  $region1: #{transformer_scorer_forward.1} parent=0
    #allocation2 [shape = 'u8[512]{0}', space=vmem, size = 0x400, scoped, tag = 'input window, operand 3, single buffered']
    #allocation3 [shape = 's32[2]{0}', space=sflag, size = 0x8, scoped, tag = 'scoped memory for transformer_scorer_forward.1']
    #allocation4 [shape = 's32[2]{0}', space=sflag, size = 0x8, scoped, tag = 'scoped memory for transformer_scorer_forward.1']
    #allocation5 [shape = 'u8[196608]{0}', space=vmem, size = 0x30000, scoped, tag = 'input window, operand 4']
    #allocation6 [shape = 's32[2]{0}', space=sflag, size = 0x8, scoped, tag = 'scoped memory for transformer_scorer_forward.1']
    #allocation7 [shape = 'u8[65536]{0}', space=vmem, size = 0x10000, scoped, tag = 'input window, operand 6']
    #allocation8 [shape = 'u8[1024]{0}', space=vmem, size = 0x400, scoped, tag = 'input window, operand 7']
    #allocation9 [shape = 's32[2]{0}', space=sflag, size = 0x8, scoped, tag = 'scoped memory for transformer_scorer_forward.1']
    #allocation10 [shape = 'u8[1024]{0}', space=vmem, size = 0x400, scoped, tag = 'input window, operand 8']
    #allocation11 [shape = 'u8[1024]{0}', space=vmem, size = 0x400, scoped, tag = 'input window, operand 9']
    #allocation12 [shape = 's32[2]{0}', space=sflag, size = 0x8, scoped, tag = 'scoped memory for transformer_scorer_forward.1']
    #allocation13 [shape = 'u8[131072]{0}', space=vmem, size = 0x20000, scoped, tag = 'input window, operand 12']
    #allocation14 [shape = 'u8[1024]{0}', space=vmem, size = 0x400, scoped, tag = 'input window, operand 13']
    #allocation15 [shape = 's32[2]{0}', space=sflag, size = 0x8, scoped, tag = 'scoped memory for transformer_scorer_forward.1']
    #allocation16 [shape = 'u8[32768]{0}', space=vmem, size = 0x8000, scoped, tag = 'input window, operand 18, single buffered']
    #allocation17 [shape = 'u8[512]{0}', space=vmem, size = 0x400, scoped, tag = 'input window, operand 20, single buffered']
    #allocation18 [shape = 's32[1]{0}', space=sflag, size = 0x4, scoped, tag = 'scoped memory for transformer_scorer_forward.1']
    #allocation19 [shape = 'u8[8192]{0}', space=vmem, size = 0x2000, scoped, tag = 'output window, operand 0']
    %29 = vsyncpa [#allocation3], 0
    %30 = vsyncpa [#allocation6], 0
    %s31 = scalar_lea.sflag [#allocation6], 1
    %32 = vsyncpa %s31, 0
    %33 = vsyncpa [#allocation9], 0
    %s34 = scalar_lea.sflag [#allocation9], 1
    %35 = vsyncpa %s34, 0
    %36 = vsyncpa [#allocation12], 0
    %s37 = scalar_lea.sflag [#allocation12], 1
    %38 = vsyncpa %s37, 0
    %39 = vsyncpa [#allocation15], 0
    %s40 = scalar_lea.sflag [#allocation15], 1
    %41 = vsyncpa %s40, 0
    %42 = vsyncpa [#allocation18], 0
    %43 = vsyncpa [#allocation4], 0
    %s44 = scalar_lea.sflag [#allocation4], 1
    %45 = vsyncpa %s44, 0
    loop: start=0, step=1, limit=6
    $region2: #{transformer_scorer_forward.1} parent=1 // loop_pre_header
      _
    $region3: #{transformer_scorer_forward.1} parent=1 // loop_header
      %s47 = sphi 0, %s51
      %p48 = scmp.ge.s32.totalorder %s47, 6
      %s54 = sphi 0, %s66
      %s55 = sphi 0, %s62
      %s56 = sphi 0, %s54
      %s57 = sphi 0, %s55
      %s58 = sphi 0, %s56
      %s59 = sphi 0, %s57
      %s69 = sphi 0, %s71
      %s72 = sphi 0, %s69
      %s73 = sphi 0, %s72
      %s89 = sphi 0, %s73
      %s95 = sphi 0, %s97
      %s98 = sphi 0, %s95
      %s99 = sphi 0, %s98
      %s115 = sphi 0, %s99
      %s119 = sphi 0, %s119
      %s121 = sphi 0, %s119
      %s122 = sphi 0, %s121
      %s136 = sphi 0, %s122
      %s140 = sphi 0, %s140
      %s142 = sphi 0, %s140
      %s143 = sphi 0, %s142
      %s157 = sphi 0, %s143
      %s163 = sphi 0, %s165
      %s166 = sphi 0, %s163
      %s167 = sphi 0, %s166
      %s183 = sphi 0, %s167
      %s189 = sphi 0, %s191
      %s192 = sphi 0, %s189
      %s193 = sphi 0, %s192
      %s209 = sphi 0, %s193
      %s215 = sphi 0, %s217
      %s218 = sphi 0, %s215
      %s219 = sphi 0, %s218
      %s235 = sphi 0, %s219
      %s241 = sphi 0, %s243
      %s244 = sphi 0, %s241
      %s245 = sphi 0, %s244
      %s261 = sphi 0, %s245
      %s267 = sphi 0, %s269
      %s270 = sphi 0, %s267
      %s271 = sphi 0, %s270
      %s287 = sphi 0, %s271
      %s293 = sphi 0, %s295
      %s296 = sphi 0, %s293
      %s297 = sphi 0, %s296
      %s313 = sphi 0, %s297
      %s319 = sphi 0, %s321
      %s322 = sphi 0, %s319
      %s323 = sphi 0, %s322
      %s339 = sphi 0, %s323
      %s345 = sphi 0, %s347
      %s348 = sphi 0, %s345
      %s349 = sphi 0, %s348
      %s365 = sphi 0, %s349
      %s371 = sphi 0, %s373
      %s374 = sphi 0, %s371
      %s375 = sphi 0, %s374
      %s391 = sphi 0, %s375
      %s397 = sphi 0, %s399
      %s400 = sphi 0, %s397
      %s401 = sphi 0, %s400
      %s417 = sphi 0, %s401
      %s423 = sphi 0, %s425
      %s426 = sphi 0, %s423
      %s427 = sphi 0, %s426
      %s443 = sphi 0, %s427
      %s449 = sphi 0, %s451
      %s452 = sphi 0, %s449
      %s453 = sphi 0, %s452
      %s469 = sphi 0, %s453
      %s473 = sphi 0, %s473
      %s475 = sphi 0, %s473
      %s476 = sphi 0, %s475
      %s490 = sphi 0, %s476
      %s494 = sphi 0, %s494
      %s496 = sphi 0, %s494
      %s497 = sphi 0, %s496
      %s511 = sphi 0, %s497
      %s515 = sphi 0, %s515
      %s517 = sphi 0, %s515
      %s518 = sphi 0, %s517
      %s532 = sphi 0, %s518
      %s536 = sphi 0, %s536
      %s538 = sphi 0, %s536
      %s539 = sphi 0, %s538
      %s553 = sphi 0, %s539
      %s557 = sphi 0, %s557
      %s559 = sphi 0, %s557
      %s560 = sphi 0, %s559
      %s574 = sphi 0, %s560
      %s578 = sphi 0, %s578
      %s580 = sphi 0, %s578
      %s581 = sphi 0, %s580
      %s595 = sphi 0, %s581
      %s601 = sphi 0, %s603
      %s604 = sphi 0, %s601
      %s605 = sphi 0, %s604
      %s621 = sphi 0, %s605
      %s627 = sphi 0, %s629
      %s630 = sphi 0, %s627
      %s631 = sphi 0, %s630
      %s647 = sphi 0, %s631
    $region4: #{transformer_scorer_forward.1} parent=1 // loop_header_branch
      %50 = sbr.rel (%p48) target = $region8
    $region5: #{transformer_scorer_forward.1} parent=1 // loop_body
      %s52 = ssub.s32 %s47, 1
      %s53 = ssub.s32 %s47, 2
      %s60 = sadd.s32 1, %s55
      %p61 = scmp.ge.s32.totalorder %s60, 2
      %s62 = scalar_select %p61, 0, %s60
      %s63 = sadd.s32 1, %s54
      %s64 = scalar_select %p61, %s63, %s54
      %p65 = scmp.ge.s32.totalorder %s64, 2
      %s66 = scalar_select %p65, 0, %s64
      %s67 = ssub.s32 %s54, %s66
      %p68 = scmp.eq.s32.totalorder %s67, 0
      %s70 = sadd.s32 %s69, 1
      %s71 = scalar_select %p68, %s69, %s70
      %p74 = pneg %p68
      %p75 = scmp.eq.s32.totalorder %s47, 3
      %p76 = por %p74, %p75
      %p77 = scmp.ne.s32.totalorder %s69, %s72
      %p78 = scmp.eq.s32.totalorder %s47, 0
      %p79 = por %p77, %p78
      %p80 = scmp.ne.s32.totalorder %s69, %s72
      %p81 = scmp.eq.s32.totalorder %s52, 3
      %p82 = por %p80, %p81
      %p83 = scmp.ne.s32.totalorder %s72, %s73
      %p84 = scmp.eq.s32.totalorder %s52, 0
      %p85 = por %p83, %p84
      %p86 = scmp.ne.s32.totalorder %s72, %s73
      %p87 = scmp.eq.s32.totalorder %s53, 3
      %p88 = por %p86, %p87
      %p90 = scmp.ne.s32.totalorder %s73, %s89
      %p91 = scmp.eq.s32.totalorder %s53, 0
      %p92 = por %p90, %p91
      %s93 = ssub.s32 %s54, %s66
      %p94 = scmp.eq.s32.totalorder %s93, 0
      %s96 = sadd.s32 %s95, 1
      %s97 = scalar_select %p94, %s95, %s96
      %p100 = pneg %p94
      %p101 = scmp.eq.s32.totalorder %s47, 3
      %p102 = por %p100, %p101
      %p103 = scmp.ne.s32.totalorder %s95, %s98
      %p104 = scmp.eq.s32.totalorder %s47, 0
      %p105 = por %p103, %p104
      %p106 = scmp.ne.s32.totalorder %s95, %s98
      %p107 = scmp.eq.s32.totalorder %s52, 3
      %p108 = por %p106, %p107
      %p109 = scmp.ne.s32.totalorder %s98, %s99
      %p110 = scmp.eq.s32.totalorder %s52, 0
      %p111 = por %p109, %p110
      %p112 = scmp.ne.s32.totalorder %s98, %s99
      %p113 = scmp.eq.s32.totalorder %s53, 3
      %p114 = por %p112, %p113
      %p116 = scmp.ne.s32.totalorder %s99, %s115
      %p117 = scmp.eq.s32.totalorder %s53, 0
      %p118 = por %p116, %p117
      %s120 = sadd.s32 %s119, 1
      %p123 = scmp.eq.s32.totalorder %s47, 3
      %p124 = scmp.ne.s32.totalorder %s119, %s121
      %p125 = scmp.eq.s32.totalorder %s47, 0
      %p126 = por %p124, %p125
      %p127 = scmp.ne.s32.totalorder %s119, %s121
      %p128 = scmp.eq.s32.totalorder %s52, 3
      %p129 = por %p127, %p128
      %p130 = scmp.ne.s32.totalorder %s121, %s122
      %p131 = scmp.eq.s32.totalorder %s52, 0
      %p132 = por %p130, %p131
      %p133 = scmp.ne.s32.totalorder %s121, %s122
      %p134 = scmp.eq.s32.totalorder %s53, 3
      %p135 = por %p133, %p134
      %p137 = scmp.ne.s32.totalorder %s122, %s136
      %p138 = scmp.eq.s32.totalorder %s53, 0
      %p139 = por %p137, %p138
      %s141 = sadd.s32 %s140, 1
      %p144 = scmp.eq.s32.totalorder %s47, 3
      %p145 = scmp.ne.s32.totalorder %s140, %s142
      %p146 = scmp.eq.s32.totalorder %s47, 0
      %p147 = por %p145, %p146
      %p148 = scmp.ne.s32.totalorder %s140, %s142
      %p149 = scmp.eq.s32.totalorder %s52, 3
      %p150 = por %p148, %p149
      %p151 = scmp.ne.s32.totalorder %s142, %s143
      %p152 = scmp.eq.s32.totalorder %s52, 0
      %p153 = por %p151, %p152
      %p154 = scmp.ne.s32.totalorder %s142, %s143
      %p155 = scmp.eq.s32.totalorder %s53, 3
      %p156 = por %p154, %p155
      %p158 = scmp.ne.s32.totalorder %s143, %s157
      %p159 = scmp.eq.s32.totalorder %s53, 0
      %p160 = por %p158, %p159
      %s161 = ssub.s32 %s55, %s62
      %p162 = scmp.eq.s32.totalorder %s161, 0
      %s164 = sadd.s32 %s163, 1
      %s165 = scalar_select %p162, %s163, %s164
      %p168 = pneg %p162
      %p169 = scmp.eq.s32.totalorder %s47, 3
      %p170 = por %p168, %p169
      %p171 = scmp.ne.s32.totalorder %s163, %s166
      %p172 = scmp.eq.s32.totalorder %s47, 0
      %p173 = por %p171, %p172
      %p174 = scmp.ne.s32.totalorder %s163, %s166
      %p175 = scmp.eq.s32.totalorder %s52, 3
      %p176 = por %p174, %p175
      %p177 = scmp.ne.s32.totalorder %s166, %s167
      %p178 = scmp.eq.s32.totalorder %s52, 0
      %p179 = por %p177, %p178
      %p180 = scmp.ne.s32.totalorder %s166, %s167
      %p181 = scmp.eq.s32.totalorder %s53, 3
      %p182 = por %p180, %p181
      %p184 = scmp.ne.s32.totalorder %s167, %s183
      %p185 = scmp.eq.s32.totalorder %s53, 0
      %p186 = por %p184, %p185
      %s187 = ssub.s32 %s55, %s62
      %p188 = scmp.eq.s32.totalorder %s187, 0
      %s190 = sadd.s32 %s189, 1
      %s191 = scalar_select %p188, %s189, %s190
      %p194 = pneg %p188
      %p195 = scmp.eq.s32.totalorder %s47, 3
      %p196 = por %p194, %p195
      %p197 = scmp.ne.s32.totalorder %s189, %s192
      %p198 = scmp.eq.s32.totalorder %s47, 0
      %p199 = por %p197, %p198
      %p200 = scmp.ne.s32.totalorder %s189, %s192
      %p201 = scmp.eq.s32.totalorder %s52, 3
      %p202 = por %p200, %p201
      %p203 = scmp.ne.s32.totalorder %s192, %s193
      %p204 = scmp.eq.s32.totalorder %s52, 0
      %p205 = por %p203, %p204
      %p206 = scmp.ne.s32.totalorder %s192, %s193
      %p207 = scmp.eq.s32.totalorder %s53, 3
      %p208 = por %p206, %p207
      %p210 = scmp.ne.s32.totalorder %s193, %s209
      %p211 = scmp.eq.s32.totalorder %s53, 0
      %p212 = por %p210, %p211
      %s213 = ssub.s32 %s55, %s62
      %p214 = scmp.eq.s32.totalorder %s213, 0
      %s216 = sadd.s32 %s215, 1
      %s217 = scalar_select %p214, %s215, %s216
      %p220 = pneg %p214
      %p221 = scmp.eq.s32.totalorder %s47, 3
      %p222 = por %p220, %p221
      %p223 = scmp.ne.s32.totalorder %s215, %s218
      %p224 = scmp.eq.s32.totalorder %s47, 0
      %p225 = por %p223, %p224
      %p226 = scmp.ne.s32.totalorder %s215, %s218
      %p227 = scmp.eq.s32.totalorder %s52, 3
      %p228 = por %p226, %p227
      %p229 = scmp.ne.s32.totalorder %s218, %s219
      %p230 = scmp.eq.s32.totalorder %s52, 0
      %p231 = por %p229, %p230
      %p232 = scmp.ne.s32.totalorder %s218, %s219
      %p233 = scmp.eq.s32.totalorder %s53, 3
      %p234 = por %p232, %p233
      %p236 = scmp.ne.s32.totalorder %s219, %s235
      %p237 = scmp.eq.s32.totalorder %s53, 0
      %p238 = por %p236, %p237
      %s239 = ssub.s32 %s55, %s62
      %p240 = scmp.eq.s32.totalorder %s239, 0
      %s242 = sadd.s32 %s241, 1
      %s243 = scalar_select %p240, %s241, %s242
      %p246 = pneg %p240
      %p247 = scmp.eq.s32.totalorder %s47, 3
      %p248 = por %p246, %p247
      %p249 = scmp.ne.s32.totalorder %s241, %s244
      %p250 = scmp.eq.s32.totalorder %s47, 0
      %p251 = por %p249, %p250
      %p252 = scmp.ne.s32.totalorder %s241, %s244
      %p253 = scmp.eq.s32.totalorder %s52, 3
      %p254 = por %p252, %p253
      %p255 = scmp.ne.s32.totalorder %s244, %s245
      %p256 = scmp.eq.s32.totalorder %s52, 0
      %p257 = por %p255, %p256
      %p258 = scmp.ne.s32.totalorder %s244, %s245
      %p259 = scmp.eq.s32.totalorder %s53, 3
      %p260 = por %p258, %p259
      %p262 = scmp.ne.s32.totalorder %s245, %s261
      %p263 = scmp.eq.s32.totalorder %s53, 0
      %p264 = por %p262, %p263
      %s265 = ssub.s32 %s55, %s62
      %p266 = scmp.eq.s32.totalorder %s265, 0
      %s268 = sadd.s32 %s267, 1
      %s269 = scalar_select %p266, %s267, %s268
      %p272 = pneg %p266
      %p273 = scmp.eq.s32.totalorder %s47, 3
      %p274 = por %p272, %p273
      %p275 = scmp.ne.s32.totalorder %s267, %s270
      %p276 = scmp.eq.s32.totalorder %s47, 0
      %p277 = por %p275, %p276
      %p278 = scmp.ne.s32.totalorder %s267, %s270
      %p279 = scmp.eq.s32.totalorder %s52, 3
      %p280 = por %p278, %p279
      %p281 = scmp.ne.s32.totalorder %s270, %s271
      %p282 = scmp.eq.s32.totalorder %s52, 0
      %p283 = por %p281, %p282
      %p284 = scmp.ne.s32.totalorder %s270, %s271
      %p285 = scmp.eq.s32.totalorder %s53, 3
      %p286 = por %p284, %p285
      %p288 = scmp.ne.s32.totalorder %s271, %s287
      %p289 = scmp.eq.s32.totalorder %s53, 0
      %p290 = por %p288, %p289
      %s291 = ssub.s32 %s55, %s62
      %p292 = scmp.eq.s32.totalorder %s291, 0
      %s294 = sadd.s32 %s293, 1
      %s295 = scalar_select %p292, %s293, %s294
      %p298 = pneg %p292
      %p299 = scmp.eq.s32.totalorder %s47, 3
      %p300 = por %p298, %p299
      %p301 = scmp.ne.s32.totalorder %s293, %s296
      %p302 = scmp.eq.s32.totalorder %s47, 0
      %p303 = por %p301, %p302
      %p304 = scmp.ne.s32.totalorder %s293, %s296
      %p305 = scmp.eq.s32.totalorder %s52, 3
      %p306 = por %p304, %p305
      %p307 = scmp.ne.s32.totalorder %s296, %s297
      %p308 = scmp.eq.s32.totalorder %s52, 0
      %p309 = por %p307, %p308
      %p310 = scmp.ne.s32.totalorder %s296, %s297
      %p311 = scmp.eq.s32.totalorder %s53, 3
      %p312 = por %p310, %p311
      %p314 = scmp.ne.s32.totalorder %s297, %s313
      %p315 = scmp.eq.s32.totalorder %s53, 0
      %p316 = por %p314, %p315
      %s317 = ssub.s32 %s55, %s62
      %p318 = scmp.eq.s32.totalorder %s317, 0
      %s320 = sadd.s32 %s319, 1
      %s321 = scalar_select %p318, %s319, %s320
      %p324 = pneg %p318
      %p325 = scmp.eq.s32.totalorder %s47, 3
      %p326 = por %p324, %p325
      %p327 = scmp.ne.s32.totalorder %s319, %s322
      %p328 = scmp.eq.s32.totalorder %s47, 0
      %p329 = por %p327, %p328
      %p330 = scmp.ne.s32.totalorder %s319, %s322
      %p331 = scmp.eq.s32.totalorder %s52, 3
      %p332 = por %p330, %p331
      %p333 = scmp.ne.s32.totalorder %s322, %s323
      %p334 = scmp.eq.s32.totalorder %s52, 0
      %p335 = por %p333, %p334
      %p336 = scmp.ne.s32.totalorder %s322, %s323
      %p337 = scmp.eq.s32.totalorder %s53, 3
      %p338 = por %p336, %p337
      %p340 = scmp.ne.s32.totalorder %s323, %s339
      %p341 = scmp.eq.s32.totalorder %s53, 0
      %p342 = por %p340, %p341
      %s343 = ssub.s32 %s55, %s62
      %p344 = scmp.eq.s32.totalorder %s343, 0
      %s346 = sadd.s32 %s345, 1
      %s347 = scalar_select %p344, %s345, %s346
      %p350 = pneg %p344
      %p351 = scmp.eq.s32.totalorder %s47, 3
      %p352 = por %p350, %p351
      %p353 = scmp.ne.s32.totalorder %s345, %s348
      %p354 = scmp.eq.s32.totalorder %s47, 0
      %p355 = por %p353, %p354
      %p356 = scmp.ne.s32.totalorder %s345, %s348
      %p357 = scmp.eq.s32.totalorder %s52, 3
      %p358 = por %p356, %p357
      %p359 = scmp.ne.s32.totalorder %s348, %s349
      %p360 = scmp.eq.s32.totalorder %s52, 0
      %p361 = por %p359, %p360
      %p362 = scmp.ne.s32.totalorder %s348, %s349
      %p363 = scmp.eq.s32.totalorder %s53, 3
      %p364 = por %p362, %p363
      %p366 = scmp.ne.s32.totalorder %s349, %s365
      %p367 = scmp.eq.s32.totalorder %s53, 0
      %p368 = por %p366, %p367
      %s369 = ssub.s32 %s55, %s62
      %p370 = scmp.eq.s32.totalorder %s369, 0
      %s372 = sadd.s32 %s371, 1
      %s373 = scalar_select %p370, %s371, %s372
      %p376 = pneg %p370
      %p377 = scmp.eq.s32.totalorder %s47, 3
      %p378 = por %p376, %p377
      %p379 = scmp.ne.s32.totalorder %s371, %s374
      %p380 = scmp.eq.s32.totalorder %s47, 0
      %p381 = por %p379, %p380
      %p382 = scmp.ne.s32.totalorder %s371, %s374
      %p383 = scmp.eq.s32.totalorder %s52, 3
      %p384 = por %p382, %p383
      %p385 = scmp.ne.s32.totalorder %s374, %s375
      %p386 = scmp.eq.s32.totalorder %s52, 0
      %p387 = por %p385, %p386
      %p388 = scmp.ne.s32.totalorder %s374, %s375
      %p389 = scmp.eq.s32.totalorder %s53, 3
      %p390 = por %p388, %p389
      %p392 = scmp.ne.s32.totalorder %s375, %s391
      %p393 = scmp.eq.s32.totalorder %s53, 0
      %p394 = por %p392, %p393
      %s395 = ssub.s32 %s55, %s62
      %p396 = scmp.eq.s32.totalorder %s395, 0
      %s398 = sadd.s32 %s397, 1
      %s399 = scalar_select %p396, %s397, %s398
      %p402 = pneg %p396
      %p403 = scmp.eq.s32.totalorder %s47, 3
      %p404 = por %p402, %p403
      %p405 = scmp.ne.s32.totalorder %s397, %s400
      %p406 = scmp.eq.s32.totalorder %s47, 0
      %p407 = por %p405, %p406
      %p408 = scmp.ne.s32.totalorder %s397, %s400
      %p409 = scmp.eq.s32.totalorder %s52, 3
      %p410 = por %p408, %p409
      %p411 = scmp.ne.s32.totalorder %s400, %s401
      %p412 = scmp.eq.s32.totalorder %s52, 0
      %p413 = por %p411, %p412
      %p414 = scmp.ne.s32.totalorder %s400, %s401
      %p415 = scmp.eq.s32.totalorder %s53, 3
      %p416 = por %p414, %p415
      %p418 = scmp.ne.s32.totalorder %s401, %s417
      %p419 = scmp.eq.s32.totalorder %s53, 0
      %p420 = por %p418, %p419
      %s421 = ssub.s32 %s55, %s62
      %p422 = scmp.eq.s32.totalorder %s421, 0
      %s424 = sadd.s32 %s423, 1
      %s425 = scalar_select %p422, %s423, %s424
      %p428 = pneg %p422
      %p429 = scmp.eq.s32.totalorder %s47, 3
      %p430 = por %p428, %p429
      %p431 = scmp.ne.s32.totalorder %s423, %s426
      %p432 = scmp.eq.s32.totalorder %s47, 0
      %p433 = por %p431, %p432
      %p434 = scmp.ne.s32.totalorder %s423, %s426
      %p435 = scmp.eq.s32.totalorder %s52, 3
      %p436 = por %p434, %p435
      %p437 = scmp.ne.s32.totalorder %s426, %s427
      %p438 = scmp.eq.s32.totalorder %s52, 0
      %p439 = por %p437, %p438
      %p440 = scmp.ne.s32.totalorder %s426, %s427
      %p441 = scmp.eq.s32.totalorder %s53, 3
      %p442 = por %p440, %p441
      %p444 = scmp.ne.s32.totalorder %s427, %s443
      %p445 = scmp.eq.s32.totalorder %s53, 0
      %p446 = por %p444, %p445
      %s447 = ssub.s32 %s55, %s62
      %p448 = scmp.eq.s32.totalorder %s447, 0
      %s450 = sadd.s32 %s449, 1
      %s451 = scalar_select %p448, %s449, %s450
      %p454 = pneg %p448
      %p455 = scmp.eq.s32.totalorder %s47, 3
      %p456 = por %p454, %p455
      %p457 = scmp.ne.s32.totalorder %s449, %s452
      %p458 = scmp.eq.s32.totalorder %s47, 0
      %p459 = por %p457, %p458
      %p460 = scmp.ne.s32.totalorder %s449, %s452
      %p461 = scmp.eq.s32.totalorder %s52, 3
      %p462 = por %p460, %p461
      %p463 = scmp.ne.s32.totalorder %s452, %s453
      %p464 = scmp.eq.s32.totalorder %s52, 0
      %p465 = por %p463, %p464
      %p466 = scmp.ne.s32.totalorder %s452, %s453
      %p467 = scmp.eq.s32.totalorder %s53, 3
      %p468 = por %p466, %p467
      %p470 = scmp.ne.s32.totalorder %s453, %s469
      %p471 = scmp.eq.s32.totalorder %s53, 0
      %p472 = por %p470, %p471
      %s474 = sadd.s32 %s473, 1
      %p477 = scmp.eq.s32.totalorder %s47, 3
      %p478 = scmp.ne.s32.totalorder %s473, %s475
      %p479 = scmp.eq.s32.totalorder %s47, 0
      %p480 = por %p478, %p479
      %p481 = scmp.ne.s32.totalorder %s473, %s475
      %p482 = scmp.eq.s32.totalorder %s52, 3
      %p483 = por %p481, %p482
      %p484 = scmp.ne.s32.totalorder %s475, %s476
      %p485 = scmp.eq.s32.totalorder %s52, 0
      %p486 = por %p484, %p485
      %p487 = scmp.ne.s32.totalorder %s475, %s476
      %p488 = scmp.eq.s32.totalorder %s53, 3
      %p489 = por %p487, %p488
      %p491 = scmp.ne.s32.totalorder %s476, %s490
      %p492 = scmp.eq.s32.totalorder %s53, 0
      %p493 = por %p491, %p492
      %s495 = sadd.s32 %s494, 1
      %p498 = scmp.eq.s32.totalorder %s47, 3
      %p499 = scmp.ne.s32.totalorder %s494, %s496
      %p500 = scmp.eq.s32.totalorder %s47, 0
      %p501 = por %p499, %p500
      %p502 = scmp.ne.s32.totalorder %s494, %s496
      %p503 = scmp.eq.s32.totalorder %s52, 3
      %p504 = por %p502, %p503
      %p505 = scmp.ne.s32.totalorder %s496, %s497
      %p506 = scmp.eq.s32.totalorder %s52, 0
      %p507 = por %p505, %p506
      %p508 = scmp.ne.s32.totalorder %s496, %s497
      %p509 = scmp.eq.s32.totalorder %s53, 3
      %p510 = por %p508, %p509
      %p512 = scmp.ne.s32.totalorder %s497, %s511
      %p513 = scmp.eq.s32.totalorder %s53, 0
      %p514 = por %p512, %p513
      %s516 = sadd.s32 %s515, 1
      %p519 = scmp.eq.s32.totalorder %s47, 3
      %p520 = scmp.ne.s32.totalorder %s515, %s517
      %p521 = scmp.eq.s32.totalorder %s47, 0
      %p522 = por %p520, %p521
      %p523 = scmp.ne.s32.totalorder %s515, %s517
      %p524 = scmp.eq.s32.totalorder %s52, 3
      %p525 = por %p523, %p524
      %p526 = scmp.ne.s32.totalorder %s517, %s518
      %p527 = scmp.eq.s32.totalorder %s52, 0
      %p528 = por %p526, %p527
      %p529 = scmp.ne.s32.totalorder %s517, %s518
      %p530 = scmp.eq.s32.totalorder %s53, 3
      %p531 = por %p529, %p530
      %p533 = scmp.ne.s32.totalorder %s518, %s532
      %p534 = scmp.eq.s32.totalorder %s53, 0
      %p535 = por %p533, %p534
      %s537 = sadd.s32 %s536, 1
      %p540 = scmp.eq.s32.totalorder %s47, 3
      %p541 = scmp.ne.s32.totalorder %s536, %s538
      %p542 = scmp.eq.s32.totalorder %s47, 0
      %p543 = por %p541, %p542
      %p544 = scmp.ne.s32.totalorder %s536, %s538
      %p545 = scmp.eq.s32.totalorder %s52, 3
      %p546 = por %p544, %p545
      %p547 = scmp.ne.s32.totalorder %s538, %s539
      %p548 = scmp.eq.s32.totalorder %s52, 0
      %p549 = por %p547, %p548
      %p550 = scmp.ne.s32.totalorder %s538, %s539
      %p551 = scmp.eq.s32.totalorder %s53, 3
      %p552 = por %p550, %p551
      %p554 = scmp.ne.s32.totalorder %s539, %s553
      %p555 = scmp.eq.s32.totalorder %s53, 0
      %p556 = por %p554, %p555
      %s558 = sadd.s32 %s557, 1
      %p561 = scmp.eq.s32.totalorder %s47, 3
      %p562 = scmp.ne.s32.totalorder %s557, %s559
      %p563 = scmp.eq.s32.totalorder %s47, 0
      %p564 = por %p562, %p563
      %p565 = scmp.ne.s32.totalorder %s557, %s559
      %p566 = scmp.eq.s32.totalorder %s52, 3
      %p567 = por %p565, %p566
      %p568 = scmp.ne.s32.totalorder %s559, %s560
      %p569 = scmp.eq.s32.totalorder %s52, 0
      %p570 = por %p568, %p569
      %p571 = scmp.ne.s32.totalorder %s559, %s560
      %p572 = scmp.eq.s32.totalorder %s53, 3
      %p573 = por %p571, %p572
      %p575 = scmp.ne.s32.totalorder %s560, %s574
      %p576 = scmp.eq.s32.totalorder %s53, 0
      %p577 = por %p575, %p576
      %s579 = sadd.s32 %s578, 1
      %p582 = scmp.eq.s32.totalorder %s47, 3
      %p583 = scmp.ne.s32.totalorder %s578, %s580
      %p584 = scmp.eq.s32.totalorder %s47, 0
      %p585 = por %p583, %p584
      %p586 = scmp.ne.s32.totalorder %s578, %s580
      %p587 = scmp.eq.s32.totalorder %s52, 3
      %p588 = por %p586, %p587
      %p589 = scmp.ne.s32.totalorder %s580, %s581
      %p590 = scmp.eq.s32.totalorder %s52, 0
      %p591 = por %p589, %p590
      %p592 = scmp.ne.s32.totalorder %s580, %s581
      %p593 = scmp.eq.s32.totalorder %s53, 3
      %p594 = por %p592, %p593
      %p596 = scmp.ne.s32.totalorder %s581, %s595
      %p597 = scmp.eq.s32.totalorder %s53, 0
      %p598 = por %p596, %p597
      %s599 = ssub.s32 %s54, %s66
      %p600 = scmp.eq.s32.totalorder %s599, 0
      %s602 = sadd.s32 %s601, 1
      %s603 = scalar_select %p600, %s601, %s602
      %p606 = pneg %p600
      %p607 = scmp.eq.s32.totalorder %s47, 3
      %p608 = por %p606, %p607
      %p609 = scmp.ne.s32.totalorder %s601, %s604
      %p610 = scmp.eq.s32.totalorder %s47, 0
      %p611 = por %p609, %p610
      %p612 = scmp.ne.s32.totalorder %s601, %s604
      %p613 = scmp.eq.s32.totalorder %s52, 3
      %p614 = por %p612, %p613
      %p615 = scmp.ne.s32.totalorder %s604, %s605
      %p616 = scmp.eq.s32.totalorder %s52, 0
      %p617 = por %p615, %p616
      %p618 = scmp.ne.s32.totalorder %s604, %s605
      %p619 = scmp.eq.s32.totalorder %s53, 3
      %p620 = por %p618, %p619
      %p622 = scmp.ne.s32.totalorder %s605, %s621
      %p623 = scmp.eq.s32.totalorder %s53, 0
      %p624 = por %p622, %p623
      %s625 = ssub.s32 %s54, %s66
      %p626 = scmp.eq.s32.totalorder %s625, 0
      %s628 = sadd.s32 %s627, 1
      %s629 = scalar_select %p626, %s627, %s628
      %p632 = pneg %p626
      %p633 = scmp.eq.s32.totalorder %s47, 3
      %p634 = por %p632, %p633
      %p635 = scmp.ne.s32.totalorder %s627, %s630
      %p636 = scmp.eq.s32.totalorder %s47, 0
      %p637 = por %p635, %p636
      %p638 = scmp.ne.s32.totalorder %s627, %s630
      %p639 = scmp.eq.s32.totalorder %s52, 3
      %p640 = por %p638, %p639
      %p641 = scmp.ne.s32.totalorder %s630, %s631
      %p642 = scmp.eq.s32.totalorder %s52, 0
      %p643 = por %p641, %p642
      %p644 = scmp.ne.s32.totalorder %s630, %s631
      %p645 = scmp.eq.s32.totalorder %s53, 3
      %p646 = por %p644, %p645
      %p648 = scmp.ne.s32.totalorder %s631, %s647
      %p649 = scmp.eq.s32.totalorder %s53, 0
      %p650 = por %p648, %p649
      %p651 = scmp.le.s32.totalorder 1, %s47
      %p652 = scmp.lt.s32.totalorder %s47, 5
      %p653 = pnand %p651, %p652
      %p654 = pneg %p653
      // Predicated region
      $region9: #{transformer_scorer_forward.1} parent=5 // pred_check
        _
      $region10: #{transformer_scorer_forward.1} parent=5 // pred_check_branch
        %656 = sbr.rel (%p653) target = $region12
      $region11: #{transformer_scorer_forward.1} parent=5 // pred_region
        %s657 = ssub.s32 %s47, 1
        // Predicated region
        $region13: #{transformer_scorer_forward.1} parent=11 // pred_check
          %p658 = pneg %p132
        $region14: #{transformer_scorer_forward.1} parent=11 // pred_check_branch
          %660 = sbr.rel (%p658) target = $region16
        $region15: #{transformer_scorer_forward.1} parent=11 // pred_region
          _
        $region16: #{transformer_scorer_forward.1} parent=11 // pred_fallthru
          _
        // Predicated region
        $region17: #{transformer_scorer_forward.1} parent=11 // pred_check
          %p661 = pneg %p153
        $region18: #{transformer_scorer_forward.1} parent=11 // pred_check_branch
          %663 = sbr.rel (%p661) target = $region20
        $region19: #{transformer_scorer_forward.1} parent=11 // pred_region
          %s665 = ssub.s32 16, 16
          %666 = vsyncadd [#allocation3], %s665
          %s668 = sshll.u32 [#allocation2], 4
          %s669 = int_to_ptr.vmem [resolvable:$true] %s668
          %671 = dma.hbm_to_vmem [thread:$0]  %s3, 16, %s669, [#allocation3]
        $region20: #{transformer_scorer_forward.1} parent=11 // pred_fallthru
          _
        // Predicated region
        $region21: #{transformer_scorer_forward.1} parent=11 // pred_check
          %p672 = pneg %p486
        $region22: #{transformer_scorer_forward.1} parent=11 // pred_check_branch
          %674 = sbr.rel (%p672) target = $region24
        $region23: #{transformer_scorer_forward.1} parent=11 // pred_region
          _
        $region24: #{transformer_scorer_forward.1} parent=11 // pred_fallthru
          _
        // Predicated region
        $region25: #{transformer_scorer_forward.1} parent=11 // pred_check
          %p675 = pneg %p507
        $region26: #{transformer_scorer_forward.1} parent=11 // pred_check_branch
          %677 = sbr.rel (%p675) target = $region28
        $region27: #{transformer_scorer_forward.1} parent=11 // pred_region
          _
        $region28: #{transformer_scorer_forward.1} parent=11 // pred_fallthru
          _
        // Predicated region
        $region29: #{transformer_scorer_forward.1} parent=11 // pred_check
          %p678 = pneg %p528
        $region30: #{transformer_scorer_forward.1} parent=11 // pred_check_branch
          %680 = sbr.rel (%p678) target = $region32
        $region31: #{transformer_scorer_forward.1} parent=11 // pred_region
          %s682 = ssub.s32 1024, 1024
          %683 = vsyncadd [#allocation15], %s682
          %s684 = sshll.u32 [#allocation16], 4
          %s685 = int_to_ptr.vmem [resolvable:$true] %s684
          %690 = dma.hbm_to_vmem [thread:$0]  %s18, 1024, %s685, [#allocation15], 64, 64, 4
        $region32: #{transformer_scorer_forward.1} parent=11 // pred_fallthru
          _
        // Predicated region
        $region33: #{transformer_scorer_forward.1} parent=11 // pred_check
          %p691 = pneg %p549
        $region34: #{transformer_scorer_forward.1} parent=11 // pred_check_branch
          %693 = sbr.rel (%p691) target = $region36
        $region35: #{transformer_scorer_forward.1} parent=11 // pred_region
          _
        $region36: #{transformer_scorer_forward.1} parent=11 // pred_fallthru
          _
        // Predicated region
        $region37: #{transformer_scorer_forward.1} parent=11 // pred_check
          %p694 = pneg %p570
        $region38: #{transformer_scorer_forward.1} parent=11 // pred_check_branch
          %696 = sbr.rel (%p694) target = $region40
        $region39: #{transformer_scorer_forward.1} parent=11 // pred_region
          %s698 = ssub.s32 16, 16
          %699 = vsyncadd [#allocation18], %s698
          %s701 = sshll.u32 [#allocation17], 4
          %s702 = int_to_ptr.vmem [resolvable:$true] %s701
          %704 = dma.hbm_to_vmem [thread:$0]  %s20, 16, %s702, [#allocation18]
        $region40: #{transformer_scorer_forward.1} parent=11 // pred_fallthru
          _
        // Predicated region
        $region41: #{transformer_scorer_forward.1} parent=11 // pred_check
          %p705 = pneg %p591
        $region42: #{transformer_scorer_forward.1} parent=11 // pred_check_branch
          %707 = sbr.rel (%p705) target = $region44
        $region43: #{transformer_scorer_forward.1} parent=11 // pred_region
          _
        $region44: #{transformer_scorer_forward.1} parent=11 // pred_fallthru
          _
      $region12: #{transformer_scorer_forward.1} parent=5 // pred_fallthru
        _
      %p708 = scmp.lt.s32.totalorder %s47, 4
      // Predicated region
      $region45: #{transformer_scorer_forward.1} parent=5 // pred_check
        %p709 = pneg %p708
      $region46: #{transformer_scorer_forward.1} parent=5 // pred_check_branch
        %711 = sbr.rel (%p709) target = $region48
      $region47: #{transformer_scorer_forward.1} parent=5 // pred_region
        // Predicated region
        $region49: #{transformer_scorer_forward.1} parent=47 // pred_check
          %p712 = pneg %p79
        $region50: #{transformer_scorer_forward.1} parent=47 // pred_check_branch
          %714 = sbr.rel (%p712) target = $region52
        $region51: #{transformer_scorer_forward.1} parent=47 // pred_region
          %p715 = scmp.lt.s32.totalorder %s54, 1
          %s716 = scalar_select %p715, %s54, 1
          %s717 = smul.addr %s716, 8
          %s718 = scalar_lea.vmem %s0, %s717
        $region52: #{transformer_scorer_forward.1} parent=47 // pred_fallthru
          _
        // Predicated region
        $region53: #{transformer_scorer_forward.1} parent=47 // pred_check
          %p719 = pneg %p105
        $region54: #{transformer_scorer_forward.1} parent=47 // pred_check_branch
          %721 = sbr.rel (%p719) target = $region56
        $region55: #{transformer_scorer_forward.1} parent=47 // pred_region
          %p722 = scmp.lt.s32.totalorder %s54, 1
          %s723 = scalar_select %p722, %s54, 1
          %s724 = scalar_lea.vmem %s1, %s723
        $region56: #{transformer_scorer_forward.1} parent=47 // pred_fallthru
          _
        // Predicated region
        $region57: #{transformer_scorer_forward.1} parent=47 // pred_check
          %p725 = pneg %p173
        $region58: #{transformer_scorer_forward.1} parent=47 // pred_check_branch
          %727 = sbr.rel (%p725) target = $region60
        $region59: #{transformer_scorer_forward.1} parent=47 // pred_region
          %s728 = sand.u32 %s47, 1
          %s729 = scalar_lea.sflag [#allocation6], %s728
          %s730 = sand.u32 %s163, 1
          %s731 = smul.addr %s730, 192
          %s732 = scalar_lea.vmem [#allocation5], %s731
          %s734 = ssub.s32 3072, 3072
          %735 = vsyncadd %s729, %s734
          %s736 = smul.addr %s55, 48
          %s737 = smul.addr %s736, 64
          %s738 = scalar_lea.hbm %s4, %s737
          %s739 = sshll.u32 %s732, 4
          %s740 = int_to_ptr.vmem [resolvable:$true] %s739
          %745 = dma.hbm_to_vmem [thread:$0]  %s738, 3072, %s740, %s729, 192, 192, 12
        $region60: #{transformer_scorer_forward.1} parent=47 // pred_fallthru
          _
        // Predicated region
        $region61: #{transformer_scorer_forward.1} parent=47 // pred_check
          %p746 = pneg %p199
        $region62: #{transformer_scorer_forward.1} parent=47 // pred_check_branch
          %748 = sbr.rel (%p746) target = $region64
        $region63: #{transformer_scorer_forward.1} parent=47 // pred_region
          %p749 = scmp.lt.s32.totalorder %s55, 1
          %s750 = scalar_select %p749, %s55, 1
          %s751 = smul.addr %s750, 3
          %s752 = scalar_lea.vmem %s5, %s751
        $region64: #{transformer_scorer_forward.1} parent=47 // pred_fallthru
          _
        // Predicated region
        $region65: #{transformer_scorer_forward.1} parent=47 // pred_check
          %p753 = pneg %p225
        $region66: #{transformer_scorer_forward.1} parent=47 // pred_check_branch
          %755 = sbr.rel (%p753) target = $region68
        $region67: #{transformer_scorer_forward.1} parent=47 // pred_region
          %s756 = sand.u32 %s47, 1
          %s757 = scalar_lea.sflag [#allocation6], %s756
          %s758 = sand.u32 %s215, 1
          %s759 = smul.addr %s758, 64
          %s760 = scalar_lea.vmem [#allocation7], %s759
          %s762 = ssub.s32 1024, 1024
          %763 = vsyncadd %s757, %s762
          %s764 = smul.addr %s55, 16
          %s765 = smul.addr %s764, 64
          %s766 = scalar_lea.hbm %s6, %s765
          %s767 = sshll.u32 %s760, 4
          %s768 = int_to_ptr.vmem [resolvable:$true] %s767
          %773 = dma.hbm_to_vmem [thread:$0]  %s766, 1024, %s768, %s757, 64, 64, 4
        $region68: #{transformer_scorer_forward.1} parent=47 // pred_fallthru
          _
        // Predicated region
        $region69: #{transformer_scorer_forward.1} parent=47 // pred_check
          %p774 = pneg %p251
        $region70: #{transformer_scorer_forward.1} parent=47 // pred_check_branch
          %776 = sbr.rel (%p774) target = $region72
        $region71: #{transformer_scorer_forward.1} parent=47 // pred_region
          %s777 = sand.u32 %s47, 1
          %s778 = scalar_lea.sflag [#allocation9], %s777
          %s779 = sand.u32 %s241, 1
          %s780 = scalar_lea.vmem [#allocation8], %s779
          %s782 = ssub.s32 16, 16
          %783 = vsyncadd %s778, %s782
          %s784 = smul.addr %s55, 16
          %s785 = scalar_lea.hbm %s7, %s784
          %s787 = sshll.u32 %s780, 4
          %s788 = int_to_ptr.vmem [resolvable:$true] %s787
          %790 = dma.hbm_to_vmem [thread:$0]  %s785, 16, %s788, %s778
        $region72: #{transformer_scorer_forward.1} parent=47 // pred_fallthru
          _
        // Predicated region
        $region73: #{transformer_scorer_forward.1} parent=47 // pred_check
          %p791 = pneg %p277
        $region74: #{transformer_scorer_forward.1} parent=47 // pred_check_branch
          %793 = sbr.rel (%p791) target = $region76
        $region75: #{transformer_scorer_forward.1} parent=47 // pred_region
          %s794 = sand.u32 %s47, 1
          %s795 = scalar_lea.sflag [#allocation9], %s794
          %s796 = sand.u32 %s267, 1
          %s797 = scalar_lea.vmem [#allocation10], %s796
          %s799 = ssub.s32 16, 16
          %800 = vsyncadd %s795, %s799
          %s801 = smul.addr %s55, 16
          %s802 = scalar_lea.hbm %s8, %s801
          %s804 = sshll.u32 %s797, 4
          %s805 = int_to_ptr.vmem [resolvable:$true] %s804
          %807 = dma.hbm_to_vmem [thread:$0]  %s802, 16, %s805, %s795
        $region76: #{transformer_scorer_forward.1} parent=47 // pred_fallthru
          _
        // Predicated region
        $region77: #{transformer_scorer_forward.1} parent=47 // pred_check
          %p808 = pneg %p303
        $region78: #{transformer_scorer_forward.1} parent=47 // pred_check_branch
          %810 = sbr.rel (%p808) target = $region80
        $region79: #{transformer_scorer_forward.1} parent=47 // pred_region
          %s811 = sand.u32 %s47, 1
          %s812 = scalar_lea.sflag [#allocation12], %s811
          %s813 = sand.u32 %s293, 1
          %s814 = scalar_lea.vmem [#allocation11], %s813
          %s816 = ssub.s32 16, 16
          %817 = vsyncadd %s812, %s816
          %s818 = smul.addr %s55, 16
          %s819 = scalar_lea.hbm %s9, %s818
          %s821 = sshll.u32 %s814, 4
          %s822 = int_to_ptr.vmem [resolvable:$true] %s821
          %824 = dma.hbm_to_vmem [thread:$0]  %s819, 16, %s822, %s812
        $region80: #{transformer_scorer_forward.1} parent=47 // pred_fallthru
          _
        // Predicated region
        $region81: #{transformer_scorer_forward.1} parent=47 // pred_check
          %p825 = pneg %p329
        $region82: #{transformer_scorer_forward.1} parent=47 // pred_check_branch
          %827 = sbr.rel (%p825) target = $region84
        $region83: #{transformer_scorer_forward.1} parent=47 // pred_region
          %p828 = scmp.lt.s32.totalorder %s55, 1
          %s829 = scalar_select %p828, %s55, 1
          %s830 = smul.addr %s829, 32
          %s831 = smul.addr %s830, 4
          %s832 = scalar_lea.vmem %s10, %s831
        $region84: #{transformer_scorer_forward.1} parent=47 // pred_fallthru
          _
        // Predicated region
        $region85: #{transformer_scorer_forward.1} parent=47 // pred_check
          %p833 = pneg %p355
        $region86: #{transformer_scorer_forward.1} parent=47 // pred_check_branch
          %835 = sbr.rel (%p833) target = $region88
        $region87: #{transformer_scorer_forward.1} parent=47 // pred_region
          %p836 = scmp.lt.s32.totalorder %s55, 1
          %s837 = scalar_select %p836, %s55, 1
          %s838 = smul.addr %s837, 2
          %s839 = scalar_lea.vmem %s11, %s838
        $region88: #{transformer_scorer_forward.1} parent=47 // pred_fallthru
          _
        // Predicated region
        $region89: #{transformer_scorer_forward.1} parent=47 // pred_check
          %p840 = pneg %p381
        $region90: #{transformer_scorer_forward.1} parent=47 // pred_check_branch
          %842 = sbr.rel (%p840) target = $region92
        $region91: #{transformer_scorer_forward.1} parent=47 // pred_region
          %s843 = sand.u32 %s47, 1
          %s844 = scalar_lea.sflag [#allocation12], %s843
          %s845 = sand.u32 %s371, 1
          %s846 = smul.addr %s845, 128
          %s847 = scalar_lea.vmem [#allocation13], %s846
          %s849 = ssub.s32 2048, 2048
          %850 = vsyncadd %s844, %s849
          %s851 = smul.addr %s55, 32
          %s852 = smul.addr %s851, 64
          %s853 = scalar_lea.hbm %s12, %s852
          %s854 = sshll.u32 %s847, 4
          %s855 = int_to_ptr.vmem [resolvable:$true] %s854
          %860 = dma.hbm_to_vmem [thread:$0]  %s853, 2048, %s855, %s844, 64, 64, 4
        $region92: #{transformer_scorer_forward.1} parent=47 // pred_fallthru
          _
        // Predicated region
        $region93: #{transformer_scorer_forward.1} parent=47 // pred_check
          %p861 = pneg %p407
        $region94: #{transformer_scorer_forward.1} parent=47 // pred_check_branch
          %863 = sbr.rel (%p861) target = $region96
        $region95: #{transformer_scorer_forward.1} parent=47 // pred_region
          %s864 = sand.u32 %s47, 1
          %s865 = scalar_lea.sflag [#allocation15], %s864
          %s866 = sand.u32 %s397, 1
          %s867 = scalar_lea.vmem [#allocation14], %s866
          %s869 = ssub.s32 16, 16
          %870 = vsyncadd %s865, %s869
          %s871 = smul.addr %s55, 16
          %s872 = scalar_lea.hbm %s13, %s871
          %s874 = sshll.u32 %s867, 4
          %s875 = int_to_ptr.vmem [resolvable:$true] %s874
          %877 = dma.hbm_to_vmem [thread:$0]  %s872, 16, %s875, %s865
        $region96: #{transformer_scorer_forward.1} parent=47 // pred_fallthru
          _
        // Predicated region
        $region97: #{transformer_scorer_forward.1} parent=47 // pred_check
          %p878 = pneg %p433
        $region98: #{transformer_scorer_forward.1} parent=47 // pred_check_branch
          %880 = sbr.rel (%p878) target = $region100
        $region99: #{transformer_scorer_forward.1} parent=47 // pred_region
          %p881 = scmp.lt.s32.totalorder %s55, 1
          %s882 = scalar_select %p881, %s55, 1
          %s883 = scalar_lea.vmem %s14, %s882
        $region100: #{transformer_scorer_forward.1} parent=47 // pred_fallthru
          _
        // Predicated region
        $region101: #{transformer_scorer_forward.1} parent=47 // pred_check
          %p884 = pneg %p459
        $region102: #{transformer_scorer_forward.1} parent=47 // pred_check_branch
          %886 = sbr.rel (%p884) target = $region104
        $region103: #{transformer_scorer_forward.1} parent=47 // pred_region
          %p887 = scmp.lt.s32.totalorder %s55, 1
          %s888 = scalar_select %p887, %s55, 1
          %s889 = scalar_lea.vmem %s15, %s888
        $region104: #{transformer_scorer_forward.1} parent=47 // pred_fallthru
          _
      $region48: #{transformer_scorer_forward.1} parent=5 // pred_fallthru
        _
      %p890 = scmp.le.s32.totalorder 1, %s47
      %p891 = scmp.lt.s32.totalorder %s47, 5
      %p892 = pnand %p890, %p891
      %p893 = pneg %p892
      // Predicated region
      $region105: #{transformer_scorer_forward.1} parent=5 // pred_check
        _
      $region106: #{transformer_scorer_forward.1} parent=5 // pred_check_branch
        %895 = sbr.rel (%p892) target = $region108
      $region107: #{transformer_scorer_forward.1} parent=5 // pred_region
        %s896 = ssub.s32 %s47, 1
        // Predicated region
        $region109: #{transformer_scorer_forward.1} parent=107 // pred_check
          %p897 = pneg %p153
        $region110: #{transformer_scorer_forward.1} parent=107 // pred_check_branch
          %899 = sbr.rel (%p897) target = $region112
        $region111: #{transformer_scorer_forward.1} parent=107 // pred_region
          %900 = dma.done [#allocation3], 16
        $region112: #{transformer_scorer_forward.1} parent=107 // pred_fallthru
          _
        %s901 = sand.u32 %s52, 1
        %s902 = scalar_lea.sflag [#allocation6], %s901
        %s903 = sand.u32 %s166, 1
        %s904 = smul.addr %s903, 192
        %s905 = scalar_lea.vmem [#allocation5], %s904
        // Predicated region
        $region113: #{transformer_scorer_forward.1} parent=107 // pred_check
          %p906 = pneg %p179
        $region114: #{transformer_scorer_forward.1} parent=107 // pred_check_branch
          %908 = sbr.rel (%p906) target = $region116
        $region115: #{transformer_scorer_forward.1} parent=107 // pred_region
          %909 = dma.done %s902, 3072
        $region116: #{transformer_scorer_forward.1} parent=107 // pred_fallthru
          _
        %s910 = sand.u32 %s52, 1
        %s911 = scalar_lea.sflag [#allocation6], %s910
        %s912 = sand.u32 %s218, 1
        %s913 = smul.addr %s912, 64
        %s914 = scalar_lea.vmem [#allocation7], %s913
        // Predicated region
        $region117: #{transformer_scorer_forward.1} parent=107 // pred_check
          %p915 = pneg %p231
        $region118: #{transformer_scorer_forward.1} parent=107 // pred_check_branch
          %917 = sbr.rel (%p915) target = $region120
        $region119: #{transformer_scorer_forward.1} parent=107 // pred_region
          %918 = dma.done %s911, 1024
        $region120: #{transformer_scorer_forward.1} parent=107 // pred_fallthru
          _
        %s919 = sand.u32 %s52, 1
        %s920 = scalar_lea.sflag [#allocation9], %s919
        %s921 = sand.u32 %s244, 1
        %s922 = scalar_lea.vmem [#allocation8], %s921
        // Predicated region
        $region121: #{transformer_scorer_forward.1} parent=107 // pred_check
          %p923 = pneg %p257
        $region122: #{transformer_scorer_forward.1} parent=107 // pred_check_branch
          %925 = sbr.rel (%p923) target = $region124
        $region123: #{transformer_scorer_forward.1} parent=107 // pred_region
          %926 = dma.done %s920, 16
        $region124: #{transformer_scorer_forward.1} parent=107 // pred_fallthru
          _
        %s927 = sand.u32 %s52, 1
        %s928 = scalar_lea.sflag [#allocation9], %s927
        %s929 = sand.u32 %s270, 1
        %s930 = scalar_lea.vmem [#allocation10], %s929
        // Predicated region
        $region125: #{transformer_scorer_forward.1} parent=107 // pred_check
          %p931 = pneg %p283
        $region126: #{transformer_scorer_forward.1} parent=107 // pred_check_branch
          %933 = sbr.rel (%p931) target = $region128
        $region127: #{transformer_scorer_forward.1} parent=107 // pred_region
          %934 = dma.done %s928, 16
        $region128: #{transformer_scorer_forward.1} parent=107 // pred_fallthru
          _
        %s935 = sand.u32 %s52, 1
        %s936 = scalar_lea.sflag [#allocation12], %s935
        %s937 = sand.u32 %s296, 1
        %s938 = scalar_lea.vmem [#allocation11], %s937
        // Predicated region
        $region129: #{transformer_scorer_forward.1} parent=107 // pred_check
          %p939 = pneg %p309
        $region130: #{transformer_scorer_forward.1} parent=107 // pred_check_branch
          %941 = sbr.rel (%p939) target = $region132
        $region131: #{transformer_scorer_forward.1} parent=107 // pred_region
          %942 = dma.done %s936, 16
        $region132: #{transformer_scorer_forward.1} parent=107 // pred_fallthru
          _
        %s943 = sand.u32 %s52, 1
        %s944 = scalar_lea.sflag [#allocation12], %s943
        %s945 = sand.u32 %s374, 1
        %s946 = smul.addr %s945, 128
        %s947 = scalar_lea.vmem [#allocation13], %s946
        // Predicated region
        $region133: #{transformer_scorer_forward.1} parent=107 // pred_check
          %p948 = pneg %p387
        $region134: #{transformer_scorer_forward.1} parent=107 // pred_check_branch
          %950 = sbr.rel (%p948) target = $region136
        $region135: #{transformer_scorer_forward.1} parent=107 // pred_region
          %951 = dma.done %s944, 2048
        $region136: #{transformer_scorer_forward.1} parent=107 // pred_fallthru
          _
        %s952 = sand.u32 %s52, 1
        %s953 = scalar_lea.sflag [#allocation15], %s952
        %s954 = sand.u32 %s400, 1
        %s955 = scalar_lea.vmem [#allocation14], %s954
        // Predicated region
        $region137: #{transformer_scorer_forward.1} parent=107 // pred_check
          %p956 = pneg %p413
        $region138: #{transformer_scorer_forward.1} parent=107 // pred_check_branch
          %958 = sbr.rel (%p956) target = $region140
        $region139: #{transformer_scorer_forward.1} parent=107 // pred_region
          %959 = dma.done %s953, 16
        $region140: #{transformer_scorer_forward.1} parent=107 // pred_fallthru
          _
        // Predicated region
        $region141: #{transformer_scorer_forward.1} parent=107 // pred_check
          %p960 = pneg %p528
        $region142: #{transformer_scorer_forward.1} parent=107 // pred_check_branch
          %962 = sbr.rel (%p960) target = $region144
        $region143: #{transformer_scorer_forward.1} parent=107 // pred_region
          %963 = dma.done [#allocation15], 1024
        $region144: #{transformer_scorer_forward.1} parent=107 // pred_fallthru
          _
        // Predicated region
        $region145: #{transformer_scorer_forward.1} parent=107 // pred_check
          %p964 = pneg %p570
        $region146: #{transformer_scorer_forward.1} parent=107 // pred_check_branch
          %966 = sbr.rel (%p964) target = $region148
        $region147: #{transformer_scorer_forward.1} parent=107 // pred_region
          %967 = dma.done [#allocation18], 16
        $region148: #{transformer_scorer_forward.1} parent=107 // pred_fallthru
          _
        %p968 = scmp.lt.s32.totalorder %s56, 1
        %s969 = scalar_select %p968, %s56, 1
        %s970 = smul.addr %s969, 8
        %s971 = scalar_lea.vmem %s0, %s970
        %p972 = pneg %p85
        %p973 = pneg %p82
        %p974 = scmp.lt.s32.totalorder %s56, 1
        %s975 = scalar_select %p974, %s56, 1
        %s976 = scalar_lea.vmem %s1, %s975
        %p977 = pneg %p111
        %p978 = pneg %p108
        %p979 = pneg %p132
        %p980 = pneg %p129
        %p981 = pneg %p153
        %p982 = pneg %p150
        %s983 = sand.u32 %s52, 1
        %s984 = scalar_lea.sflag [#allocation6], %s983
        %s985 = sand.u32 %s166, 1
        %s986 = smul.addr %s985, 192
        %s987 = scalar_lea.vmem [#allocation5], %s986
        %p988 = pneg %p179
        %p989 = pneg %p176
        %p990 = scmp.lt.s32.totalorder %s57, 1
        %s991 = scalar_select %p990, %s57, 1
        %s992 = smul.addr %s991, 3
        %s993 = scalar_lea.vmem %s5, %s992
        %p994 = pneg %p205
        %p995 = pneg %p202
        %s996 = sand.u32 %s52, 1
        %s997 = scalar_lea.sflag [#allocation6], %s996
        %s998 = sand.u32 %s218, 1
        %s999 = smul.addr %s998, 64
        %s1000 = scalar_lea.vmem [#allocation7], %s999
        %p1001 = pneg %p231
        %p1002 = pneg %p228
        %s1003 = sand.u32 %s52, 1
        %s1004 = scalar_lea.sflag [#allocation9], %s1003
        %s1005 = sand.u32 %s244, 1
        %s1006 = scalar_lea.vmem [#allocation8], %s1005
        %p1007 = pneg %p257
        %p1008 = pneg %p254
        %s1009 = sand.u32 %s52, 1
        %s1010 = scalar_lea.sflag [#allocation9], %s1009
        %s1011 = sand.u32 %s270, 1
        %s1012 = scalar_lea.vmem [#allocation10], %s1011
        %p1013 = pneg %p283
        %p1014 = pneg %p280
        %s1015 = sand.u32 %s52, 1
        %s1016 = scalar_lea.sflag [#allocation12], %s1015
        %s1017 = sand.u32 %s296, 1
        %s1018 = scalar_lea.vmem [#allocation11], %s1017
        %p1019 = pneg %p309
        %p1020 = pneg %p306
        %p1021 = scmp.lt.s32.totalorder %s57, 1
        %s1022 = scalar_select %p1021, %s57, 1
        %s1023 = smul.addr %s1022, 32
        %s1024 = smul.addr %s1023, 4
        %s1025 = scalar_lea.vmem %s10, %s1024
        %p1026 = pneg %p335
        %p1027 = pneg %p332
        %p1028 = scmp.lt.s32.totalorder %s57, 1
        %s1029 = scalar_select %p1028, %s57, 1
        %s1030 = smul.addr %s1029, 2
        %s1031 = scalar_lea.vmem %s11, %s1030
        %p1032 = pneg %p361
        %p1033 = pneg %p358
        %s1034 = sand.u32 %s52, 1
        %s1035 = scalar_lea.sflag [#allocation12], %s1034
        %s1036 = sand.u32 %s374, 1
        %s1037 = smul.addr %s1036, 128
        %s1038 = scalar_lea.vmem [#allocation13], %s1037
        %p1039 = pneg %p387
        %p1040 = pneg %p384
        %s1041 = sand.u32 %s52, 1
        %s1042 = scalar_lea.sflag [#allocation15], %s1041
        %s1043 = sand.u32 %s400, 1
        %s1044 = scalar_lea.vmem [#allocation14], %s1043
        %p1045 = pneg %p413
        %p1046 = pneg %p410
        %p1047 = scmp.lt.s32.totalorder %s57, 1
        %s1048 = scalar_select %p1047, %s57, 1
        %s1049 = scalar_lea.vmem %s14, %s1048
        %p1050 = pneg %p439
        %p1051 = pneg %p436
        %p1052 = scmp.lt.s32.totalorder %s57, 1
        %s1053 = scalar_select %p1052, %s57, 1
        %s1054 = scalar_lea.vmem %s15, %s1053
        %p1055 = pneg %p465
        %p1056 = pneg %p462
        %p1057 = pneg %p486
        %p1058 = pneg %p483
        %p1059 = pneg %p507
        %p1060 = pneg %p504
        %p1061 = pneg %p528
        %p1062 = pneg %p525
        %p1063 = pneg %p549
        %p1064 = pneg %p546
        %p1065 = pneg %p570
        %p1066 = pneg %p567
        %p1067 = pneg %p591
        %p1068 = pneg %p588
        %p1069 = pneg %p617
        %p1070 = pneg %p614
        %s1071 = sand.u32 %s604, 1
        %s1072 = scalar_lea.sflag [#allocation4], %s1071
        %s1073 = sand.u32 %s604, 1
        %s1074 = smul.addr %s1073, 8
        %s1075 = scalar_lea.vmem [#allocation19], %s1074
        %p1076 = pneg %p643
        %p1077 = pneg %p640
        %p1078 = scmp.lt.s32.totalorder %s56, 1
        %s1079 = scalar_select %p1078, %s56, 1
        %s1080 = scalar_lea.vmem %s23, %s1079
        %p1081 = scmp.lt.s32.totalorder %s56, 1
        %s1082 = scalar_select %p1081, %s56, 1
        %s1083 = smul.addr %s1082, 8
        %s1084 = scalar_lea.vmem %s0, %s1083
        %p1085 = scmp.lt.s32.totalorder %s56, 1
        %s1086 = scalar_select %p1085, %s56, 1
        %s1087 = scalar_lea.vmem %s1, %s1086
        %p1088 = scmp.lt.s32.totalorder %s57, 1
        %s1089 = scalar_select %p1088, %s57, 1
        %s1090 = smul.addr %s1089, 3
        %s1091 = scalar_lea.vmem %s5, %s1090
        %p1092 = scmp.lt.s32.totalorder %s57, 1
        %s1093 = scalar_select %p1092, %s57, 1
        %s1094 = smul.addr %s1093, 32
        %s1095 = smul.addr %s1094, 4
        %s1096 = scalar_lea.vmem %s10, %s1095
        %p1097 = scmp.lt.s32.totalorder %s57, 1
        %s1098 = scalar_select %p1097, %s57, 1
        %s1099 = smul.addr %s1098, 2
        %s1100 = scalar_lea.vmem %s11, %s1099
        %p1101 = scmp.lt.s32.totalorder %s57, 1
        %s1102 = scalar_select %p1101, %s57, 1
        %s1103 = scalar_lea.vmem %s14, %s1102
        %p1104 = scmp.lt.s32.totalorder %s57, 1
        %s1105 = scalar_select %p1104, %s57, 1
        %s1106 = scalar_lea.vmem %s15, %s1105
        %p1107 = scmp.lt.s32.totalorder %s56, 1
        %s1108 = scalar_select %p1107, %s56, 1
        %s1109 = scalar_lea.vmem %s23, %s1108
        %p1111 = scmp.eq.s32.totalorder %s57, 0
        // Predicated region
        $region149: #{transformer_scorer_forward.1} parent=107 // pred_check
          %p1112 = pneg %p1111
        $region150: #{transformer_scorer_forward.1} parent=107 // pred_check_branch
          %1114 = sbr.rel (%p1112) target = $region152
        $region151: #{transformer_scorer_forward.1} parent=107 // pred_region
          %v1115 = vld [vmem:[%s1084] sm:$0xff]
          %v1116 = vld [vmem:[%s2] sm:$0x1]
          %v1117 = vld [vmem:[#allocation2] sm:$0x1]
          %1118 = vadd.xlane.f32.xlu0 %v1115
          %v1119 = vpop.xlane.xlu0 %1118
          %v1120 = vrcp.pop 128.0
          %v1121 = vmul.f32 %v1119, %v1120
          %v1122 = vsub.f32 %v1115, %v1121
          %v1123 = vmul.f32 %v1122, %v1122
          %1124 = vadd.xlane.f32.xlu0 %v1123
          %v1125 = vpop.xlane.xlu0 %1124
          %v1126 = vmul.f32 %v1125, %v1120
          %v1127 = vadd.f32 %v1126, 1e-12
          %v1128 = vrsqrt.pop %v1127
          %v1129 = vmul.f32 %v1122, %v1128
          %v1131 = vlaneseq
          %v1132 = vshrl.u32 %v1131, 7
          %v1133 = vsub.s32 0, %v1132
          %v1134 = vrot.slane %v1116, %v1133
          %v1136 = vmul.f32 %v1129, %v1134
          %v1138 = vlaneseq
          %v1139 = vshrl.u32 %v1138, 7
          %v1140 = vsub.s32 0, %v1139
          %v1141 = vrot.slane %v1117, %v1140
          %v1143 = vadd.f32 %v1136, %v1141
          %1144 = vst [vmem:[%s1075] sm:$0xff] %v1143
        $region152: #{transformer_scorer_forward.1} parent=107 // pred_fallthru
          _
        %v1145 = vld [vmem:[%s1075] sm:$0xff]
        %v1146 = vld [vmem:[%s1087] sm:$0x1]
        %vm1147 = vcmp.gt.f32.partialorder %v1146, 0.5
        %v1148 = vsel %vm1147, 0.0, -1e+09
        %v1149 = vpack.c.bf16 %v1145, %v1145
        %v1150 = vld [vmem:[%s905] sm:$0xff]
        %v1151 = vld [vmem:[%s905 + $0x8] sm:$0xf]
        %v1152 = vld [vmem:[%s905 + $0xc] sm:$0xff]
        %v1153 = vld [vmem:[%s905 + $0x14] sm:$0xf]
        %v1154 = vld [vmem:[%s905 + $0x18] sm:$0xff]
        %v1155 = vld [vmem:[%s905 + $0x20] sm:$0xf]
        %v1156 = vld [vmem:[%s905 + $0x24] sm:$0xff]
        %v1157 = vld [vmem:[%s905 + $0x2c] sm:$0xf]
        %v1158 = vld [vmem:[%s905 + $0x30] sm:$0xff]
        %v1159 = vld [vmem:[%s905 + $0x38] sm:$0xf]
        %v1160 = vld [vmem:[%s905 + $0x3c] sm:$0xff]
        %v1161 = vld [vmem:[%s905 + $0x44] sm:$0xf]
        %v1162 = vld [vmem:[%s905 + $0x48] sm:$0xff]
        %v1163 = vld [vmem:[%s905 + $0x50] sm:$0xf]
        %v1164 = vld [vmem:[%s905 + $0x54] sm:$0xff]
        %v1165 = vld [vmem:[%s905 + $0x5c] sm:$0xf]
        %v1166 = vld [vmem:[%s905 + $0x60] sm:$0xff]
        %v1167 = vld [vmem:[%s905 + $0x68] sm:$0xf]
        %v1168 = vld [vmem:[%s905 + $0x6c] sm:$0xff]
        %v1169 = vld [vmem:[%s905 + $0x74] sm:$0xf]
        %v1170 = vld [vmem:[%s905 + $0x78] sm:$0xff]
        %v1171 = vld [vmem:[%s905 + $0x80] sm:$0xf]
        %v1172 = vld [vmem:[%s905 + $0x84] sm:$0xff]
        %v1173 = vld [vmem:[%s905 + $0x8c] sm:$0xf]
        %v1174 = vld [vmem:[%s905 + $0x90] sm:$0xff]
        %v1175 = vld [vmem:[%s905 + $0x98] sm:$0xf]
        %v1176 = vld [vmem:[%s905 + $0x9c] sm:$0xff]
        %v1177 = vld [vmem:[%s905 + $0xa4] sm:$0xf]
        %v1178 = vld [vmem:[%s905 + $0xa8] sm:$0xff]
        %v1179 = vld [vmem:[%s905 + $0xb0] sm:$0xf]
        %v1180 = vld [vmem:[%s905 + $0xb4] sm:$0xff]
        %v1181 = vld [vmem:[%s905 + $0xbc] sm:$0xf]
        %v1182 = vld [vmem:[%s1091] sm:$0x7]
        %v1184 = vlaneseq
        %v1185 = vshrl.u32 %v1184, 7
        %v1186 = vsub.s32 0, %v1185
        %v1187 = vrot.slane %v1182, %v1186
        %v1188 = vlaneseq
        %v1189 = vshrl.u32 %v1188, 7
        %v1190 = vsub.s32 1, %v1189
        %v1191 = vrot.slane %v1182, %v1190
        %v1192 = vlaneseq
        %v1193 = vshrl.u32 %v1192, 7
        %v1194 = vsub.s32 2, %v1193
        %v1195 = vrot.slane %v1182, %v1194
        %v1231 = vunpack.c.l.b16 %v1150
        %v1232 = vunpack.c.h.b16 %v1150
        %v1233 = vunpack.c.l.b16 %v1151
        %v1234 = vunpack.c.l.b16 %v1152
        %v1235 = vunpack.c.h.b16 %v1152
        %v1236 = vunpack.c.l.b16 %v1153
        %v1237 = vunpack.c.l.b16 %v1154
        %v1238 = vunpack.c.h.b16 %v1154
        %v1239 = vunpack.c.l.b16 %v1155
        %v1240 = vunpack.c.l.b16 %v1156
        %v1241 = vunpack.c.h.b16 %v1156
        %v1242 = vunpack.c.l.b16 %v1157
        %v1243 = vunpack.c.l.b16 %v1158
        %v1244 = vunpack.c.h.b16 %v1158
        %v1245 = vunpack.c.l.b16 %v1159
        %v1246 = vunpack.c.l.b16 %v1160
        %v1247 = vunpack.c.h.b16 %v1160
        %v1248 = vunpack.c.l.b16 %v1161
        %v1249 = vunpack.c.l.b16 %v1162
        %v1250 = vunpack.c.h.b16 %v1162
        %v1251 = vunpack.c.l.b16 %v1163
        %v1252 = vunpack.c.l.b16 %v1164
        %v1253 = vunpack.c.h.b16 %v1164
        %v1254 = vunpack.c.l.b16 %v1165
        %v1255 = vunpack.c.l.b16 %v1166
        %v1256 = vunpack.c.h.b16 %v1166
        %v1257 = vunpack.c.l.b16 %v1167
        %v1258 = vunpack.c.l.b16 %v1168
        %v1259 = vunpack.c.h.b16 %v1168
        %v1260 = vunpack.c.l.b16 %v1169
        %v1261 = vunpack.c.l.b16 %v1170
        %v1262 = vunpack.c.h.b16 %v1170
        %v1263 = vunpack.c.l.b16 %v1171
        %v1264 = vunpack.c.l.b16 %v1172
        %v1265 = vunpack.c.h.b16 %v1172
        %v1266 = vunpack.c.l.b16 %v1173
        %v1267 = vunpack.c.l.b16 %v1174
        %v1268 = vunpack.c.h.b16 %v1174
        %v1269 = vunpack.c.l.b16 %v1175
        %v1270 = vunpack.c.l.b16 %v1176
        %v1271 = vunpack.c.h.b16 %v1176
        %v1272 = vunpack.c.l.b16 %v1177
        %v1273 = vunpack.c.l.b16 %v1178
        %v1274 = vunpack.c.h.b16 %v1178
        %v1275 = vunpack.c.l.b16 %v1179
        %v1276 = vunpack.c.l.b16 %v1180
        %v1277 = vunpack.c.h.b16 %v1180
        %v1278 = vunpack.c.l.b16 %v1181
        %v1279 = vpack.c.b16 %v1234, %v1231
        %v1280 = vpack.c.b16 %v1235, %v1232
        %v1281 = vpack.c.b16 %v1236, %v1233
        %v1282 = vpack.c.b16 %v1240, %v1237
        %v1283 = vpack.c.b16 %v1241, %v1238
        %v1284 = vpack.c.b16 %v1242, %v1239
        %v1285 = vpack.c.b16 %v1246, %v1243
        %v1286 = vpack.c.b16 %v1247, %v1244
        %v1287 = vpack.c.b16 %v1248, %v1245
        %v1288 = vpack.c.b16 %v1252, %v1249
        %v1289 = vpack.c.b16 %v1253, %v1250
        %v1290 = vpack.c.b16 %v1254, %v1251
        %v1291 = vpack.c.b16 %v1258, %v1255
        %v1292 = vpack.c.b16 %v1259, %v1256
        %v1293 = vpack.c.b16 %v1260, %v1257
        %v1294 = vpack.c.b16 %v1264, %v1261
        %v1295 = vpack.c.b16 %v1265, %v1262
        %v1296 = vpack.c.b16 %v1266, %v1263
        %v1297 = vpack.c.b16 %v1270, %v1267
        %v1298 = vpack.c.b16 %v1271, %v1268
        %v1299 = vpack.c.b16 %v1272, %v1269
        %v1300 = vpack.c.b16 %v1276, %v1273
        %v1301 = vpack.c.b16 %v1277, %v1274
        %v1302 = vpack.c.b16 %v1278, %v1275
        %1327 = vmatprep.subr.bf16.mxu0 %v1280
        %1328 = vmatpush1.bf16.msra.mxu0 %v1279
        %1329 = vmatprep.subr.bf16.mxu0 %v1283
        %1330 = vmatpush1.bf16.msra.mxu0 %v1282
        %1331 = vmatprep.subr.bf16.mxu0 %v1286
        %1332 = vmatpush1.bf16.msra.mxu0 %v1285
        %1333 = vmatprep.subr.bf16.mxu0 %v1289
        %1334 = vmatpush1.bf16.msra.mxu0 %v1288
        %1335 = vmatprep.subr.bf16.mxu0 %v1292
        %1336 = vmatpush1.bf16.msra.mxu0 %v1291
        %1337 = vmatprep.subr.bf16.mxu0 %v1295
        %1338 = vmatpush1.bf16.msra.mxu0 %v1294
        %1339 = vmatprep.subr.bf16.mxu0 %v1298
        %1340 = vmatpush1.bf16.msra.mxu0 %v1297
        %1341 = vmatprep.subr.bf16.mxu0 %v1301
        %1342 = vmatpush1.bf16.msra.mxu0 %v1300
        %1343 = vmatprep.subr.bf16.mxu0 0
        %1344 = vmatpush1.bf16.msra.mxu0 0
        %1345 = vmatprep.subr.bf16.mxu0 0
        %1346 = vmatpush1.bf16.msra.mxu0 0
        %1347 = vmatprep.subr.bf16.mxu0 0
        %1348 = vmatpush1.bf16.msra.mxu0 0
        %1349 = vmatprep.subr.bf16.mxu0 0
        %1350 = vmatpush1.bf16.msra.mxu0 0
        %1351 = vmatprep.subr.bf16.mxu0 0
        %1352 = vmatpush1.bf16.msra.mxu0 0
        %1353 = vmatprep.subr.bf16.mxu0 0
        %1354 = vmatpush1.bf16.msra.mxu0 0
        %1355 = vmatprep.subr.bf16.mxu0 0
        %1356 = vmatpush1.bf16.msra.mxu0 0
        %1357 = vmatprep.subr.bf16.mxu0 0
        %1358 = vmatpush1.bf16.msra.mxu0 0
        %1359 = vmatprep.mubr.bf16.mxu0 0
        %1360 = vmatmul.mubr.bf16.gmra.mrb[0].mxu0 %v1149
        %v1361 = vpop.f32.mrb[0].mxu0
        %v1362 = vadd.f32 %v1187, %v1361
        %v1363 = vpop.f32.mrb[0].mxu0
        %v1364 = vadd.f32 %v1191, %v1363
        %v1365 = vpop.f32.mrb[0].mxu0
        %v1366 = vpop.f32.mrb[0].mxu0
        %1367 = vdwg.mxu0
        %1368 = vmatprep.subr.bf16.mxu0 0
        %1369 = vmatpush1.bf16.msra.mxu0 %v1281
        %1370 = vmatprep.subr.bf16.mxu0 0
        %1371 = vmatpush1.bf16.msra.mxu0 %v1284
        %1372 = vmatprep.subr.bf16.mxu0 0
        %1373 = vmatpush1.bf16.msra.mxu0 %v1287
        %1374 = vmatprep.subr.bf16.mxu0 0
        %1375 = vmatpush1.bf16.msra.mxu0 %v1290
        %1376 = vmatprep.subr.bf16.mxu0 0
        %1377 = vmatpush1.bf16.msra.mxu0 %v1293
        %1378 = vmatprep.subr.bf16.mxu0 0
        %1379 = vmatpush1.bf16.msra.mxu0 %v1296
        %1380 = vmatprep.subr.bf16.mxu0 0
        %1381 = vmatpush1.bf16.msra.mxu0 %v1299
        %1382 = vmatprep.subr.bf16.mxu0 0
        %1383 = vmatpush1.bf16.msra.mxu0 %v1302
        %1384 = vmatprep.subr.bf16.mxu0 0
        %1385 = vmatpush1.bf16.msra.mxu0 0
        %1386 = vmatprep.subr.bf16.mxu0 0
        %1387 = vmatpush1.bf16.msra.mxu0 0
        %1388 = vmatprep.subr.bf16.mxu0 0
        %1389 = vmatpush1.bf16.msra.mxu0 0
        %1390 = vmatprep.subr.bf16.mxu0 0
        %1391 = vmatpush1.bf16.msra.mxu0 0
        %1392 = vmatprep.subr.bf16.mxu0 0
        %1393 = vmatpush1.bf16.msra.mxu0 0
        %1394 = vmatprep.subr.bf16.mxu0 0
        %1395 = vmatpush1.bf16.msra.mxu0 0
        %1396 = vmatprep.subr.bf16.mxu0 0
        %1397 = vmatpush1.bf16.msra.mxu0 0
        %1398 = vmatprep.subr.bf16.mxu0 0
        %1399 = vmatpush1.bf16.msra.mxu0 0
        %1400 = vmatprep.mubr.bf16.mxu0 0
        %1401 = vmatmul.mubr.bf16.gmra.mrb[0].mxu0 %v1149
        %v1402 = vpop.f32.mrb[0].mxu0
        %v1403 = vadd.f32 %v1195, %v1402
        %v1404 = vpop.f32.mrb[0].mxu0
        %v1405 = vpop.f32.mrb[0].mxu0
        %v1406 = vpop.f32.mrb[0].mxu0
        %1407 = vdwg.mxu0
        %v1408 = vmul.f32 %v1362, 0.17677669
        %1410 = vrot.lane.b32.xlu0 %v1408, 96
        %v1411 = vpop.permute.xlu0 %1410
        %1413 = vrot.lane.b32.xlu0 %v1408, 64
        %v1414 = vpop.permute.xlu0 %1413
        %1416 = vrot.lane.b32.xlu0 %v1408, 32
        %v1417 = vpop.permute.xlu0 %1416
        %v1419 = vcombine.low %v1408, %v1414
        %v1420 = vcombine.high %v1408, %v1414
        %v1422 = vunpack.c.l.s4 1983009808
        %v1423 = vunpack.c.0.s8 %v1422
        %v1424 = vlaneseq
        %v1425 = vshrl.u32 %v1424, 7
        %v1426 = vsub.s32 %v1423, %v1425
        %v1427 = vrot.slane %v1419, %v1426
        %v1429 = vunpack.c.l.s4 1983009808
        %v1430 = vunpack.c.0.s8 %v1429
        %v1431 = vlaneseq
        %v1432 = vshrl.u32 %v1431, 7
        %v1433 = vsub.s32 %v1430, %v1432
        %v1434 = vrot.slane %v1420, %v1433
        %v1435 = vcombine.low %v1411, %v1417
        %v1436 = vcombine.high %v1411, %v1417
        %v1438 = vunpack.c.l.s4 1983009808
        %v1439 = vunpack.c.0.s8 %v1438
        %v1440 = vlaneseq
        %v1441 = vshrl.u32 %v1440, 7
        %v1442 = vsub.s32 %v1439, %v1441
        %v1443 = vrot.slane %v1435, %v1442
        %v1445 = vunpack.c.l.s4 1983009808
        %v1446 = vunpack.c.0.s8 %v1445
        %v1447 = vlaneseq
        %v1448 = vshrl.u32 %v1447, 7
        %v1449 = vsub.s32 %v1446, %v1448
        %v1450 = vrot.slane %v1436, %v1449
        %v1451 = vcombine.low %v1427, %v1443
        %v1452 = vcombine.high %v1427, %v1443
        %v1454 = vunpack.c.l.s4 1934713408
        %v1455 = vunpack.c.0.s8 %v1454
        %v1456 = vlaneseq
        %v1457 = vshrl.u32 %v1456, 7
        %v1458 = vsub.s32 %v1455, %v1457
        %v1459 = vrot.slane %v1451, %v1458
        %v1461 = vunpack.c.l.s4 1934713408
        %v1462 = vunpack.c.0.s8 %v1461
        %v1463 = vlaneseq
        %v1464 = vshrl.u32 %v1463, 7
        %v1465 = vsub.s32 %v1462, %v1464
        %v1466 = vrot.slane %v1452, %v1465
        %v1467 = vcombine.low %v1434, %v1450
        %v1468 = vcombine.high %v1434, %v1450
        %v1470 = vunpack.c.l.s4 1934713408
        %v1471 = vunpack.c.0.s8 %v1470
        %v1472 = vlaneseq
        %v1473 = vshrl.u32 %v1472, 7
        %v1474 = vsub.s32 %v1471, %v1473
        %v1475 = vrot.slane %v1467, %v1474
        %v1477 = vunpack.c.l.s4 1934713408
        %v1478 = vunpack.c.0.s8 %v1477
        %v1479 = vlaneseq
        %v1480 = vshrl.u32 %v1479, 7
        %v1481 = vsub.s32 %v1478, %v1480
        %v1482 = vrot.slane %v1468, %v1481
        %v1483 = vcombine.high %v1459, 0.0
        %v1484 = vcombine.high %v1466, 0.0
        %v1485 = vcombine.high %v1475, 0.0
        %v1486 = vcombine.high %v1482, 0.0
        %v1487 = vcombine.low %v1459, %v1466
        %v1489 = vunpack.c.l.s4 1983009808
        %v1490 = vunpack.c.0.s8 %v1489
        %v1491 = vlaneseq
        %v1492 = vshrl.u32 %v1491, 7
        %v1493 = vsub.s32 %v1490, %v1492
        %v1494 = vrot.slane %v1487, %v1493
        %v1495 = vcombine.low %v1483, %v1484
        %v1497 = vunpack.c.l.s4 1983009808
        %v1498 = vunpack.c.0.s8 %v1497
        %v1499 = vlaneseq
        %v1500 = vshrl.u32 %v1499, 7
        %v1501 = vsub.s32 %v1498, %v1500
        %v1502 = vrot.slane %v1495, %v1501
        %v1503 = vcombine.low %v1475, %v1482
        %v1505 = vunpack.c.l.s4 1983009808
        %v1506 = vunpack.c.0.s8 %v1505
        %v1507 = vlaneseq
        %v1508 = vshrl.u32 %v1507, 7
        %v1509 = vsub.s32 %v1506, %v1508
        %v1510 = vrot.slane %v1503, %v1509
        %v1511 = vcombine.low %v1485, %v1486
        %v1513 = vunpack.c.l.s4 1983009808
        %v1514 = vunpack.c.0.s8 %v1513
        %v1515 = vlaneseq
        %v1516 = vshrl.u32 %v1515, 7
        %v1517 = vsub.s32 %v1514, %v1516
        %v1518 = vrot.slane %v1511, %v1517
        %v1519 = vcombine.low %v1494, %v1502
        %v1520 = vcombine.high %v1494, %v1502
        %v1522 = vunpack.c.l.s4 1934713408
        %v1523 = vunpack.c.0.s8 %v1522
        %v1524 = vlaneseq
        %v1525 = vshrl.u32 %v1524, 7
        %v1526 = vsub.s32 %v1523, %v1525
        %v1527 = vrot.slane %v1519, %v1526
        %v1529 = vunpack.c.l.s4 1934713408
        %v1530 = vunpack.c.0.s8 %v1529
        %v1531 = vlaneseq
        %v1532 = vshrl.u32 %v1531, 7
        %v1533 = vsub.s32 %v1530, %v1532
        %v1534 = vrot.slane %v1520, %v1533
        %v1535 = vcombine.low %v1510, %v1518
        %v1536 = vcombine.high %v1510, %v1518
        %v1538 = vunpack.c.l.s4 1934713408
        %v1539 = vunpack.c.0.s8 %v1538
        %v1540 = vlaneseq
        %v1541 = vshrl.u32 %v1540, 7
        %v1542 = vsub.s32 %v1539, %v1541
        %v1543 = vrot.slane %v1535, %v1542
        %v1545 = vunpack.c.l.s4 1934713408
        %v1546 = vunpack.c.0.s8 %v1545
        %v1547 = vlaneseq
        %v1548 = vshrl.u32 %v1547, 7
        %v1549 = vsub.s32 %v1546, %v1548
        %v1550 = vrot.slane %v1536, %v1549
        %v1551 = vcombine.low %v1527, %v1543
        %v1552 = vcombine.high %v1527, %v1543
        %v1553 = vcombine.low %v1534, %v1550
        %v1554 = vcombine.high %v1534, %v1550
        %v1555 = vpack.c.bf16 %v1551, %v1551
        %v1556 = vpack.c.bf16 %v1552, %v1552
        %v1557 = vpack.c.bf16 %v1553, %v1553
        %v1558 = vpack.c.bf16 %v1554, %v1554
        %1560 = vrot.lane.b32.xlu0 %v1364, 96
        %v1561 = vpop.permute.xlu0 %1560
        %1563 = vrot.lane.b32.xlu0 %v1364, 64
        %v1564 = vpop.permute.xlu0 %1563
        %1566 = vrot.lane.b32.xlu0 %v1364, 32
        %v1567 = vpop.permute.xlu0 %1566
        %v1569 = vcombine.low %v1364, %v1564
        %v1570 = vcombine.high %v1364, %v1564
        %v1572 = vunpack.c.l.s4 1983009808
        %v1573 = vunpack.c.0.s8 %v1572
        %v1574 = vlaneseq
        %v1575 = vshrl.u32 %v1574, 7
        %v1576 = vsub.s32 %v1573, %v1575
        %v1577 = vrot.slane %v1569, %v1576
        %v1579 = vunpack.c.l.s4 1983009808
        %v1580 = vunpack.c.0.s8 %v1579
        %v1581 = vlaneseq
        %v1582 = vshrl.u32 %v1581, 7
        %v1583 = vsub.s32 %v1580, %v1582
        %v1584 = vrot.slane %v1570, %v1583
        %v1585 = vcombine.low %v1561, %v1567
        %v1586 = vcombine.high %v1561, %v1567
        %v1588 = vunpack.c.l.s4 1983009808
        %v1589 = vunpack.c.0.s8 %v1588
        %v1590 = vlaneseq
        %v1591 = vshrl.u32 %v1590, 7
        %v1592 = vsub.s32 %v1589, %v1591
        %v1593 = vrot.slane %v1585, %v1592
        %v1595 = vunpack.c.l.s4 1983009808
        %v1596 = vunpack.c.0.s8 %v1595
        %v1597 = vlaneseq
        %v1598 = vshrl.u32 %v1597, 7
        %v1599 = vsub.s32 %v1596, %v1598
        %v1600 = vrot.slane %v1586, %v1599
        %v1601 = vcombine.low %v1577, %v1593
        %v1602 = vcombine.high %v1577, %v1593
        %v1604 = vunpack.c.l.s4 1934713408
        %v1605 = vunpack.c.0.s8 %v1604
        %v1606 = vlaneseq
        %v1607 = vshrl.u32 %v1606, 7
        %v1608 = vsub.s32 %v1605, %v1607
        %v1609 = vrot.slane %v1601, %v1608
        %v1611 = vunpack.c.l.s4 1934713408
        %v1612 = vunpack.c.0.s8 %v1611
        %v1613 = vlaneseq
        %v1614 = vshrl.u32 %v1613, 7
        %v1615 = vsub.s32 %v1612, %v1614
        %v1616 = vrot.slane %v1602, %v1615
        %v1617 = vcombine.low %v1584, %v1600
        %v1618 = vcombine.high %v1584, %v1600
        %v1620 = vunpack.c.l.s4 1934713408
        %v1621 = vunpack.c.0.s8 %v1620
        %v1622 = vlaneseq
        %v1623 = vshrl.u32 %v1622, 7
        %v1624 = vsub.s32 %v1621, %v1623
        %v1625 = vrot.slane %v1617, %v1624
        %v1627 = vunpack.c.l.s4 1934713408
        %v1628 = vunpack.c.0.s8 %v1627
        %v1629 = vlaneseq
        %v1630 = vshrl.u32 %v1629, 7
        %v1631 = vsub.s32 %v1628, %v1630
        %v1632 = vrot.slane %v1618, %v1631
        %v1633 = vcombine.high %v1609, 0.0
        %v1634 = vcombine.high %v1616, 0.0
        %v1635 = vcombine.high %v1625, 0.0
        %v1636 = vcombine.high %v1632, 0.0
        %v1637 = vcombine.low %v1609, %v1616
        %v1639 = vunpack.c.l.s4 1983009808
        %v1640 = vunpack.c.0.s8 %v1639
        %v1641 = vlaneseq
        %v1642 = vshrl.u32 %v1641, 7
        %v1643 = vsub.s32 %v1640, %v1642
        %v1644 = vrot.slane %v1637, %v1643
        %v1645 = vcombine.low %v1633, %v1634
        %v1647 = vunpack.c.l.s4 1983009808
        %v1648 = vunpack.c.0.s8 %v1647
        %v1649 = vlaneseq
        %v1650 = vshrl.u32 %v1649, 7
        %v1651 = vsub.s32 %v1648, %v1650
        %v1652 = vrot.slane %v1645, %v1651
        %v1653 = vcombine.low %v1625, %v1632
        %v1655 = vunpack.c.l.s4 1983009808
        %v1656 = vunpack.c.0.s8 %v1655
        %v1657 = vlaneseq
        %v1658 = vshrl.u32 %v1657, 7
        %v1659 = vsub.s32 %v1656, %v1658
        %v1660 = vrot.slane %v1653, %v1659
        %v1661 = vcombine.low %v1635, %v1636
        %v1663 = vunpack.c.l.s4 1983009808
        %v1664 = vunpack.c.0.s8 %v1663
        %v1665 = vlaneseq
        %v1666 = vshrl.u32 %v1665, 7
        %v1667 = vsub.s32 %v1664, %v1666
        %v1668 = vrot.slane %v1661, %v1667
        %v1669 = vcombine.low %v1644, %v1652
        %v1670 = vcombine.high %v1644, %v1652
        %v1672 = vunpack.c.l.s4 1934713408
        %v1673 = vunpack.c.0.s8 %v1672
        %v1674 = vlaneseq
        %v1675 = vshrl.u32 %v1674, 7
        %v1676 = vsub.s32 %v1673, %v1675
        %v1677 = vrot.slane %v1669, %v1676
        %v1679 = vunpack.c.l.s4 1934713408
        %v1680 = vunpack.c.0.s8 %v1679
        %v1681 = vlaneseq
        %v1682 = vshrl.u32 %v1681, 7
        %v1683 = vsub.s32 %v1680, %v1682
        %v1684 = vrot.slane %v1670, %v1683
        %v1685 = vcombine.low %v1660, %v1668
        %v1686 = vcombine.high %v1660, %v1668
        %v1688 = vunpack.c.l.s4 1934713408
        %v1689 = vunpack.c.0.s8 %v1688
        %v1690 = vlaneseq
        %v1691 = vshrl.u32 %v1690, 7
        %v1692 = vsub.s32 %v1689, %v1691
        %v1693 = vrot.slane %v1685, %v1692
        %v1695 = vunpack.c.l.s4 1934713408
        %v1696 = vunpack.c.0.s8 %v1695
        %v1697 = vlaneseq
        %v1698 = vshrl.u32 %v1697, 7
        %v1699 = vsub.s32 %v1696, %v1698
        %v1700 = vrot.slane %v1686, %v1699
        %v1701 = vcombine.low %v1677, %v1693
        %v1702 = vcombine.high %v1677, %v1693
        %v1703 = vcombine.low %v1684, %v1700
        %v1704 = vcombine.high %v1684, %v1700
        %v1705 = vpack.c.bf16 %v1701, %v1701
        %v1706 = vpack.c.bf16 %v1702, %v1702
        %v1707 = vpack.c.bf16 %v1703, %v1703
        %v1708 = vpack.c.bf16 %v1704, %v1704
        %1710 = vrot.lane.b32.xlu0 %v1403, 96
        %v1711 = vpop.permute.xlu0 %1710
        %1713 = vrot.lane.b32.xlu0 %v1403, 64
        %v1714 = vpop.permute.xlu0 %1713
        %1716 = vrot.lane.b32.xlu0 %v1403, 32
        %v1717 = vpop.permute.xlu0 %1716
        %v1719 = vcombine.low %v1403, %v1714
        %v1720 = vcombine.high %v1403, %v1714
        %v1722 = vunpack.c.l.s4 1983009808
        %v1723 = vunpack.c.0.s8 %v1722
        %v1724 = vlaneseq
        %v1725 = vshrl.u32 %v1724, 7
        %v1726 = vsub.s32 %v1723, %v1725
        %v1727 = vrot.slane %v1719, %v1726
        %v1729 = vunpack.c.l.s4 1983009808
        %v1730 = vunpack.c.0.s8 %v1729
        %v1731 = vlaneseq
        %v1732 = vshrl.u32 %v1731, 7
        %v1733 = vsub.s32 %v1730, %v1732
        %v1734 = vrot.slane %v1720, %v1733
        %v1735 = vcombine.low %v1711, %v1717
        %v1736 = vcombine.high %v1711, %v1717
        %v1738 = vunpack.c.l.s4 1983009808
        %v1739 = vunpack.c.0.s8 %v1738
        %v1740 = vlaneseq
        %v1741 = vshrl.u32 %v1740, 7
        %v1742 = vsub.s32 %v1739, %v1741
        %v1743 = vrot.slane %v1735, %v1742
        %v1745 = vunpack.c.l.s4 1983009808
        %v1746 = vunpack.c.0.s8 %v1745
        %v1747 = vlaneseq
        %v1748 = vshrl.u32 %v1747, 7
        %v1749 = vsub.s32 %v1746, %v1748
        %v1750 = vrot.slane %v1736, %v1749
        %v1751 = vcombine.low %v1727, %v1743
        %v1752 = vcombine.high %v1727, %v1743
        %v1754 = vunpack.c.l.s4 1934713408
        %v1755 = vunpack.c.0.s8 %v1754
        %v1756 = vlaneseq
        %v1757 = vshrl.u32 %v1756, 7
        %v1758 = vsub.s32 %v1755, %v1757
        %v1759 = vrot.slane %v1751, %v1758
        %v1761 = vunpack.c.l.s4 1934713408
        %v1762 = vunpack.c.0.s8 %v1761
        %v1763 = vlaneseq
        %v1764 = vshrl.u32 %v1763, 7
        %v1765 = vsub.s32 %v1762, %v1764
        %v1766 = vrot.slane %v1752, %v1765
        %v1767 = vcombine.low %v1734, %v1750
        %v1768 = vcombine.high %v1734, %v1750
        %v1770 = vunpack.c.l.s4 1934713408
        %v1771 = vunpack.c.0.s8 %v1770
        %v1772 = vlaneseq
        %v1773 = vshrl.u32 %v1772, 7
        %v1774 = vsub.s32 %v1771, %v1773
        %v1775 = vrot.slane %v1767, %v1774
        %v1777 = vunpack.c.l.s4 1934713408
        %v1778 = vunpack.c.0.s8 %v1777
        %v1779 = vlaneseq
        %v1780 = vshrl.u32 %v1779, 7
        %v1781 = vsub.s32 %v1778, %v1780
        %v1782 = vrot.slane %v1768, %v1781
        %v1783 = vcombine.high %v1759, 0.0
        %v1784 = vcombine.high %v1766, 0.0
        %v1785 = vcombine.high %v1775, 0.0
        %v1786 = vcombine.high %v1782, 0.0
        %v1787 = vcombine.low %v1759, %v1766
        %v1789 = vunpack.c.l.s4 1983009808
        %v1790 = vunpack.c.0.s8 %v1789
        %v1791 = vlaneseq
        %v1792 = vshrl.u32 %v1791, 7
        %v1793 = vsub.s32 %v1790, %v1792
        %v1794 = vrot.slane %v1787, %v1793
        %v1795 = vcombine.low %v1783, %v1784
        %v1797 = vunpack.c.l.s4 1983009808
        %v1798 = vunpack.c.0.s8 %v1797
        %v1799 = vlaneseq
        %v1800 = vshrl.u32 %v1799, 7
        %v1801 = vsub.s32 %v1798, %v1800
        %v1802 = vrot.slane %v1795, %v1801
        %v1803 = vcombine.low %v1775, %v1782
        %v1805 = vunpack.c.l.s4 1983009808
        %v1806 = vunpack.c.0.s8 %v1805
        %v1807 = vlaneseq
        %v1808 = vshrl.u32 %v1807, 7
        %v1809 = vsub.s32 %v1806, %v1808
        %v1810 = vrot.slane %v1803, %v1809
        %v1811 = vcombine.low %v1785, %v1786
        %v1813 = vunpack.c.l.s4 1983009808
        %v1814 = vunpack.c.0.s8 %v1813
        %v1815 = vlaneseq
        %v1816 = vshrl.u32 %v1815, 7
        %v1817 = vsub.s32 %v1814, %v1816
        %v1818 = vrot.slane %v1811, %v1817
        %v1819 = vcombine.low %v1794, %v1802
        %v1820 = vcombine.high %v1794, %v1802
        %v1822 = vunpack.c.l.s4 1934713408
        %v1823 = vunpack.c.0.s8 %v1822
        %v1824 = vlaneseq
        %v1825 = vshrl.u32 %v1824, 7
        %v1826 = vsub.s32 %v1823, %v1825
        %v1827 = vrot.slane %v1819, %v1826
        %v1829 = vunpack.c.l.s4 1934713408
        %v1830 = vunpack.c.0.s8 %v1829
        %v1831 = vlaneseq
        %v1832 = vshrl.u32 %v1831, 7
        %v1833 = vsub.s32 %v1830, %v1832
        %v1834 = vrot.slane %v1820, %v1833
        %v1835 = vcombine.low %v1810, %v1818
        %v1836 = vcombine.high %v1810, %v1818
        %v1838 = vunpack.c.l.s4 1934713408
        %v1839 = vunpack.c.0.s8 %v1838
        %v1840 = vlaneseq
        %v1841 = vshrl.u32 %v1840, 7
        %v1842 = vsub.s32 %v1839, %v1841
        %v1843 = vrot.slane %v1835, %v1842
        %v1845 = vunpack.c.l.s4 1934713408
        %v1846 = vunpack.c.0.s8 %v1845
        %v1847 = vlaneseq
        %v1848 = vshrl.u32 %v1847, 7
        %v1849 = vsub.s32 %v1846, %v1848
        %v1850 = vrot.slane %v1836, %v1849
        %v1851 = vcombine.low %v1827, %v1843
        %v1852 = vcombine.high %v1827, %v1843
        %v1853 = vcombine.low %v1834, %v1850
        %v1854 = vcombine.high %v1834, %v1850
        %v1855 = vpack.c.bf16 %v1851, %v1851
        %v1856 = vpack.c.bf16 %v1852, %v1852
        %v1857 = vpack.c.bf16 %v1853, %v1853
        %v1858 = vpack.c.bf16 %v1854, %v1854
        %v1860 = vlaneseq
        %v1861 = vshrl.u32 %v1860, 7
        %v1862 = vsub.s32 0, %v1861
        %v1863 = vrot.slane %v1148, %v1862
        %vm1865 = vcmask 261120
        %v1867 = vsel %vm1865, %v1555, 0
        %v1870 = vsel %vm1865, %v1705, 0
        %1872 = vmatprep.subr.bf16.mxu0 0
        %1873 = vmatpush1.bf16.xpose.msra.mxu0 %v1870
        %1874 = vmatprep.subr.bf16.mxu0 0
        %1875 = vmatpush1.bf16.xpose.msra.mxu0 0
        %1876 = vmatprep.subr.bf16.mxu0 0
        %1877 = vmatpush1.bf16.xpose.msra.mxu0 0
        %1878 = vmatprep.subr.bf16.mxu0 0
        %1879 = vmatpush1.bf16.xpose.msra.mxu0 0
        %1880 = vmatprep.subr.bf16.mxu0 0
        %1881 = vmatpush1.bf16.xpose.msra.mxu0 0
        %1882 = vmatprep.subr.bf16.mxu0 0
        %1883 = vmatpush1.bf16.xpose.msra.mxu0 0
        %1884 = vmatprep.subr.bf16.mxu0 0
        %1885 = vmatpush1.bf16.xpose.msra.mxu0 0
        %1886 = vmatprep.subr.bf16.mxu0 0
        %1887 = vmatpush1.bf16.xpose.msra.mxu0 0
        %1888 = vmatprep.subr.bf16.mxu0 0
        %1889 = vmatpush1.bf16.xpose.msra.mxu0 0
        %1890 = vmatprep.subr.bf16.mxu0 0
        %1891 = vmatpush1.bf16.xpose.msra.mxu0 0
        %1892 = vmatprep.subr.bf16.mxu0 0
        %1893 = vmatpush1.bf16.xpose.msra.mxu0 0
        %1894 = vmatprep.subr.bf16.mxu0 0
        %1895 = vmatpush1.bf16.xpose.msra.mxu0 0
        %1896 = vmatprep.subr.bf16.mxu0 0
        %1897 = vmatpush1.bf16.xpose.msra.mxu0 0
        %1898 = vmatprep.subr.bf16.mxu0 0
        %1899 = vmatpush1.bf16.xpose.msra.mxu0 0
        %1900 = vmatprep.subr.bf16.mxu0 0
        %1901 = vmatpush1.bf16.xpose.msra.mxu0 0
        %1902 = vmatprep.subr.bf16.mxu0 0
        %1903 = vmatpush1.bf16.xpose.msra.mxu0 0
        %1904 = vmatprep.mubr.bf16.mxu0 0
        %1905 = vmatmul.mubr.bf16.gmra.mrb[0].mxu0 %v1867
        %v1906 = vpop.f32.mrb[0].mxu0
        %v1907 = vadd.f32 %v1863, %v1906
        %v1908 = vpop.f32.mrb[0].mxu0
        %v1909 = vpop.f32.mrb[0].mxu0
        %v1910 = vpop.f32.mrb[0].mxu0
        %1911 = vdwg.mxu0
        %v1913 = vsel %vm1865, %v1556, 0
        %v1916 = vsel %vm1865, %v1706, 0
        %1918 = vmatprep.subr.bf16.mxu0 0
        %1919 = vmatpush1.bf16.xpose.msra.mxu0 %v1916
        %1920 = vmatprep.subr.bf16.mxu0 0
        %1921 = vmatpush1.bf16.xpose.msra.mxu0 0
        %1922 = vmatprep.subr.bf16.mxu0 0
        %1923 = vmatpush1.bf16.xpose.msra.mxu0 0
        %1924 = vmatprep.subr.bf16.mxu0 0
        %1925 = vmatpush1.bf16.xpose.msra.mxu0 0
        %1926 = vmatprep.subr.bf16.mxu0 0
        %1927 = vmatpush1.bf16.xpose.msra.mxu0 0
        %1928 = vmatprep.subr.bf16.mxu0 0
        %1929 = vmatpush1.bf16.xpose.msra.mxu0 0
        %1930 = vmatprep.subr.bf16.mxu0 0
        %1931 = vmatpush1.bf16.xpose.msra.mxu0 0
        %1932 = vmatprep.subr.bf16.mxu0 0
        %1933 = vmatpush1.bf16.xpose.msra.mxu0 0
        %1934 = vmatprep.subr.bf16.mxu0 0
        %1935 = vmatpush1.bf16.xpose.msra.mxu0 0
        %1936 = vmatprep.subr.bf16.mxu0 0
        %1937 = vmatpush1.bf16.xpose.msra.mxu0 0
        %1938 = vmatprep.subr.bf16.mxu0 0
        %1939 = vmatpush1.bf16.xpose.msra.mxu0 0
        %1940 = vmatprep.subr.bf16.mxu0 0
        %1941 = vmatpush1.bf16.xpose.msra.mxu0 0
        %1942 = vmatprep.subr.bf16.mxu0 0
        %1943 = vmatpush1.bf16.xpose.msra.mxu0 0
        %1944 = vmatprep.subr.bf16.mxu0 0
        %1945 = vmatpush1.bf16.xpose.msra.mxu0 0
        %1946 = vmatprep.subr.bf16.mxu0 0
        %1947 = vmatpush1.bf16.xpose.msra.mxu0 0
        %1948 = vmatprep.subr.bf16.mxu0 0
        %1949 = vmatpush1.bf16.xpose.msra.mxu0 0
        %1950 = vmatprep.mubr.bf16.mxu0 0
        %1951 = vmatmul.mubr.bf16.gmra.mrb[0].mxu0 %v1913
        %v1952 = vpop.f32.mrb[0].mxu0
        %v1953 = vadd.f32 %v1863, %v1952
        %v1954 = vpop.f32.mrb[0].mxu0
        %v1955 = vpop.f32.mrb[0].mxu0
        %v1956 = vpop.f32.mrb[0].mxu0
        %1957 = vdwg.mxu0
        %v1959 = vsel %vm1865, %v1557, 0
        %v1962 = vsel %vm1865, %v1707, 0
        %1964 = vmatprep.subr.bf16.mxu0 0
        %1965 = vmatpush1.bf16.xpose.msra.mxu0 %v1962
        %1966 = vmatprep.subr.bf16.mxu0 0
        %1967 = vmatpush1.bf16.xpose.msra.mxu0 0
        %1968 = vmatprep.subr.bf16.mxu0 0
        %1969 = vmatpush1.bf16.xpose.msra.mxu0 0
        %1970 = vmatprep.subr.bf16.mxu0 0
        %1971 = vmatpush1.bf16.xpose.msra.mxu0 0
        %1972 = vmatprep.subr.bf16.mxu0 0
        %1973 = vmatpush1.bf16.xpose.msra.mxu0 0
        %1974 = vmatprep.subr.bf16.mxu0 0
        %1975 = vmatpush1.bf16.xpose.msra.mxu0 0
        %1976 = vmatprep.subr.bf16.mxu0 0
        %1977 = vmatpush1.bf16.xpose.msra.mxu0 0
        %1978 = vmatprep.subr.bf16.mxu0 0
        %1979 = vmatpush1.bf16.xpose.msra.mxu0 0
        %1980 = vmatprep.subr.bf16.mxu0 0
        %1981 = vmatpush1.bf16.xpose.msra.mxu0 0
        %1982 = vmatprep.subr.bf16.mxu0 0
        %1983 = vmatpush1.bf16.xpose.msra.mxu0 0
        %1984 = vmatprep.subr.bf16.mxu0 0
        %1985 = vmatpush1.bf16.xpose.msra.mxu0 0
        %1986 = vmatprep.subr.bf16.mxu0 0
        %1987 = vmatpush1.bf16.xpose.msra.mxu0 0
        %1988 = vmatprep.subr.bf16.mxu0 0
        %1989 = vmatpush1.bf16.xpose.msra.mxu0 0
        %1990 = vmatprep.subr.bf16.mxu0 0
        %1991 = vmatpush1.bf16.xpose.msra.mxu0 0
        %1992 = vmatprep.subr.bf16.mxu0 0
        %1993 = vmatpush1.bf16.xpose.msra.mxu0 0
        %1994 = vmatprep.subr.bf16.mxu0 0
        %1995 = vmatpush1.bf16.xpose.msra.mxu0 0
        %1996 = vmatprep.mubr.bf16.mxu0 0
        %1997 = vmatmul.mubr.bf16.gmra.mrb[0].mxu0 %v1959
        %v1998 = vpop.f32.mrb[0].mxu0
        %v1999 = vadd.f32 %v1863, %v1998
        %v2000 = vpop.f32.mrb[0].mxu0
        %v2001 = vpop.f32.mrb[0].mxu0
        %v2002 = vpop.f32.mrb[0].mxu0
        %2003 = vdwg.mxu0
        %v2005 = vsel %vm1865, %v1558, 0
        %v2008 = vsel %vm1865, %v1708, 0
        %2010 = vmatprep.subr.bf16.mxu0 0
        %2011 = vmatpush1.bf16.xpose.msra.mxu0 %v2008
        %2012 = vmatprep.subr.bf16.mxu0 0
        %2013 = vmatpush1.bf16.xpose.msra.mxu0 0
        %2014 = vmatprep.subr.bf16.mxu0 0
        %2015 = vmatpush1.bf16.xpose.msra.mxu0 0
        %2016 = vmatprep.subr.bf16.mxu0 0
        %2017 = vmatpush1.bf16.xpose.msra.mxu0 0
        %2018 = vmatprep.subr.bf16.mxu0 0
        %2019 = vmatpush1.bf16.xpose.msra.mxu0 0
        %2020 = vmatprep.subr.bf16.mxu0 0
        %2021 = vmatpush1.bf16.xpose.msra.mxu0 0
        %2022 = vmatprep.subr.bf16.mxu0 0
        %2023 = vmatpush1.bf16.xpose.msra.mxu0 0
        %2024 = vmatprep.subr.bf16.mxu0 0
        %2025 = vmatpush1.bf16.xpose.msra.mxu0 0
        %2026 = vmatprep.subr.bf16.mxu0 0
        %2027 = vmatpush1.bf16.xpose.msra.mxu0 0
        %2028 = vmatprep.subr.bf16.mxu0 0
        %2029 = vmatpush1.bf16.xpose.msra.mxu0 0
        %2030 = vmatprep.subr.bf16.mxu0 0
        %2031 = vmatpush1.bf16.xpose.msra.mxu0 0
        %2032 = vmatprep.subr.bf16.mxu0 0
        %2033 = vmatpush1.bf16.xpose.msra.mxu0 0
        %2034 = vmatprep.subr.bf16.mxu0 0
        %2035 = vmatpush1.bf16.xpose.msra.mxu0 0
        %2036 = vmatprep.subr.bf16.mxu0 0
        %2037 = vmatpush1.bf16.xpose.msra.mxu0 0
        %2038 = vmatprep.subr.bf16.mxu0 0
        %2039 = vmatpush1.bf16.xpose.msra.mxu0 0
        %2040 = vmatprep.subr.bf16.mxu0 0
        %2041 = vmatpush1.bf16.xpose.msra.mxu0 0
        %2042 = vmatprep.mubr.bf16.mxu0 0
        %2043 = vmatmul.mubr.bf16.gmra.mrb[0].mxu0 %v2005
        %v2044 = vpop.f32.mrb[0].mxu0
        %v2045 = vadd.f32 %v1863, %v2044
        %v2046 = vpop.f32.mrb[0].mxu0
        %v2047 = vpop.f32.mrb[0].mxu0
        %v2048 = vpop.f32.mrb[0].mxu0
        %2049 = vdwg.mxu0
        %vm2050 = vcmask 64512
        %v2051 = vsel %vm2050, %v1907, -inf
        %2052 = vmax.xlane.f32.xlu0 %v2051
        %v2053 = vpop.xlane.xlu0 %2052
        %v2054 = vsel %vm2050, %v1953, -inf
        %2055 = vmax.xlane.f32.xlu0 %v2054
        %v2056 = vpop.xlane.xlu0 %2055
        %v2057 = vsel %vm2050, %v1999, -inf
        %2058 = vmax.xlane.f32.xlu0 %v2057
        %v2059 = vpop.xlane.xlu0 %2058
        %v2060 = vsel %vm2050, %v2045, -inf
        %2061 = vmax.xlane.f32.xlu0 %v2060
        %v2062 = vpop.xlane.xlu0 %2061
        %v2063 = vsub.f32 %v1907, %v2053
        %v2064 = vsub.f32 %v1953, %v2056
        %v2065 = vsub.f32 %v1999, %v2059
        %v2066 = vsub.f32 %v2045, %v2062
        %v2067 = vmul.f32 %v2063, 1.442695
        %v2068 = vpow.pop %v2067
        %v2069 = vmul.f32 %v2064, 1.442695
        %v2070 = vpow.pop %v2069
        %v2071 = vmul.f32 %v2065, 1.442695
        %v2072 = vpow.pop %v2071
        %v2073 = vmul.f32 %v2066, 1.442695
        %v2074 = vpow.pop %v2073
        %v2075 = vsel %vm2050, %v2068, 0.0
        %2076 = vadd.xlane.f32.xlu0 %v2075
        %v2077 = vpop.xlane.xlu0 %2076
        %v2078 = vsel %vm2050, %v2070, 0.0
        %2079 = vadd.xlane.f32.xlu0 %v2078
        %v2080 = vpop.xlane.xlu0 %2079
        %v2081 = vsel %vm2050, %v2072, 0.0
        %2082 = vadd.xlane.f32.xlu0 %v2081
        %v2083 = vpop.xlane.xlu0 %2082
        %v2084 = vsel %vm2050, %v2074, 0.0
        %2085 = vadd.xlane.f32.xlu0 %v2084
        %v2086 = vpop.xlane.xlu0 %2085
        %v2087 = vrcp.pop %v2077
        %v2088 = vrcp.pop %v2080
        %v2089 = vrcp.pop %v2083
        %v2090 = vrcp.pop %v2086
        %v2091 = vmul.f32 %v2068, %v2087
        %v2092 = vmul.f32 %v2070, %v2088
        %v2093 = vmul.f32 %v2072, %v2089
        %v2094 = vmul.f32 %v2074, %v2090
        %v2095 = vpack.c.bf16 %v2091, %v2091
        %v2096 = vpack.c.bf16 %v2092, %v2092
        %v2097 = vpack.c.bf16 %v2093, %v2093
        %v2098 = vpack.c.bf16 %v2094, %v2094
        %v2100 = vsel %vm2050, %v2095, 0
        %vm2102 = vcmask 1043456
        %v2104 = vsel %vm2102, %v1855, 0
        %2106 = vmatprep.subr.bf16.mxu0 0
        %2107 = vmatpush1.bf16.msra.mxu0 %v2104
        %2108 = vmatprep.subr.bf16.mxu0 0
        %2109 = vmatpush1.bf16.msra.mxu0 0
        %2110 = vmatprep.subr.bf16.mxu0 0
        %2111 = vmatpush1.bf16.msra.mxu0 0
        %2112 = vmatprep.subr.bf16.mxu0 0
        %2113 = vmatpush1.bf16.msra.mxu0 0
        %2114 = vmatprep.subr.bf16.mxu0 0
        %2115 = vmatpush1.bf16.msra.mxu0 0
        %2116 = vmatprep.subr.bf16.mxu0 0
        %2117 = vmatpush1.bf16.msra.mxu0 0
        %2118 = vmatprep.subr.bf16.mxu0 0
        %2119 = vmatpush1.bf16.msra.mxu0 0
        %2120 = vmatprep.subr.bf16.mxu0 0
        %2121 = vmatpush1.bf16.msra.mxu0 0
        %2122 = vmatprep.subr.bf16.mxu0 0
        %2123 = vmatpush1.bf16.msra.mxu0 0
        %2124 = vmatprep.subr.bf16.mxu0 0
        %2125 = vmatpush1.bf16.msra.mxu0 0
        %2126 = vmatprep.subr.bf16.mxu0 0
        %2127 = vmatpush1.bf16.msra.mxu0 0
        %2128 = vmatprep.subr.bf16.mxu0 0
        %2129 = vmatpush1.bf16.msra.mxu0 0
        %2130 = vmatprep.subr.bf16.mxu0 0
        %2131 = vmatpush1.bf16.msra.mxu0 0
        %2132 = vmatprep.subr.bf16.mxu0 0
        %2133 = vmatpush1.bf16.msra.mxu0 0
        %2134 = vmatprep.subr.bf16.mxu0 0
        %2135 = vmatpush1.bf16.msra.mxu0 0
        %2136 = vmatprep.subr.bf16.mxu0 0
        %2137 = vmatpush1.bf16.msra.mxu0 0
        %2138 = vmatprep.mubr.bf16.mxu0 0
        %2139 = vmatmul.mubr.bf16.gmra.mrb[0].mxu0 %v2100
        %v2140 = vpop.f32.mrb[0].mxu0
        %v2141 = vadd.f32 0.0, %v2140
        %v2142 = vpop.f32.mrb[0].mxu0
        %v2143 = vpop.f32.mrb[0].mxu0
        %v2144 = vpop.f32.mrb[0].mxu0
        %2145 = vdwg.mxu0
        %v2147 = vsel %vm2050, %v2096, 0
        %v2150 = vsel %vm2102, %v1856, 0
        %2152 = vmatprep.subr.bf16.mxu0 0
        %2153 = vmatpush1.bf16.msra.mxu0 %v2150
        %2154 = vmatprep.subr.bf16.mxu0 0
        %2155 = vmatpush1.bf16.msra.mxu0 0
        %2156 = vmatprep.subr.bf16.mxu0 0
        %2157 = vmatpush1.bf16.msra.mxu0 0
        %2158 = vmatprep.subr.bf16.mxu0 0
        %2159 = vmatpush1.bf16.msra.mxu0 0
        %2160 = vmatprep.subr.bf16.mxu0 0
        %2161 = vmatpush1.bf16.msra.mxu0 0
        %2162 = vmatprep.subr.bf16.mxu0 0
        %2163 = vmatpush1.bf16.msra.mxu0 0
        %2164 = vmatprep.subr.bf16.mxu0 0
        %2165 = vmatpush1.bf16.msra.mxu0 0
        %2166 = vmatprep.subr.bf16.mxu0 0
        %2167 = vmatpush1.bf16.msra.mxu0 0
        %2168 = vmatprep.subr.bf16.mxu0 0
        %2169 = vmatpush1.bf16.msra.mxu0 0
        %2170 = vmatprep.subr.bf16.mxu0 0
        %2171 = vmatpush1.bf16.msra.mxu0 0
        %2172 = vmatprep.subr.bf16.mxu0 0
        %2173 = vmatpush1.bf16.msra.mxu0 0
        %2174 = vmatprep.subr.bf16.mxu0 0
        %2175 = vmatpush1.bf16.msra.mxu0 0
        %2176 = vmatprep.subr.bf16.mxu0 0
        %2177 = vmatpush1.bf16.msra.mxu0 0
        %2178 = vmatprep.subr.bf16.mxu0 0
        %2179 = vmatpush1.bf16.msra.mxu0 0
        %2180 = vmatprep.subr.bf16.mxu0 0
        %2181 = vmatpush1.bf16.msra.mxu0 0
        %2182 = vmatprep.subr.bf16.mxu0 0
        %2183 = vmatpush1.bf16.msra.mxu0 0
        %2184 = vmatprep.mubr.bf16.mxu0 0
        %2185 = vmatmul.mubr.bf16.gmra.mrb[0].mxu0 %v2147
        %v2186 = vpop.f32.mrb[0].mxu0
        %v2187 = vadd.f32 0.0, %v2186
        %v2188 = vpop.f32.mrb[0].mxu0
        %v2189 = vpop.f32.mrb[0].mxu0
        %v2190 = vpop.f32.mrb[0].mxu0
        %2191 = vdwg.mxu0
        %v2193 = vsel %vm2050, %v2097, 0
        %v2196 = vsel %vm2102, %v1857, 0
        %2198 = vmatprep.subr.bf16.mxu0 0
        %2199 = vmatpush1.bf16.msra.mxu0 %v2196
        %2200 = vmatprep.subr.bf16.mxu0 0
        %2201 = vmatpush1.bf16.msra.mxu0 0
        %2202 = vmatprep.subr.bf16.mxu0 0
        %2203 = vmatpush1.bf16.msra.mxu0 0
        %2204 = vmatprep.subr.bf16.mxu0 0
        %2205 = vmatpush1.bf16.msra.mxu0 0
        %2206 = vmatprep.subr.bf16.mxu0 0
        %2207 = vmatpush1.bf16.msra.mxu0 0
        %2208 = vmatprep.subr.bf16.mxu0 0
        %2209 = vmatpush1.bf16.msra.mxu0 0
        %2210 = vmatprep.subr.bf16.mxu0 0
        %2211 = vmatpush1.bf16.msra.mxu0 0
        %2212 = vmatprep.subr.bf16.mxu0 0
        %2213 = vmatpush1.bf16.msra.mxu0 0
        %2214 = vmatprep.subr.bf16.mxu0 0
        %2215 = vmatpush1.bf16.msra.mxu0 0
        %2216 = vmatprep.subr.bf16.mxu0 0
        %2217 = vmatpush1.bf16.msra.mxu0 0
        %2218 = vmatprep.subr.bf16.mxu0 0
        %2219 = vmatpush1.bf16.msra.mxu0 0
        %2220 = vmatprep.subr.bf16.mxu0 0
        %2221 = vmatpush1.bf16.msra.mxu0 0
        %2222 = vmatprep.subr.bf16.mxu0 0
        %2223 = vmatpush1.bf16.msra.mxu0 0
        %2224 = vmatprep.subr.bf16.mxu0 0
        %2225 = vmatpush1.bf16.msra.mxu0 0
        %2226 = vmatprep.subr.bf16.mxu0 0
        %2227 = vmatpush1.bf16.msra.mxu0 0
        %2228 = vmatprep.subr.bf16.mxu0 0
        %2229 = vmatpush1.bf16.msra.mxu0 0
        %2230 = vmatprep.mubr.bf16.mxu0 0
        %2231 = vmatmul.mubr.bf16.gmra.mrb[0].mxu0 %v2193
        %v2232 = vpop.f32.mrb[0].mxu0
        %v2233 = vadd.f32 0.0, %v2232
        %v2234 = vpop.f32.mrb[0].mxu0
        %v2235 = vpop.f32.mrb[0].mxu0
        %v2236 = vpop.f32.mrb[0].mxu0
        %2237 = vdwg.mxu0
        %v2239 = vsel %vm2050, %v2098, 0
        %v2242 = vsel %vm2102, %v1858, 0
        %2244 = vmatprep.subr.bf16.mxu0 0
        %2245 = vmatpush1.bf16.msra.mxu0 %v2242
        %2246 = vmatprep.subr.bf16.mxu0 0
        %2247 = vmatpush1.bf16.msra.mxu0 0
        %2248 = vmatprep.subr.bf16.mxu0 0
        %2249 = vmatpush1.bf16.msra.mxu0 0
        %2250 = vmatprep.subr.bf16.mxu0 0
        %2251 = vmatpush1.bf16.msra.mxu0 0
        %2252 = vmatprep.subr.bf16.mxu0 0
        %2253 = vmatpush1.bf16.msra.mxu0 0
        %2254 = vmatprep.subr.bf16.mxu0 0
        %2255 = vmatpush1.bf16.msra.mxu0 0
        %2256 = vmatprep.subr.bf16.mxu0 0
        %2257 = vmatpush1.bf16.msra.mxu0 0
        %2258 = vmatprep.subr.bf16.mxu0 0
        %2259 = vmatpush1.bf16.msra.mxu0 0
        %2260 = vmatprep.subr.bf16.mxu0 0
        %2261 = vmatpush1.bf16.msra.mxu0 0
        %2262 = vmatprep.subr.bf16.mxu0 0
        %2263 = vmatpush1.bf16.msra.mxu0 0
        %2264 = vmatprep.subr.bf16.mxu0 0
        %2265 = vmatpush1.bf16.msra.mxu0 0
        %2266 = vmatprep.subr.bf16.mxu0 0
        %2267 = vmatpush1.bf16.msra.mxu0 0
        %2268 = vmatprep.subr.bf16.mxu0 0
        %2269 = vmatpush1.bf16.msra.mxu0 0
        %2270 = vmatprep.subr.bf16.mxu0 0
        %2271 = vmatpush1.bf16.msra.mxu0 0
        %2272 = vmatprep.subr.bf16.mxu0 0
        %2273 = vmatpush1.bf16.msra.mxu0 0
        %2274 = vmatprep.subr.bf16.mxu0 0
        %2275 = vmatpush1.bf16.msra.mxu0 0
        %2276 = vmatprep.mubr.bf16.mxu0 0
        %2277 = vmatmul.mubr.bf16.gmra.mrb[0].mxu0 %v2239
        %v2278 = vpop.f32.mrb[0].mxu0
        %v2279 = vadd.f32 0.0, %v2278
        %v2280 = vpop.f32.mrb[0].mxu0
        %v2281 = vpop.f32.mrb[0].mxu0
        %v2282 = vpop.f32.mrb[0].mxu0
        %2283 = vdwg.mxu0
        %v2284 = vcombine.low %v2141, %v2233
        %v2285 = vcombine.high %v2141, %v2233
        %v2287 = vunpack.c.l.s4 1983009808
        %v2288 = vunpack.c.0.s8 %v2287
        %v2289 = vlaneseq
        %v2290 = vshrl.u32 %v2289, 7
        %v2291 = vsub.s32 %v2288, %v2290
        %v2292 = vrot.slane %v2284, %v2291
        %v2294 = vunpack.c.l.s4 1983009808
        %v2295 = vunpack.c.0.s8 %v2294
        %v2296 = vlaneseq
        %v2297 = vshrl.u32 %v2296, 7
        %v2298 = vsub.s32 %v2295, %v2297
        %v2299 = vrot.slane %v2285, %v2298
        %v2300 = vcombine.low %v2187, %v2279
        %v2301 = vcombine.high %v2187, %v2279
        %v2303 = vunpack.c.l.s4 1983009808
        %v2304 = vunpack.c.0.s8 %v2303
        %v2305 = vlaneseq
        %v2306 = vshrl.u32 %v2305, 7
        %v2307 = vsub.s32 %v2304, %v2306
        %v2308 = vrot.slane %v2300, %v2307
        %v2310 = vunpack.c.l.s4 1983009808
        %v2311 = vunpack.c.0.s8 %v2310
        %v2312 = vlaneseq
        %v2313 = vshrl.u32 %v2312, 7
        %v2314 = vsub.s32 %v2311, %v2313
        %v2315 = vrot.slane %v2301, %v2314
        %v2316 = vcombine.low %v2292, %v2308
        %v2317 = vcombine.high %v2292, %v2308
        %v2319 = vunpack.c.l.s4 1934713408
        %v2320 = vunpack.c.0.s8 %v2319
        %v2321 = vlaneseq
        %v2322 = vshrl.u32 %v2321, 7
        %v2323 = vsub.s32 %v2320, %v2322
        %v2324 = vrot.slane %v2316, %v2323
        %v2326 = vunpack.c.l.s4 1934713408
        %v2327 = vunpack.c.0.s8 %v2326
        %v2328 = vlaneseq
        %v2329 = vshrl.u32 %v2328, 7
        %v2330 = vsub.s32 %v2327, %v2329
        %v2331 = vrot.slane %v2317, %v2330
        %v2332 = vcombine.low %v2299, %v2315
        %v2333 = vcombine.high %v2299, %v2315
        %v2335 = vunpack.c.l.s4 1934713408
        %v2336 = vunpack.c.0.s8 %v2335
        %v2337 = vlaneseq
        %v2338 = vshrl.u32 %v2337, 7
        %v2339 = vsub.s32 %v2336, %v2338
        %v2340 = vrot.slane %v2332, %v2339
        %v2342 = vunpack.c.l.s4 1934713408
        %v2343 = vunpack.c.0.s8 %v2342
        %v2344 = vlaneseq
        %v2345 = vshrl.u32 %v2344, 7
        %v2346 = vsub.s32 %v2343, %v2345
        %v2347 = vrot.slane %v2333, %v2346
        %v2348 = vcombine.high %v2324, 0.0
        %v2349 = vcombine.high %v2331, 0.0
        %v2350 = vcombine.high %v2340, 0.0
        %v2351 = vcombine.high %v2347, 0.0
        %v2352 = vcombine.low %v2324, %v2331
        %v2354 = vunpack.c.l.s4 1983009808
        %v2355 = vunpack.c.0.s8 %v2354
        %v2356 = vlaneseq
        %v2357 = vshrl.u32 %v2356, 7
        %v2358 = vsub.s32 %v2355, %v2357
        %v2359 = vrot.slane %v2352, %v2358
        %v2360 = vcombine.low %v2348, %v2349
        %v2362 = vunpack.c.l.s4 1983009808
        %v2363 = vunpack.c.0.s8 %v2362
        %v2364 = vlaneseq
        %v2365 = vshrl.u32 %v2364, 7
        %v2366 = vsub.s32 %v2363, %v2365
        %v2367 = vrot.slane %v2360, %v2366
        %v2368 = vcombine.low %v2340, %v2347
        %v2370 = vunpack.c.l.s4 1983009808
        %v2371 = vunpack.c.0.s8 %v2370
        %v2372 = vlaneseq
        %v2373 = vshrl.u32 %v2372, 7
        %v2374 = vsub.s32 %v2371, %v2373
        %v2375 = vrot.slane %v2368, %v2374
        %v2376 = vcombine.low %v2350, %v2351
        %v2378 = vunpack.c.l.s4 1983009808
        %v2379 = vunpack.c.0.s8 %v2378
        %v2380 = vlaneseq
        %v2381 = vshrl.u32 %v2380, 7
        %v2382 = vsub.s32 %v2379, %v2381
        %v2383 = vrot.slane %v2376, %v2382
        %v2384 = vcombine.low %v2359, %v2367
        %v2385 = vcombine.high %v2359, %v2367
        %v2387 = vunpack.c.l.s4 1934713408
        %v2388 = vunpack.c.0.s8 %v2387
        %v2389 = vlaneseq
        %v2390 = vshrl.u32 %v2389, 7
        %v2391 = vsub.s32 %v2388, %v2390
        %v2392 = vrot.slane %v2384, %v2391
        %v2394 = vunpack.c.l.s4 1934713408
        %v2395 = vunpack.c.0.s8 %v2394
        %v2396 = vlaneseq
        %v2397 = vshrl.u32 %v2396, 7
        %v2398 = vsub.s32 %v2395, %v2397
        %v2399 = vrot.slane %v2385, %v2398
        %v2400 = vcombine.low %v2375, %v2383
        %v2401 = vcombine.high %v2375, %v2383
        %v2403 = vunpack.c.l.s4 1934713408
        %v2404 = vunpack.c.0.s8 %v2403
        %v2405 = vlaneseq
        %v2406 = vshrl.u32 %v2405, 7
        %v2407 = vsub.s32 %v2404, %v2406
        %v2408 = vrot.slane %v2400, %v2407
        %v2410 = vunpack.c.l.s4 1934713408
        %v2411 = vunpack.c.0.s8 %v2410
        %v2412 = vlaneseq
        %v2413 = vshrl.u32 %v2412, 7
        %v2414 = vsub.s32 %v2411, %v2413
        %v2415 = vrot.slane %v2401, %v2414
        %v2416 = vcombine.low %v2392, %v2408
        %v2417 = vcombine.high %v2392, %v2408
        %v2418 = vcombine.low %v2399, %v2415
        %v2419 = vcombine.high %v2399, %v2415
        %2421 = vrot.lane.b32.xlu0 %v2417, 32
        %v2422 = vpop.permute.xlu0 %2421
        %2425 = vrot.lane.b32.xlu0 %v2418, 64
        %v2426 = vpop.permute.xlu0 %2425
        %2429 = vrot.lane.b32.xlu0 %v2419, 96
        %v2430 = vpop.permute.xlu0 %2429
        %v2432 = vsel %vm1865, %v2416, %v2422
        %vm2433 = vcmask 523264
        %v2434 = vsel %vm2433, %v2432, %v2426
        %vm2435 = vcmask 785408
        %v2436 = vsel %vm2435, %v2434, %v2430
        %v2437 = vpack.c.bf16 %v2436, %v2436
        %v2438 = vld [vmem:[%s914] sm:$0xf]
        %v2439 = vld [vmem:[%s914 + $0x4] sm:$0xf]
        %v2440 = vld [vmem:[%s914 + $0x8] sm:$0xf]
        %v2441 = vld [vmem:[%s914 + $0xc] sm:$0xf]
        %v2442 = vld [vmem:[%s914 + $0x10] sm:$0xf]
        %v2443 = vld [vmem:[%s914 + $0x14] sm:$0xf]
        %v2444 = vld [vmem:[%s914 + $0x18] sm:$0xf]
        %v2445 = vld [vmem:[%s914 + $0x1c] sm:$0xf]
        %v2446 = vld [vmem:[%s914 + $0x20] sm:$0xf]
        %v2447 = vld [vmem:[%s914 + $0x24] sm:$0xf]
        %v2448 = vld [vmem:[%s914 + $0x28] sm:$0xf]
        %v2449 = vld [vmem:[%s914 + $0x2c] sm:$0xf]
        %v2450 = vld [vmem:[%s914 + $0x30] sm:$0xf]
        %v2451 = vld [vmem:[%s914 + $0x34] sm:$0xf]
        %v2452 = vld [vmem:[%s914 + $0x38] sm:$0xf]
        %v2453 = vld [vmem:[%s914 + $0x3c] sm:$0xf]
        %v2454 = vld [vmem:[%s922] sm:$0x1]
        %v2456 = vlaneseq
        %v2457 = vshrl.u32 %v2456, 7
        %v2458 = vsub.s32 0, %v2457
        %v2459 = vrot.slane %v2454, %v2458
        %v2477 = vunpack.c.l.b16 %v2438
        %v2478 = vunpack.c.l.b16 %v2439
        %v2479 = vunpack.c.l.b16 %v2440
        %v2480 = vunpack.c.l.b16 %v2441
        %v2481 = vunpack.c.l.b16 %v2442
        %v2482 = vunpack.c.l.b16 %v2443
        %v2483 = vunpack.c.l.b16 %v2444
        %v2484 = vunpack.c.l.b16 %v2445
        %v2485 = vunpack.c.l.b16 %v2446
        %v2486 = vunpack.c.l.b16 %v2447
        %v2487 = vunpack.c.l.b16 %v2448
        %v2488 = vunpack.c.l.b16 %v2449
        %v2489 = vunpack.c.l.b16 %v2450
        %v2490 = vunpack.c.l.b16 %v2451
        %v2491 = vunpack.c.l.b16 %v2452
        %v2492 = vunpack.c.l.b16 %v2453
        %v2493 = vpack.c.b16 %v2478, %v2477
        %v2494 = vpack.c.b16 %v2480, %v2479
        %v2495 = vpack.c.b16 %v2482, %v2481
        %v2496 = vpack.c.b16 %v2484, %v2483
        %v2497 = vpack.c.b16 %v2486, %v2485
        %v2498 = vpack.c.b16 %v2488, %v2487
        %v2499 = vpack.c.b16 %v2490, %v2489
        %v2500 = vpack.c.b16 %v2492, %v2491
        %2509 = vmatprep.subr.bf16.mxu0 0
        %2510 = vmatpush1.bf16.msra.mxu0 %v2493
        %2511 = vmatprep.subr.bf16.mxu0 0
        %2512 = vmatpush1.bf16.msra.mxu0 %v2494
        %2513 = vmatprep.subr.bf16.mxu0 0
        %2514 = vmatpush1.bf16.msra.mxu0 %v2495
        %2515 = vmatprep.subr.bf16.mxu0 0
        %2516 = vmatpush1.bf16.msra.mxu0 %v2496
        %2517 = vmatprep.subr.bf16.mxu0 0
        %2518 = vmatpush1.bf16.msra.mxu0 %v2497
        %2519 = vmatprep.subr.bf16.mxu0 0
        %2520 = vmatpush1.bf16.msra.mxu0 %v2498
        %2521 = vmatprep.subr.bf16.mxu0 0
        %2522 = vmatpush1.bf16.msra.mxu0 %v2499
        %2523 = vmatprep.subr.bf16.mxu0 0
        %2524 = vmatpush1.bf16.msra.mxu0 %v2500
        %2525 = vmatprep.subr.bf16.mxu0 0
        %2526 = vmatpush1.bf16.msra.mxu0 0
        %2527 = vmatprep.subr.bf16.mxu0 0
        %2528 = vmatpush1.bf16.msra.mxu0 0
        %2529 = vmatprep.subr.bf16.mxu0 0
        %2530 = vmatpush1.bf16.msra.mxu0 0
        %2531 = vmatprep.subr.bf16.mxu0 0
        %2532 = vmatpush1.bf16.msra.mxu0 0
        %2533 = vmatprep.subr.bf16.mxu0 0
        %2534 = vmatpush1.bf16.msra.mxu0 0
        %2535 = vmatprep.subr.bf16.mxu0 0
        %2536 = vmatpush1.bf16.msra.mxu0 0
        %2537 = vmatprep.subr.bf16.mxu0 0
        %2538 = vmatpush1.bf16.msra.mxu0 0
        %2539 = vmatprep.subr.bf16.mxu0 0
        %2540 = vmatpush1.bf16.msra.mxu0 0
        %2541 = vmatprep.mubr.bf16.mxu0 0
        %2542 = vmatmul.mubr.bf16.gmra.mrb[0].mxu0 %v2437
        %v2543 = vpop.f32.mrb[0].mxu0
        %v2544 = vadd.f32 %v2459, %v2543
        %v2545 = vpop.f32.mrb[0].mxu0
        %v2546 = vpop.f32.mrb[0].mxu0
        %v2547 = vpop.f32.mrb[0].mxu0
        %2548 = vdwg.mxu0
        %v2549 = vadd.f32 %v2544, %v1145
        %v2550 = vld [vmem:[%s930] sm:$0x1]
        %v2551 = vld [vmem:[%s938] sm:$0x1]
        %2552 = vadd.xlane.f32.xlu0 %v2549
        %v2553 = vpop.xlane.xlu0 %2552
        %v2554 = vrcp.pop 128.0
        %v2555 = vmul.f32 %v2553, %v2554
        %v2556 = vsub.f32 %v2549, %v2555
        %v2557 = vmul.f32 %v2556, %v2556
        %2558 = vadd.xlane.f32.xlu0 %v2557
        %v2559 = vpop.xlane.xlu0 %2558
        %v2560 = vmul.f32 %v2559, %v2554
        %v2561 = vadd.f32 %v2560, 1e-12
        %v2562 = vrsqrt.pop %v2561
        %v2563 = vmul.f32 %v2556, %v2562
        %v2565 = vlaneseq
        %v2566 = vshrl.u32 %v2565, 7
        %v2567 = vsub.s32 0, %v2566
        %v2568 = vrot.slane %v2550, %v2567
        %v2570 = vmul.f32 %v2563, %v2568
        %v2572 = vlaneseq
        %v2573 = vshrl.u32 %v2572, 7
        %v2574 = vsub.s32 0, %v2573
        %v2575 = vrot.slane %v2551, %v2574
        %v2577 = vadd.f32 %v2570, %v2575
        %v2578 = vpack.c.bf16 %v2577, %v2577
        %v2579 = vld [vmem:[%s1096] sm:$0xff]
        %v2580 = vld [vmem:[%s1096 + $0x8] sm:$0xff]
        %v2581 = vld [vmem:[%s1096 + $0x10] sm:$0xff]
        %v2582 = vld [vmem:[%s1096 + $0x18] sm:$0xff]
        %v2583 = vld [vmem:[%s1096 + $0x20] sm:$0xff]
        %v2584 = vld [vmem:[%s1096 + $0x28] sm:$0xff]
        %v2585 = vld [vmem:[%s1096 + $0x30] sm:$0xff]
        %v2586 = vld [vmem:[%s1096 + $0x38] sm:$0xff]
        %v2587 = vld [vmem:[%s1096 + $0x40] sm:$0xff]
        %v2588 = vld [vmem:[%s1096 + $0x48] sm:$0xff]
        %v2589 = vld [vmem:[%s1096 + $0x50] sm:$0xff]
        %v2590 = vld [vmem:[%s1096 + $0x58] sm:$0xff]
        %v2591 = vld [vmem:[%s1096 + $0x60] sm:$0xff]
        %v2592 = vld [vmem:[%s1096 + $0x68] sm:$0xff]
        %v2593 = vld [vmem:[%s1096 + $0x70] sm:$0xff]
        %v2594 = vld [vmem:[%s1096 + $0x78] sm:$0xff]
        %v2595 = vld [vmem:[%s1100] sm:$0x3]
        %v2597 = vlaneseq
        %v2598 = vshrl.u32 %v2597, 7
        %v2599 = vsub.s32 0, %v2598
        %v2600 = vrot.slane %v2595, %v2599
        %v2601 = vlaneseq
        %v2602 = vshrl.u32 %v2601, 7
        %v2603 = vsub.s32 1, %v2602
        %v2604 = vrot.slane %v2595, %v2603
        %v2623 = vunpack.c.l.b16 %v2579
        %v2624 = vunpack.c.h.b16 %v2579
        %v2625 = vunpack.c.l.b16 %v2580
        %v2626 = vunpack.c.h.b16 %v2580
        %v2627 = vunpack.c.l.b16 %v2581
        %v2628 = vunpack.c.h.b16 %v2581
        %v2629 = vunpack.c.l.b16 %v2582
        %v2630 = vunpack.c.h.b16 %v2582
        %v2631 = vunpack.c.l.b16 %v2583
        %v2632 = vunpack.c.h.b16 %v2583
        %v2633 = vunpack.c.l.b16 %v2584
        %v2634 = vunpack.c.h.b16 %v2584
        %v2635 = vunpack.c.l.b16 %v2585
        %v2636 = vunpack.c.h.b16 %v2585
        %v2637 = vunpack.c.l.b16 %v2586
        %v2638 = vunpack.c.h.b16 %v2586
        %v2639 = vunpack.c.l.b16 %v2587
        %v2640 = vunpack.c.h.b16 %v2587
        %v2641 = vunpack.c.l.b16 %v2588
        %v2642 = vunpack.c.h.b16 %v2588
        %v2643 = vunpack.c.l.b16 %v2589
        %v2644 = vunpack.c.h.b16 %v2589
        %v2645 = vunpack.c.l.b16 %v2590
        %v2646 = vunpack.c.h.b16 %v2590
        %v2647 = vunpack.c.l.b16 %v2591
        %v2648 = vunpack.c.h.b16 %v2591
        %v2649 = vunpack.c.l.b16 %v2592
        %v2650 = vunpack.c.h.b16 %v2592
        %v2651 = vunpack.c.l.b16 %v2593
        %v2652 = vunpack.c.h.b16 %v2593
        %v2653 = vunpack.c.l.b16 %v2594
        %v2654 = vunpack.c.h.b16 %v2594
        %v2655 = vpack.c.b16 %v2625, %v2623
        %v2656 = vpack.c.b16 %v2626, %v2624
        %v2657 = vpack.c.b16 %v2629, %v2627
        %v2658 = vpack.c.b16 %v2630, %v2628
        %v2659 = vpack.c.b16 %v2633, %v2631
        %v2660 = vpack.c.b16 %v2634, %v2632
        %v2661 = vpack.c.b16 %v2637, %v2635
        %v2662 = vpack.c.b16 %v2638, %v2636
        %v2663 = vpack.c.b16 %v2641, %v2639
        %v2664 = vpack.c.b16 %v2642, %v2640
        %v2665 = vpack.c.b16 %v2645, %v2643
        %v2666 = vpack.c.b16 %v2646, %v2644
        %v2667 = vpack.c.b16 %v2649, %v2647
        %v2668 = vpack.c.b16 %v2650, %v2648
        %v2669 = vpack.c.b16 %v2653, %v2651
        %v2670 = vpack.c.b16 %v2654, %v2652
        %2687 = vmatprep.subr.bf16.mxu0 %v2656
        %2688 = vmatpush1.bf16.msra.mxu0 %v2655
        %2689 = vmatprep.subr.bf16.mxu0 %v2658
        %2690 = vmatpush1.bf16.msra.mxu0 %v2657
        %2691 = vmatprep.subr.bf16.mxu0 %v2660
        %2692 = vmatpush1.bf16.msra.mxu0 %v2659
        %2693 = vmatprep.subr.bf16.mxu0 %v2662
        %2694 = vmatpush1.bf16.msra.mxu0 %v2661
        %2695 = vmatprep.subr.bf16.mxu0 %v2664
        %2696 = vmatpush1.bf16.msra.mxu0 %v2663
        %2697 = vmatprep.subr.bf16.mxu0 %v2666
        %2698 = vmatpush1.bf16.msra.mxu0 %v2665
        %2699 = vmatprep.subr.bf16.mxu0 %v2668
        %2700 = vmatpush1.bf16.msra.mxu0 %v2667
        %2701 = vmatprep.subr.bf16.mxu0 %v2670
        %2702 = vmatpush1.bf16.msra.mxu0 %v2669
        %2703 = vmatprep.subr.bf16.mxu0 0
        %2704 = vmatpush1.bf16.msra.mxu0 0
        %2705 = vmatprep.subr.bf16.mxu0 0
        %2706 = vmatpush1.bf16.msra.mxu0 0
        %2707 = vmatprep.subr.bf16.mxu0 0
        %2708 = vmatpush1.bf16.msra.mxu0 0
        %2709 = vmatprep.subr.bf16.mxu0 0
        %2710 = vmatpush1.bf16.msra.mxu0 0
        %2711 = vmatprep.subr.bf16.mxu0 0
        %2712 = vmatpush1.bf16.msra.mxu0 0
        %2713 = vmatprep.subr.bf16.mxu0 0
        %2714 = vmatpush1.bf16.msra.mxu0 0
        %2715 = vmatprep.subr.bf16.mxu0 0
        %2716 = vmatpush1.bf16.msra.mxu0 0
        %2717 = vmatprep.subr.bf16.mxu0 0
        %2718 = vmatpush1.bf16.msra.mxu0 0
        %2719 = vmatprep.mubr.bf16.mxu0 0
        %2720 = vmatmul.mubr.bf16.gmra.mrb[0].mxu0 %v2578
        %v2721 = vpop.f32.mrb[0].mxu0
        %v2722 = vadd.f32 %v2600, %v2721
        %v2723 = vpop.f32.mrb[0].mxu0
        %v2724 = vadd.f32 %v2604, %v2723
        %v2725 = vpop.f32.mrb[0].mxu0
        %v2726 = vpop.f32.mrb[0].mxu0
        %2727 = vdwg.mxu0
        %v2728 = vmul.f32 %v2722, 0.5
        %v2729 = vmul.f32 %v2724, 0.5
        %v2730 = vmul.f32 %v2722, 0.044715
        %v2731 = vmul.f32 %v2724, 0.044715
        %v2732 = vmul.f32 %v2730, %v2722
        %v2733 = vmul.f32 %v2731, %v2724
        %v2734 = vmul.f32 %v2732, %v2722
        %v2735 = vmul.f32 %v2733, %v2724
        %v2736 = vadd.f32 %v2722, %v2734
        %v2737 = vadd.f32 %v2724, %v2735
        %v2738 = vmul.f32 %v2736, 0.7978846
        %v2739 = vmul.f32 %v2737, 0.7978846
        %v2740 = vtanh.pop %v2738
        %v2741 = vtanh.pop %v2739
        %v2742 = vadd.f32 %v2740, 1.0
        %v2743 = vadd.f32 %v2741, 1.0
        %v2744 = vmul.f32 %v2728, %v2742
        %v2745 = vmul.f32 %v2729, %v2743
        %v2746 = vpack.c.bf16 %v2744, %v2744
        %v2747 = vpack.c.bf16 %v2745, %v2745
        %v2748 = vld [vmem:[%s947] sm:$0xf]
        %v2749 = vld [vmem:[%s947 + $0x4] sm:$0xf]
        %v2750 = vld [vmem:[%s947 + $0x8] sm:$0xf]
        %v2751 = vld [vmem:[%s947 + $0xc] sm:$0xf]
        %v2752 = vld [vmem:[%s947 + $0x10] sm:$0xf]
        %v2753 = vld [vmem:[%s947 + $0x14] sm:$0xf]
        %v2754 = vld [vmem:[%s947 + $0x18] sm:$0xf]
        %v2755 = vld [vmem:[%s947 + $0x1c] sm:$0xf]
        %v2756 = vld [vmem:[%s947 + $0x20] sm:$0xf]
        %v2757 = vld [vmem:[%s947 + $0x24] sm:$0xf]
        %v2758 = vld [vmem:[%s947 + $0x28] sm:$0xf]
        %v2759 = vld [vmem:[%s947 + $0x2c] sm:$0xf]
        %v2760 = vld [vmem:[%s947 + $0x30] sm:$0xf]
        %v2761 = vld [vmem:[%s947 + $0x34] sm:$0xf]
        %v2762 = vld [vmem:[%s947 + $0x38] sm:$0xf]
        %v2763 = vld [vmem:[%s947 + $0x3c] sm:$0xf]
        %v2764 = vld [vmem:[%s947 + $0x40] sm:$0xf]
        %v2765 = vld [vmem:[%s947 + $0x44] sm:$0xf]
        %v2766 = vld [vmem:[%s947 + $0x48] sm:$0xf]
        %v2767 = vld [vmem:[%s947 + $0x4c] sm:$0xf]
        %v2768 = vld [vmem:[%s947 + $0x50] sm:$0xf]
        %v2769 = vld [vmem:[%s947 + $0x54] sm:$0xf]
        %v2770 = vld [vmem:[%s947 + $0x58] sm:$0xf]
        %v2771 = vld [vmem:[%s947 + $0x5c] sm:$0xf]
        %v2772 = vld [vmem:[%s947 + $0x60] sm:$0xf]
        %v2773 = vld [vmem:[%s947 + $0x64] sm:$0xf]
        %v2774 = vld [vmem:[%s947 + $0x68] sm:$0xf]
        %v2775 = vld [vmem:[%s947 + $0x6c] sm:$0xf]
        %v2776 = vld [vmem:[%s947 + $0x70] sm:$0xf]
        %v2777 = vld [vmem:[%s947 + $0x74] sm:$0xf]
        %v2778 = vld [vmem:[%s947 + $0x78] sm:$0xf]
        %v2779 = vld [vmem:[%s947 + $0x7c] sm:$0xf]
        %v2780 = vld [vmem:[%s955] sm:$0x1]
        %v2782 = vlaneseq
        %v2783 = vshrl.u32 %v2782, 7
        %v2784 = vsub.s32 0, %v2783
        %v2785 = vrot.slane %v2780, %v2784
        %v2819 = vunpack.c.l.b16 %v2748
        %v2820 = vunpack.c.l.b16 %v2749
        %v2821 = vunpack.c.l.b16 %v2750
        %v2822 = vunpack.c.l.b16 %v2751
        %v2823 = vunpack.c.l.b16 %v2752
        %v2824 = vunpack.c.l.b16 %v2753
        %v2825 = vunpack.c.l.b16 %v2754
        %v2826 = vunpack.c.l.b16 %v2755
        %v2827 = vunpack.c.l.b16 %v2756
        %v2828 = vunpack.c.l.b16 %v2757
        %v2829 = vunpack.c.l.b16 %v2758
        %v2830 = vunpack.c.l.b16 %v2759
        %v2831 = vunpack.c.l.b16 %v2760
        %v2832 = vunpack.c.l.b16 %v2761
        %v2833 = vunpack.c.l.b16 %v2762
        %v2834 = vunpack.c.l.b16 %v2763
        %v2835 = vunpack.c.l.b16 %v2764
        %v2836 = vunpack.c.l.b16 %v2765
        %v2837 = vunpack.c.l.b16 %v2766
        %v2838 = vunpack.c.l.b16 %v2767
        %v2839 = vunpack.c.l.b16 %v2768
        %v2840 = vunpack.c.l.b16 %v2769
        %v2841 = vunpack.c.l.b16 %v2770
        %v2842 = vunpack.c.l.b16 %v2771
        %v2843 = vunpack.c.l.b16 %v2772
        %v2844 = vunpack.c.l.b16 %v2773
        %v2845 = vunpack.c.l.b16 %v2774
        %v2846 = vunpack.c.l.b16 %v2775
        %v2847 = vunpack.c.l.b16 %v2776
        %v2848 = vunpack.c.l.b16 %v2777
        %v2849 = vunpack.c.l.b16 %v2778
        %v2850 = vunpack.c.l.b16 %v2779
        %v2851 = vpack.c.b16 %v2820, %v2819
        %v2852 = vpack.c.b16 %v2822, %v2821
        %v2853 = vpack.c.b16 %v2824, %v2823
        %v2854 = vpack.c.b16 %v2826, %v2825
        %v2855 = vpack.c.b16 %v2828, %v2827
        %v2856 = vpack.c.b16 %v2830, %v2829
        %v2857 = vpack.c.b16 %v2832, %v2831
        %v2858 = vpack.c.b16 %v2834, %v2833
        %v2859 = vpack.c.b16 %v2836, %v2835
        %v2860 = vpack.c.b16 %v2838, %v2837
        %v2861 = vpack.c.b16 %v2840, %v2839
        %v2862 = vpack.c.b16 %v2842, %v2841
        %v2863 = vpack.c.b16 %v2844, %v2843
        %v2864 = vpack.c.b16 %v2846, %v2845
        %v2865 = vpack.c.b16 %v2848, %v2847
        %v2866 = vpack.c.b16 %v2850, %v2849
        %2883 = vmatprep.subr.bf16.mxu0 0
        %2884 = vmatpush1.bf16.msra.mxu0 %v2851
        %2885 = vmatprep.subr.bf16.mxu0 0
        %2886 = vmatpush1.bf16.msra.mxu0 %v2852
        %2887 = vmatprep.subr.bf16.mxu0 0
        %2888 = vmatpush1.bf16.msra.mxu0 %v2853
        %2889 = vmatprep.subr.bf16.mxu0 0
        %2890 = vmatpush1.bf16.msra.mxu0 %v2854
        %2891 = vmatprep.subr.bf16.mxu0 0
        %2892 = vmatpush1.bf16.msra.mxu0 %v2855
        %2893 = vmatprep.subr.bf16.mxu0 0
        %2894 = vmatpush1.bf16.msra.mxu0 %v2856
        %2895 = vmatprep.subr.bf16.mxu0 0
        %2896 = vmatpush1.bf16.msra.mxu0 %v2857
        %2897 = vmatprep.subr.bf16.mxu0 0
        %2898 = vmatpush1.bf16.msra.mxu0 %v2858
        %2899 = vmatprep.subr.bf16.mxu0 0
        %2900 = vmatpush1.bf16.msra.mxu0 %v2859
        %2901 = vmatprep.subr.bf16.mxu0 0
        %2902 = vmatpush1.bf16.msra.mxu0 %v2860
        %2903 = vmatprep.subr.bf16.mxu0 0
        %2904 = vmatpush1.bf16.msra.mxu0 %v2861
        %2905 = vmatprep.subr.bf16.mxu0 0
        %2906 = vmatpush1.bf16.msra.mxu0 %v2862
        %2907 = vmatprep.subr.bf16.mxu0 0
        %2908 = vmatpush1.bf16.msra.mxu0 %v2863
        %2909 = vmatprep.subr.bf16.mxu0 0
        %2910 = vmatpush1.bf16.msra.mxu0 %v2864
        %2911 = vmatprep.subr.bf16.mxu0 0
        %2912 = vmatpush1.bf16.msra.mxu0 %v2865
        %2913 = vmatprep.subr.bf16.mxu0 0
        %2914 = vmatpush1.bf16.msra.mxu0 %v2866
        %2915 = vmatprep.mubr.bf16.mxu0 %v2747
        %2916 = vmatmul.mubr.bf16.gmra.mrb[0].mxu0 %v2746
        %v2917 = vpop.f32.mrb[0].mxu0
        %v2918 = vadd.f32 %v2785, %v2917
        %v2919 = vpop.f32.mrb[0].mxu0
        %v2920 = vpop.f32.mrb[0].mxu0
        %v2921 = vpop.f32.mrb[0].mxu0
        %2922 = vdwg.mxu0
        %v2923 = vadd.f32 %v2918, %v2577
        %v2924 = vld [vmem:[%s1103] sm:$0x1]
        %v2925 = vld [vmem:[%s1106] sm:$0x1]
        %2926 = vadd.xlane.f32.xlu0 %v2923
        %v2927 = vpop.xlane.xlu0 %2926
        %v2928 = vmul.f32 %v2927, %v2554
        %v2929 = vsub.f32 %v2923, %v2928
        %v2930 = vmul.f32 %v2929, %v2929
        %2931 = vadd.xlane.f32.xlu0 %v2930
        %v2932 = vpop.xlane.xlu0 %2931
        %v2933 = vmul.f32 %v2932, %v2554
        %v2934 = vadd.f32 %v2933, 1e-12
        %v2935 = vrsqrt.pop %v2934
        %v2936 = vmul.f32 %v2929, %v2935
        %v2938 = vlaneseq
        %v2939 = vshrl.u32 %v2938, 7
        %v2940 = vsub.s32 0, %v2939
        %v2941 = vrot.slane %v2924, %v2940
        %v2943 = vmul.f32 %v2936, %v2941
        %v2945 = vlaneseq
        %v2946 = vshrl.u32 %v2945, 7
        %v2947 = vsub.s32 0, %v2946
        %v2948 = vrot.slane %v2925, %v2947
        %v2950 = vadd.f32 %v2943, %v2948
        %2951 = vst [vmem:[%s1075] sm:$0xff] %v2950
        %p2952 = scmp.eq.s32.totalorder %s57, 1
        // Predicated region
        $region153: #{transformer_scorer_forward.1} parent=107 // pred_check
          %p2953 = pneg %p2952
        $region154: #{transformer_scorer_forward.1} parent=107 // pred_check_branch
          %2955 = sbr.rel (%p2953) target = $region156
        $region155: #{transformer_scorer_forward.1} parent=107 // pred_region
          %v2956 = vpack.c.bf16 %v2950, %v2950
          %v2957 = vld [vmem:[%s16] sm:$0xf]
          %v2958 = vld [vmem:[%s16 + $0x4] sm:$0xf]
          %v2959 = vld [vmem:[%s16 + $0x8] sm:$0xf]
          %v2960 = vld [vmem:[%s16 + $0xc] sm:$0xf]
          %v2961 = vld [vmem:[%s16 + $0x10] sm:$0xf]
          %v2962 = vld [vmem:[%s16 + $0x14] sm:$0xf]
          %v2963 = vld [vmem:[%s16 + $0x18] sm:$0xf]
          %v2964 = vld [vmem:[%s16 + $0x1c] sm:$0xf]
          %v2965 = vld [vmem:[%s16 + $0x20] sm:$0xf]
          %v2966 = vld [vmem:[%s16 + $0x24] sm:$0xf]
          %v2967 = vld [vmem:[%s16 + $0x28] sm:$0xf]
          %v2968 = vld [vmem:[%s16 + $0x2c] sm:$0xf]
          %v2969 = vld [vmem:[%s16 + $0x30] sm:$0xf]
          %v2970 = vld [vmem:[%s16 + $0x34] sm:$0xf]
          %v2971 = vld [vmem:[%s16 + $0x38] sm:$0xf]
          %v2972 = vld [vmem:[%s16 + $0x3c] sm:$0xf]
          %v2973 = vld [vmem:[%s17] sm:$0x1]
          %v2990 = vunpack.c.l.b16 %v2957
          %v2991 = vunpack.c.l.b16 %v2958
          %v2992 = vunpack.c.l.b16 %v2959
          %v2993 = vunpack.c.l.b16 %v2960
          %v2994 = vunpack.c.l.b16 %v2961
          %v2995 = vunpack.c.l.b16 %v2962
          %v2996 = vunpack.c.l.b16 %v2963
          %v2997 = vunpack.c.l.b16 %v2964
          %v2998 = vunpack.c.l.b16 %v2965
          %v2999 = vunpack.c.l.b16 %v2966
          %v3000 = vunpack.c.l.b16 %v2967
          %v3001 = vunpack.c.l.b16 %v2968
          %v3002 = vunpack.c.l.b16 %v2969
          %v3003 = vunpack.c.l.b16 %v2970
          %v3004 = vunpack.c.l.b16 %v2971
          %v3005 = vunpack.c.l.b16 %v2972
          %v3006 = vpack.c.b16 %v2991, %v2990
          %v3007 = vpack.c.b16 %v2993, %v2992
          %v3008 = vpack.c.b16 %v2995, %v2994
          %v3009 = vpack.c.b16 %v2997, %v2996
          %v3010 = vpack.c.b16 %v2999, %v2998
          %v3011 = vpack.c.b16 %v3001, %v3000
          %v3012 = vpack.c.b16 %v3003, %v3002
          %v3013 = vpack.c.b16 %v3005, %v3004
          %3022 = vmatprep.subr.bf16.mxu0 0
          %3023 = vmatpush1.bf16.msra.mxu0 %v3006
          %3024 = vmatprep.subr.bf16.mxu0 0
          %3025 = vmatpush1.bf16.msra.mxu0 %v3007
          %3026 = vmatprep.subr.bf16.mxu0 0
          %3027 = vmatpush1.bf16.msra.mxu0 %v3008
          %3028 = vmatprep.subr.bf16.mxu0 0
          %3029 = vmatpush1.bf16.msra.mxu0 %v3009
          %3030 = vmatprep.subr.bf16.mxu0 0
          %3031 = vmatpush1.bf16.msra.mxu0 %v3010
          %3032 = vmatprep.subr.bf16.mxu0 0
          %3033 = vmatpush1.bf16.msra.mxu0 %v3011
          %3034 = vmatprep.subr.bf16.mxu0 0
          %3035 = vmatpush1.bf16.msra.mxu0 %v3012
          %3036 = vmatprep.subr.bf16.mxu0 0
          %3037 = vmatpush1.bf16.msra.mxu0 %v3013
          %3038 = vmatprep.subr.bf16.mxu0 0
          %3039 = vmatpush1.bf16.msra.mxu0 0
          %3040 = vmatprep.subr.bf16.mxu0 0
          %3041 = vmatpush1.bf16.msra.mxu0 0
          %3042 = vmatprep.subr.bf16.mxu0 0
          %3043 = vmatpush1.bf16.msra.mxu0 0
          %3044 = vmatprep.subr.bf16.mxu0 0
          %3045 = vmatpush1.bf16.msra.mxu0 0
          %3046 = vmatprep.subr.bf16.mxu0 0
          %3047 = vmatpush1.bf16.msra.mxu0 0
          %3048 = vmatprep.subr.bf16.mxu0 0
          %3049 = vmatpush1.bf16.msra.mxu0 0
          %3050 = vmatprep.subr.bf16.mxu0 0
          %3051 = vmatpush1.bf16.msra.mxu0 0
          %3052 = vmatprep.subr.bf16.mxu0 0
          %3053 = vmatpush1.bf16.msra.mxu0 0
          %3054 = vmatprep.mubr.bf16.mxu0 0
          %3055 = vmatmul.mubr.bf16.gmra.mrb[0].mxu0 %v2956
          %v3056 = vpop.f32.mrb[0].mxu0
          %v3057 = vadd.f32 %v2973, %v3056
          %v3058 = vpop.f32.mrb[0].mxu0
          %v3059 = vpop.f32.mrb[0].mxu0
          %v3060 = vpop.f32.mrb[0].mxu0
          %3061 = vdwg.mxu0
          %v3062 = vtanh.pop %v3057
          %v3063 = vpack.c.bf16 %v3062, %v3062
          %v3064 = vld [vmem:[#allocation16] sm:$0xf]
          %v3065 = vld [vmem:[#allocation16 + $0x4] sm:$0xf]
          %v3066 = vld [vmem:[#allocation16 + $0x8] sm:$0xf]
          %v3067 = vld [vmem:[#allocation16 + $0xc] sm:$0xf]
          %v3068 = vld [vmem:[#allocation16 + $0x10] sm:$0xf]
          %v3069 = vld [vmem:[#allocation16 + $0x14] sm:$0xf]
          %v3070 = vld [vmem:[#allocation16 + $0x18] sm:$0xf]
          %v3071 = vld [vmem:[#allocation16 + $0x1c] sm:$0xf]
          %v3072 = vld [vmem:[#allocation16 + $0x20] sm:$0xf]
          %v3073 = vld [vmem:[#allocation16 + $0x24] sm:$0xf]
          %v3074 = vld [vmem:[#allocation16 + $0x28] sm:$0xf]
          %v3075 = vld [vmem:[#allocation16 + $0x2c] sm:$0xf]
          %v3076 = vld [vmem:[#allocation16 + $0x30] sm:$0xf]
          %v3077 = vld [vmem:[#allocation16 + $0x34] sm:$0xf]
          %v3078 = vld [vmem:[#allocation16 + $0x38] sm:$0xf]
          %v3079 = vld [vmem:[#allocation16 + $0x3c] sm:$0xf]
          %v3080 = vld [vmem:[%s19] sm:$0x1]
          %v3097 = vunpack.c.l.b16 %v3064
          %v3098 = vunpack.c.l.b16 %v3065
          %v3099 = vunpack.c.l.b16 %v3066
          %v3100 = vunpack.c.l.b16 %v3067
          %v3101 = vunpack.c.l.b16 %v3068
          %v3102 = vunpack.c.l.b16 %v3069
          %v3103 = vunpack.c.l.b16 %v3070
          %v3104 = vunpack.c.l.b16 %v3071
          %v3105 = vunpack.c.l.b16 %v3072
          %v3106 = vunpack.c.l.b16 %v3073
          %v3107 = vunpack.c.l.b16 %v3074
          %v3108 = vunpack.c.l.b16 %v3075
          %v3109 = vunpack.c.l.b16 %v3076
          %v3110 = vunpack.c.l.b16 %v3077
          %v3111 = vunpack.c.l.b16 %v3078
          %v3112 = vunpack.c.l.b16 %v3079
          %v3113 = vpack.c.b16 %v3098, %v3097
          %v3114 = vpack.c.b16 %v3100, %v3099
          %v3115 = vpack.c.b16 %v3102, %v3101
          %v3116 = vpack.c.b16 %v3104, %v3103
          %v3117 = vpack.c.b16 %v3106, %v3105
          %v3118 = vpack.c.b16 %v3108, %v3107
          %v3119 = vpack.c.b16 %v3110, %v3109
          %v3120 = vpack.c.b16 %v3112, %v3111
          %3129 = vmatprep.subr.bf16.mxu0 0
          %3130 = vmatpush1.bf16.msra.mxu0 %v3113
          %3131 = vmatprep.subr.bf16.mxu0 0
          %3132 = vmatpush1.bf16.msra.mxu0 %v3114
          %3133 = vmatprep.subr.bf16.mxu0 0
          %3134 = vmatpush1.bf16.msra.mxu0 %v3115
          %3135 = vmatprep.subr.bf16.mxu0 0
          %3136 = vmatpush1.bf16.msra.mxu0 %v3116
          %3137 = vmatprep.subr.bf16.mxu0 0
          %3138 = vmatpush1.bf16.msra.mxu0 %v3117
          %3139 = vmatprep.subr.bf16.mxu0 0
          %3140 = vmatpush1.bf16.msra.mxu0 %v3118
          %3141 = vmatprep.subr.bf16.mxu0 0
          %3142 = vmatpush1.bf16.msra.mxu0 %v3119
          %3143 = vmatprep.subr.bf16.mxu0 0
          %3144 = vmatpush1.bf16.msra.mxu0 %v3120
          %3145 = vmatprep.subr.bf16.mxu0 0
          %3146 = vmatpush1.bf16.msra.mxu0 0
          %3147 = vmatprep.subr.bf16.mxu0 0
          %3148 = vmatpush1.bf16.msra.mxu0 0
          %3149 = vmatprep.subr.bf16.mxu0 0
          %3150 = vmatpush1.bf16.msra.mxu0 0
          %3151 = vmatprep.subr.bf16.mxu0 0
          %3152 = vmatpush1.bf16.msra.mxu0 0
          %3153 = vmatprep.subr.bf16.mxu0 0
          %3154 = vmatpush1.bf16.msra.mxu0 0
          %3155 = vmatprep.subr.bf16.mxu0 0
          %3156 = vmatpush1.bf16.msra.mxu0 0
          %3157 = vmatprep.subr.bf16.mxu0 0
          %3158 = vmatpush1.bf16.msra.mxu0 0
          %3159 = vmatprep.subr.bf16.mxu0 0
          %3160 = vmatpush1.bf16.msra.mxu0 0
          %3161 = vmatprep.mubr.bf16.mxu0 0
          %3162 = vmatmul.mubr.bf16.gmra.mrb[0].mxu0 %v3063
          %v3163 = vpop.f32.mrb[0].mxu0
          %v3164 = vadd.f32 %v3080, %v3163
          %v3165 = vpop.f32.mrb[0].mxu0
          %v3166 = vpop.f32.mrb[0].mxu0
          %v3167 = vpop.f32.mrb[0].mxu0
          %3168 = vdwg.mxu0
          %v3169 = vmax.f32 %v3164, 0.0
          %v3170 = vld [vmem:[#allocation17] sm:$0x1]
          %v3171 = vmul.f32 %v3169, %v3170
          %vm3172 = vcmask 1040384
          %v3173 = vsel %vm3172, %v3171, 0.0
          %3174 = vadd.xlane.f32.xlu0 %v3173
          %v3175 = vpop.xlane.xlu0 %3174
          %v3176 = vld [vmem:[%s21] sm:$0x1]
          %v3177 = vadd.f32 %v3175, %v3176
          %3178 = vst [vmem:[%s1109] sm:$0x1] %v3177
        $region156: #{transformer_scorer_forward.1} parent=107 // pred_fallthru
          _
        %s3179 = sand.u32 %s604, 1
        %s3180 = scalar_lea.sflag [#allocation4], %s3179
        %s3181 = sand.u32 %s604, 1
        %s3182 = smul.addr %s3181, 8
        %s3183 = scalar_lea.vmem [#allocation19], %s3182
        %p3184 = scmp.lt.s32.totalorder %s56, 1
        %s3185 = scalar_select %p3184, %s56, 1
        %s3186 = scalar_lea.vmem %s23, %s3185
        // Predicated region
        $region157: #{transformer_scorer_forward.1} parent=107 // pred_check
          %p3187 = pneg %p614
        $region158: #{transformer_scorer_forward.1} parent=107 // pred_check_branch
          %3189 = sbr.rel (%p3187) target = $region160
        $region159: #{transformer_scorer_forward.1} parent=107 // pred_region
          %s3191 = ssub.s32 128, 128
          %3192 = vsyncadd %s3180, %s3191
          %s3193 = smul.addr %s56, 128
          %s3194 = scalar_lea.hbm %s22, %s3193
          %s3196 = sshll.u32 %s3183, 4
          %s3197 = int_to_ptr.vmem [resolvable:$true] %s3196
          %3199 = dma.vmem_to_hbm [thread:$0]  %s3197, 128, %s3194, %s3180
        $region160: #{transformer_scorer_forward.1} parent=107 // pred_fallthru
          _
        // Predicated region
        $region161: #{transformer_scorer_forward.1} parent=107 // pred_check
          %p3200 = pneg %p640
        $region162: #{transformer_scorer_forward.1} parent=107 // pred_check_branch
          %3202 = sbr.rel (%p3200) target = $region164
        $region163: #{transformer_scorer_forward.1} parent=107 // pred_region
          _
        $region164: #{transformer_scorer_forward.1} parent=107 // pred_fallthru
          _
      $region108: #{transformer_scorer_forward.1} parent=5 // pred_fallthru
        _
      %p3203 = scmp.le.s32.totalorder 2, %s47
      // Predicated region
      $region165: #{transformer_scorer_forward.1} parent=5 // pred_check
        %p3204 = pneg %p3203
      $region166: #{transformer_scorer_forward.1} parent=5 // pred_check_branch
        %3206 = sbr.rel (%p3204) target = $region168
      $region167: #{transformer_scorer_forward.1} parent=5 // pred_region
        %s3207 = ssub.s32 %s47, 2
        // Predicated region
        $region169: #{transformer_scorer_forward.1} parent=167 // pred_check
          %p3208 = pneg %p620
        $region170: #{transformer_scorer_forward.1} parent=167 // pred_check_branch
          %3210 = sbr.rel (%p3208) target = $region172
        $region171: #{transformer_scorer_forward.1} parent=167 // pred_region
          %s3211 = sand.u32 %s605, 1
          %s3212 = scalar_lea.sflag [#allocation4], %s3211
          %s3213 = sand.u32 %s605, 1
          %s3214 = smul.addr %s3213, 8
          %s3215 = scalar_lea.vmem [#allocation19], %s3214
          %3216 = dma.done %s3212, 128
        $region172: #{transformer_scorer_forward.1} parent=167 // pred_fallthru
          _
        // Predicated region
        $region173: #{transformer_scorer_forward.1} parent=167 // pred_check
          %p3217 = pneg %p646
        $region174: #{transformer_scorer_forward.1} parent=167 // pred_check_branch
          %3219 = sbr.rel (%p3217) target = $region176
        $region175: #{transformer_scorer_forward.1} parent=167 // pred_region
          %p3220 = scmp.lt.s32.totalorder %s58, 1
          %s3221 = scalar_select %p3220, %s58, 1
          %s3222 = scalar_lea.vmem %s23, %s3221
        $region176: #{transformer_scorer_forward.1} parent=167 // pred_fallthru
          _
      $region168: #{transformer_scorer_forward.1} parent=5 // pred_fallthru
        _
    $region6: #{transformer_scorer_forward.1} parent=1 // loop_footer
      %s51 = sadd.s32 1, %s47
    $region7: #{transformer_scorer_forward.1} parent=1 // loop_footer_branch
      %46 = sbr.rel target = $region3
    $region8: #{transformer_scorer_forward.1} parent=1 // loop_exit
      _
    %3223 = vsyncpa [#allocation3], 1
    %s3224 = scalar_lea.sflag [#allocation3], 1
    %3225 = vsyncpa %s3224, 1
    %3226 = vsyncpa [#allocation6], 1
    %s3227 = scalar_lea.sflag [#allocation6], 1
    %3228 = vsyncpa %s3227, 1
    %3229 = vsyncpa [#allocation9], 1
    %s3230 = scalar_lea.sflag [#allocation9], 1
    %3231 = vsyncpa %s3230, 1
    %3232 = vsyncpa [#allocation12], 1
    %s3233 = scalar_lea.sflag [#allocation12], 1
    %3234 = vsyncpa %s3233, 1
    %3235 = vsyncpa [#allocation15], 1
    %s3236 = scalar_lea.sflag [#allocation15], 1
    %3237 = vsyncpa %s3236, 1
    %3238 = vsyncpa [#allocation18], 1
    %3239 = vsyncpa [#allocation4], 1
    %s3240 = scalar_lea.sflag [#allocation4], 1
    %3241 = vsyncpa %s3240, 1

</llo_original>
